<compile_context>
chip_gen: v5e
topology: v5e:2x2
jax: 0.10.0
libtpu: 0.0.40
codegen_flags: <defaults>
</compile_context>

<pallas_src>
import functools
import math

import jax
import jax.numpy as jnp
import numpy as np
from jax.experimental import pallas as pl
from jax.experimental.pallas import tpu as pltpu

EPS = 1e-5


def _round_up(x, m):
    return ((x + m - 1) // m) * m


# ---------------------------------------------------------------------------
# In-kernel helpers / kernels
# ---------------------------------------------------------------------------
def _pad_lanes(val, total):
    cur = val.shape[-1]
    if total == cur:
        return val
    return jnp.concatenate(
        [val, jnp.zeros(val.shape[:-1] + (total - cur,), val.dtype)], axis=-1)


def _stack_taps(get_slice, wp, length):
    """Gather the 9 shifted 3x3-tap slices and stack them along the K axis."""
    parts = []
    for kh in range(3):
        for kw in range(3):
            off = (kh + 1) * wp + (kw - 1)        # = 2*wp + (kh-1)*wp + (kw-1)
            parts.append(get_slice(off, length))
    return jnp.concatenate(parts, axis=0)


def _m1_pool_kernel(xs_ref, w_ref, b_ref, vm_ref, o_ref, *, c, wp, lh, ls_pad):
    """conv3x3 (+folded BN) + ReLU + AvgPool2d(2), fused.

    xs_ref : (2c, lsplit_pad) column-parity-split zero-extended input
             (rows [0,c) = even columns, rows [c,2c) = odd columns).
    Output : (16, ls_pad) pooled features already in the zero-extended
             half-res layout (valid (r2,c2) at flat (2+r2)*wp + c2).
    The conv is evaluated separately for each output parity (a, b) so the
    ReLU is applied *before* the pooling average, matching the module.
    """
    wph = wp // 2
    acc = jnp.zeros((16, lh), jnp.float32)
    for a in range(2):
        for b in range(2):
            parts = []
            for kh in range(3):
                for kw in range(3):
                    par = (b + kw) % 2
                    off = (a + kh + 1) * wph + (b + kw) // 2
                    parts.append(xs_ref[par * c:(par + 1) * c, off:off + lh])
            stacked = jnp.concatenate(parts, axis=0)               # (9c, lh)
            y = jnp.dot(w_ref[...], stacked,
                        preferred_element_type=jnp.float32) + b_ref[...]
            acc = acc + jnp.maximum(y, 0.0)
    pooled = (0.25 * acc) * vm_ref[...]
    zlead = jnp.zeros((16, 2 * wp), jnp.float32)
    ztail = jnp.zeros((16, ls_pad - 2 * wp - lh), jnp.float32)
    o_ref[...] = jnp.concatenate([zlead, pooled, ztail], axis=1)


def _mid_kernel(m_ref, w2_ref, b2_ref, w3_ref, b3_ref, vm_ref, o_ref, *,
                wp, lh, ls_pad, lmid_pad):
    """(conv3x3 + folded BN + ReLU) x 2 at half resolution, fused in-kernel.

    conv2's output is re-zeroed at the pad columns (vm) and re-extended as a
    VMEM value that feeds conv3 directly — no HBM round trip between them.
    """
    st2 = _stack_taps(lambda off, n: m_ref[:, off:off + n], wp, lh)
    y2 = jnp.dot(w2_ref[...], st2, preferred_element_type=jnp.float32)
    y2 = jnp.maximum(y2 + b2_ref[...], 0.0) * vm_ref[...]
    zlead = jnp.zeros((16, 2 * wp), jnp.float32)
    ztail = jnp.zeros((16, ls_pad - 2 * wp - lh), jnp.float32)
    ext2 = jnp.concatenate([zlead, y2, ztail], axis=1)             # (16, ls_pad)
    st3 = _stack_taps(lambda off, n: ext2[:, off:off + n], wp, lh)
    y3 = jnp.dot(w3_ref[...], st3, preferred_element_type=jnp.float32)
    y3 = jnp.maximum(y3 + b3_ref[...], 0.0)
    o_ref[...] = _pad_lanes(y3, lmid_pad)


def _adapt_mask_kernel(xe_ref, wa_ref, mhat_ref, sh_ref, sw_ref, b4_ref, o_ref,
                       *, c, wp, h, core, core_pad):
    """Fused mask tail + ScaleAwareConv2d + residual.

    mask = sigmoid(conv_m4(upsample2x(feat)) + b4) is built in VMEM from the
    half-res features via the precomposed SH/SW matrices:
        maskpre(p, q) = sum_t (SH_t @ mhat_t @ SW_t)[p, 1 + q]
    out  = x + conv_adapt(x) * mask, stored as one lane-dense slab.
    """
    h2 = h // 2
    acc = jnp.zeros((h, wp), jnp.float32)
    for t in range(9):
        tmp = jnp.dot(mhat_ref[t * h2:(t + 1) * h2, :], sw_ref[t],
                      preferred_element_type=jnp.float32)          # (h2, wp)
        acc = acc + jnp.dot(sh_ref[t], tmp,
                            preferred_element_type=jnp.float32)    # (h, wp)
    mask2d = jax.nn.sigmoid(acc + b4_ref[...])
    # Flatten rows onto the lane axis with slices + concat (robust relayout).
    mask_flat = jnp.concatenate([mask2d[r:r + 1, :] for r in range(h)], axis=1)

    st = _stack_taps(lambda off, n: xe_ref[:, off:off + n], wp, core)
    adapted = jnp.dot(wa_ref[...], st, preferred_element_type=jnp.float32)
    res = xe_ref[:, 2 * wp:2 * wp + core] + adapted * mask_flat
    o_ref[...] = _pad_lanes(res, core_pad)


# ---------------------------------------------------------------------------
# Host-side helpers (one-shot scalar math / cheap layout glue only)
# ---------------------------------------------------------------------------
def _fold_bn(conv_bias, bn):
    gamma, beta, mean, var = bn
    s = gamma * jax.lax.rsqrt(var + EPS)
    return s, (conv_bias - mean) * s + beta


def _stack_w(w_oihw):
    """(Cout, Cin, 3, 3) -> (Cout, 9*Cin) matching the stacked-K tap order."""
    co, ci = w_oihw.shape[0], w_oihw.shape[1]
    return jnp.transpose(w_oihw, (0, 2, 3, 1)).reshape(co, 9 * ci)


def _upsample2x_matrix(n_in):
    """PyTorch Upsample(scale_factor=2, bilinear, align_corners=False)."""
    n_out = 2 * n_in
    u = np.zeros((n_out, n_in), dtype=np.float32)
    for o in range(n_out):
        src = max((o + 0.5) / 2.0 - 0.5, 0.0)
        i0 = int(np.floor(src))
        frac = src - i0
        i1 = min(i0 + 1, n_in - 1)
        u[o, i0] += 1.0 - frac
        u[o, i1] += frac
    return u


def _mask_tail_matrices(h, w):
    """Precompose the bilinear 2x upsample with each of the 9 m4 conv taps."""
    h2, w2, wp = h // 2, w // 2, w + 2
    uh = _upsample2x_matrix(h2)                    # (h, h2)
    uw = _upsample2x_matrix(w2)                    # (w, w2)
    uh_pad = np.zeros((h + 2, h2), np.float32)
    uh_pad[1:h + 1] = uh
    uw_pad = np.zeros((w + 2, w2), np.float32)
    uw_pad[1:w + 1] = uw
    sh = np.zeros((9, h, h2), np.float32)
    sw = np.zeros((9, w2, wp), np.float32)
    for kh in range(3):
        for kw in range(3):
            t = kh * 3 + kw
            sh[t] = uh_pad[kh:kh + h]
            sw[t][:, 1:1 + w] = uw_pad[kw:kw + w].T
    return jnp.asarray(sh), jnp.asarray(sw)


def _routing_fused_ws(params, scale, scale2):
    """Routing MLP + expert-weight fusion (microscopic, one XLA shot)."""
    s = jnp.array([[1.0 / scale, 1.0 / scale2]], jnp.float32)
    hid = jax.nn.relu(s @ params["r_w1"] + params["r_b1"])
    rw = jax.nn.softmax(hid @ params["r_w2"] + params["r_b2"], axis=-1)[0]
    fused = jnp.einsum("e,eoikl->oikl", rw, params["weight_pool"])
    return _stack_w(fused)


# ---------------------------------------------------------------------------
# Full ScaleAwareAdapt forward (NCHW in, NCHW out)
# ---------------------------------------------------------------------------
def scale_aware_adapt_forward(params, x_nchw, scale, scale2):
    x = x_nchw.astype(jnp.float32)
    n, c, h, w = x.shape
    assert h % 2 == 0 and w % 2 == 0, "AvgPool2d(2) needs even spatial dims"
    h2, w2 = h // 2, w // 2
    wp = w + 2
    wph = wp // 2
    core = h * wp                                  # full-res eval length
    lh = h2 * wp                                   # half-res eval length
    core_pad = _round_up(core, 128)
    le_pad = _round_up((h + 4) * wp, 128)
    ls_pad = _round_up((h2 + 4) * wp, 128)
    lsplit_pad = _round_up((h2 + 2) * wp + 1, 128)
    lmid_pad = _round_up(lh, 128)

    cparams = pltpu.CompilerParams(dimension_semantics=("parallel",),
                                   vmem_limit_bytes=64 * 1024 * 1024)

    # --- layouts built once in XLA (cheap data movement only) ---
    xpad = jnp.pad(x, ((0, 0), (0, 0), (2, 2), (1, 1)))            # (n,c,h+4,wp)
    xe = xpad.reshape(n, c, (h + 4) * wp)
    xe = jnp.pad(xe, ((0, 0), (0, 0), (0, le_pad - (h + 4) * wp)))
    xsp = xpad.reshape(n, c, h + 4, wph, 2)
    xs = jnp.concatenate([xsp[..., 0], xsp[..., 1]], axis=1)        # (n,2c,h+4,wph)
    xs = xs.reshape(n, 2 * c, (h + 4) * wph)
    xs = jnp.pad(xs, ((0, 0), (0, 0), (0, lsplit_pad - (h + 4) * wph)))

    vm_np = np.zeros((h2, wp), np.float32)
    vm_np[:, :w2] = 1.0
    vm = jnp.asarray(vm_np.reshape(1, lh))

    # --- folded weights (BN scale baked into the conv weights) ---
    s1, b1 = _fold_bn(params["m1_b"], params["bn1"])
    w1s = _stack_w(params["m1_w"] * s1[:, None, None, None])
    s2, b2 = _fold_bn(params["m2_b"], params["bn2"])
    w2s = _stack_w(params["m2_w"] * s2[:, None, None, None])
    s3, b3 = _fold_bn(params["m3_b"], params["bn3"])
    w3s = _stack_w(params["m3_w"] * s3[:, None, None, None])
    s4, b4 = _fold_bn(params["m4_b"], params["bn4"])
    w4f = params["m4_w"] * s4[:, None, None, None]                  # (1,16,3,3)
    w4mat = jnp.transpose(w4f[0], (1, 2, 0)).reshape(9, 16)
    was = _routing_fused_ws(params, scale, scale2)                  # (c, 9c)
    sh, sw = _mask_tail_matrices(h, w)

    # --- kernel 1: m1 conv + BN + ReLU + AvgPool(2), fused ---
    mslab = pl.pallas_call(
        functools.partial(_m1_pool_kernel, c=c, wp=wp, lh=lh, ls_pad=ls_pad),
        out_shape=jax.ShapeDtypeStruct((n, 16, ls_pad), jnp.float32),
        grid=(n,),
        in_specs=[
            pl.BlockSpec((None, 2 * c, lsplit_pad), lambda i: (i, 0, 0)),
            pl.BlockSpec((16, 9 * c), lambda i: (0, 0)),
            pl.BlockSpec((16, 1), lambda i: (0, 0)),
            pl.BlockSpec((1, lh), lambda i: (0, 0)),
        ],
        out_specs=pl.BlockSpec((None, 16, ls_pad), lambda i: (i, 0, 0)),
        compiler_params=cparams,
    )(xs, w1s, b1.reshape(16, 1), vm)

    # --- kernel 2: fused (conv3x3 + BN + ReLU) x 2 at half resolution ---
    mid = pl.pallas_call(
        functools.partial(_mid_kernel, wp=wp, lh=lh, ls_pad=ls_pad,
                          lmid_pad=lmid_pad),
        out_shape=jax.ShapeDtypeStruct((n, 16, lmid_pad), jnp.float32),
        grid=(n,),
        in_specs=[
            pl.BlockSpec((None, 16, ls_pad), lambda i: (i, 0, 0)),
            pl.BlockSpec((16, 144), lambda i: (0, 0)),
            pl.BlockSpec((16, 1), lambda i: (0, 0)),
            pl.BlockSpec((16, 144), lambda i: (0, 0)),
            pl.BlockSpec((16, 1), lambda i: (0, 0)),
            pl.BlockSpec((1, lh), lambda i: (0, 0)),
        ],
        out_specs=pl.BlockSpec((None, 16, lmid_pad), lambda i: (i, 0, 0)),
        compiler_params=cparams,
    )(mslab, w2s, b2.reshape(16, 1), w3s, b3.reshape(16, 1), vm)

    # --- cheap half-res glue: extract valid pixels, pre-contract with w4 ---
    feat = mid[:, :, :lh].reshape(n, 16, h2, wp)[:, :, :, :w2]      # (n,16,h2,w2)
    mhat = jnp.einsum("tc,nchw->nthw", w4mat, feat).reshape(n, 9 * h2, w2)

    # --- kernel 3: upsample + m4 conv + sigmoid + adapt conv + residual ---
    out = pl.pallas_call(
        functools.partial(_adapt_mask_kernel, c=c, wp=wp, h=h, core=core,
                          core_pad=core_pad),
        out_shape=jax.ShapeDtypeStruct((n, c, core_pad), jnp.float32),
        grid=(n,),
        in_specs=[
            pl.BlockSpec((None, c, le_pad), lambda i: (i, 0, 0)),
            pl.BlockSpec((c, 9 * c), lambda i: (0, 0)),
            pl.BlockSpec((None, 9 * h2, w2), lambda i: (i, 0, 0)),
            pl.BlockSpec((9, h, h2), lambda i: (0, 0, 0)),
            pl.BlockSpec((9, w2, wp), lambda i: (0, 0, 0)),
            pl.BlockSpec((1, 1), lambda i: (0, 0)),
        ],
        out_specs=pl.BlockSpec((None, c, core_pad), lambda i: (i, 0, 0)),
        compiler_params=cparams,
    )(xe, was, mhat, sh, sw, b4.reshape(1, 1))

    return out[:, :, :core].reshape(n, c, h, wp)[:, :, :, 1:1 + w]


# ---------------------------------------------------------------------------
# Deterministic parameter init (matches module shapes; synthetic values)
# ---------------------------------------------------------------------------
def init_params(key, channels, num_experts=4):
    ks = jax.random.split(key, 13)

    def u(k, shape, fan_in):
        b = 1.0 / math.sqrt(fan_in)  # kaiming_uniform(a=sqrt(5)) bound
        return jax.random.uniform(k, shape, jnp.float32, -b, b)

    def bn(co):  # (gamma, beta, running_mean, running_var)
        return (jnp.ones((co,), jnp.float32), jnp.zeros((co,), jnp.float32),
                jnp.zeros((co,), jnp.float32), jnp.ones((co,), jnp.float32))

    p = {}
    p["m1_w"] = u(ks[0], (16, channels, 3, 3), channels * 9)
    p["m1_b"] = u(ks[1], (16,), channels * 9)
    p["bn1"] = bn(16)
    p["m2_w"] = u(ks[2], (16, 16, 3, 3), 16 * 9)
    p["m2_b"] = u(ks[3], (16,), 16 * 9)
    p["bn2"] = bn(16)
    p["m3_w"] = u(ks[4], (16, 16, 3, 3), 16 * 9)
    p["m3_b"] = u(ks[5], (16,), 16 * 9)
    p["bn3"] = bn(16)
    p["m4_w"] = u(ks[6], (1, 16, 3, 3), 16 * 9)
    p["m4_b"] = u(ks[7], (1,), 16 * 9)
    p["bn4"] = bn(1)
    p["r_w1"] = u(ks[8], (2, 64), 2)                  # stored (in, out)
    p["r_b1"] = u(ks[9], (64,), 2)
    p["r_w2"] = u(ks[10], (64, num_experts), 64)
    p["r_b2"] = u(ks[11], (num_experts,), 64)
    p["weight_pool"] = u(ks[12], (num_experts, channels, channels, 3, 3),
                         channels * 9)
    return p


# ---------------------------------------------------------------------------
# Pure-JAX reference (for in-script validation of the Pallas path)
# ---------------------------------------------------------------------------
def _ref_conv(x, w_oihw, b):
    w = jnp.transpose(w_oihw, (2, 3, 1, 0))
    y = jax.lax.conv_general_dilated(
        x, w, window_strides=(1, 1), padding=((1, 1), (1, 1)),
        dimension_numbers=("NHWC", "HWIO", "NHWC"))
    return y + b if b is not None else y


def _ref_bn(y, bn):
    gamma, beta, mean, var = bn
    return (y - mean) * jax.lax.rsqrt(var + EPS) * gamma + beta


def reference_forward(params, x_nchw, scale, scale2):
    x = jnp.transpose(x_nchw, (0, 2, 3, 1)).astype(jnp.float32)
    n, h, w, c = x.shape
    m = jax.nn.relu(_ref_bn(_ref_conv(x, params["m1_w"], params["m1_b"]), params["bn1"]))
    m = m.reshape(n, h // 2, 2, w // 2, 2, m.shape[-1]).mean(axis=(2, 4))
    m = jax.nn.relu(_ref_bn(_ref_conv(m, params["m2_w"], params["m2_b"]), params["bn2"]))
    m = jax.nn.relu(_ref_bn(_ref_conv(m, params["m3_w"], params["m3_b"]), params["bn3"]))
    uh = jnp.asarray(_upsample2x_matrix(h // 2))
    uw = jnp.asarray(_upsample2x_matrix(w // 2))
    m = jnp.einsum("ph,nhwc->npwc", uh, m)
    m = jnp.einsum("qw,npwc->npqc", uw, m)
    m = jax.nn.sigmoid(_ref_bn(_ref_conv(m, params["m4_w"], params["m4_b"]), params["bn4"]))

    s = jnp.array([[1.0 / scale, 1.0 / scale2]], jnp.float32)
    hid = jax.nn.relu(s @ params["r_w1"] + params["r_b1"])
    rw = jax.nn.softmax(hid @ params["r_w2"] + params["r_b2"], axis=-1)[0]
    fused = jnp.einsum("e,eoikl->oikl", rw, params["weight_pool"])
    adapted = _ref_conv(x, fused, None)
    out = x + adapted * m
    return jnp.transpose(out, (0, 3, 1, 2))


if __name__ == "__main__":
    channels, n, h, w = 4, 2, 16, 16
    key = jax.random.PRNGKey(0)
    kp, kx = jax.random.split(key)
    params = init_params(kp, channels)
    x = jax.random.normal(kx, (n, channels, h, w), jnp.float32)  # NCHW, like PyTorch
    scale, scale2 = 2.0, 1.5

    fwd = jax.jit(scale_aware_adapt_forward, static_argnums=(2, 3))
    out = jax.block_until_ready(fwd(params, x, scale, scale2))
    ref = jax.block_until_ready(reference_forward(params, x, scale, scale2))
    assert out.shape == x.shape and out.dtype == jnp.float32
    np.testing.assert_allclose(np.asarray(out), np.asarray(ref), rtol=1e-4, atol=1e-4)
    print("KERNEL_OK")
</pallas_src>

<mosaic_0001>
module attributes {stable_mosaic.version = 11 : i64} {
  func.func @_m1_pool_kernel(%arg0: i32, %arg1: memref<1x8x256xf32, #tpu.memory_space<vmem>>, %arg2: memref<16x36xf32, #tpu.memory_space<vmem>>, %arg3: memref<16x1xf32, #tpu.memory_space<vmem>>, %arg4: memref<1x144xf32, #tpu.memory_space<vmem>>, %arg5: memref<1x16x256xf32, #tpu.memory_space<vmem>>) attributes {dimension_semantics = [#tpu.dimension_semantics<parallel>], iteration_bounds = array<i64: 2>, scalar_prefetch = 0 : i64, scratch_operands = 0 : i64, tpu.core_type = #tpu.core_type<tc>, window_params = [{transform_indices = @transform_0, window_bounds = array<i64: 1, 8, 256>}, {pipeline_mode = #tpu.pipeline_mode<synchronous>, transform_indices = @transform_1, window_bounds = array<i64: 16, 36>}, {pipeline_mode = #tpu.pipeline_mode<synchronous>, transform_indices = @transform_2, window_bounds = array<i64: 16, 1>}, {pipeline_mode = #tpu.pipeline_mode<synchronous>, transform_indices = @transform_3, window_bounds = array<i64: 1, 144>}, {transform_indices = @transform_4, window_bounds = array<i64: 1, 16, 256>}]} {
    %cst = arith.constant 0.000000e+00 : f32
    %0 = vector.broadcast %cst : f32 to vector<16x144xf32>
    %c0 = arith.constant 0 : index
    %c0_0 = arith.constant 0 : index
    %c9 = arith.constant 9 : index
    %1 = vector.load %arg1[%c0, %c0_0, %c9] : memref<1x8x256xf32, #tpu.memory_space<vmem>>, vector<1x4x144xf32>
    %2 = vector.shape_cast %1 : vector<1x4x144xf32> to vector<4x144xf32>
    %c0_1 = arith.constant 0 : index
    %c4 = arith.constant 4 : index
    %c9_2 = arith.constant 9 : index
    %3 = vector.load %arg1[%c0_1, %c4, %c9_2] : memref<1x8x256xf32, #tpu.memory_space<vmem>>, vector<1x4x144xf32>
    %4 = vector.shape_cast %3 : vector<1x4x144xf32> to vector<4x144xf32>
    %c0_3 = arith.constant 0 : index
    %c0_4 = arith.constant 0 : index
    %c10 = arith.constant 10 : index
    %5 = vector.load %arg1[%c0_3, %c0_4, %c10] : memref<1x8x256xf32, #tpu.memory_space<vmem>>, vector<1x4x144xf32>
    %6 = vector.shape_cast %5 : vector<1x4x144xf32> to vector<4x144xf32>
    %c0_5 = arith.constant 0 : index
    %c0_6 = arith.constant 0 : index
    %c18 = arith.constant 18 : index
    %7 = vector.load %arg1[%c0_5, %c0_6, %c18] : memref<1x8x256xf32, #tpu.memory_space<vmem>>, vector<1x4x144xf32>
    %8 = vector.shape_cast %7 : vector<1x4x144xf32> to vector<4x144xf32>
    %c0_7 = arith.constant 0 : index
    %c4_8 = arith.constant 4 : index
    %c18_9 = arith.constant 18 : index
    %9 = vector.load %arg1[%c0_7, %c4_8, %c18_9] : memref<1x8x256xf32, #tpu.memory_space<vmem>>, vector<1x4x144xf32>
    %10 = vector.shape_cast %9 : vector<1x4x144xf32> to vector<4x144xf32>
    %c0_10 = arith.constant 0 : index
    %c0_11 = arith.constant 0 : index
    %c19 = arith.constant 19 : index
    %11 = vector.load %arg1[%c0_10, %c0_11, %c19] : memref<1x8x256xf32, #tpu.memory_space<vmem>>, vector<1x4x144xf32>
    %12 = vector.shape_cast %11 : vector<1x4x144xf32> to vector<4x144xf32>
    %c0_12 = arith.constant 0 : index
    %c0_13 = arith.constant 0 : index
    %c27 = arith.constant 27 : index
    %13 = vector.load %arg1[%c0_12, %c0_13, %c27] : memref<1x8x256xf32, #tpu.memory_space<vmem>>, vector<1x4x144xf32>
    %14 = vector.shape_cast %13 : vector<1x4x144xf32> to vector<4x144xf32>
    %c0_14 = arith.constant 0 : index
    %c4_15 = arith.constant 4 : index
    %c27_16 = arith.constant 27 : index
    %15 = vector.load %arg1[%c0_14, %c4_15, %c27_16] : memref<1x8x256xf32, #tpu.memory_space<vmem>>, vector<1x4x144xf32>
    %16 = vector.shape_cast %15 : vector<1x4x144xf32> to vector<4x144xf32>
    %c0_17 = arith.constant 0 : index
    %c0_18 = arith.constant 0 : index
    %c28 = arith.constant 28 : index
    %17 = vector.load %arg1[%c0_17, %c0_18, %c28] : memref<1x8x256xf32, #tpu.memory_space<vmem>>, vector<1x4x144xf32>
    %18 = vector.shape_cast %17 : vector<1x4x144xf32> to vector<4x144xf32>
    %19 = tpu.concatenate %2, %4, %6, %8, %10, %12, %14, %16, %18 in 0 : vector<4x144xf32>, vector<4x144xf32>, vector<4x144xf32>, vector<4x144xf32>, vector<4x144xf32>, vector<4x144xf32>, vector<4x144xf32>, vector<4x144xf32>, vector<4x144xf32> -> vector<36x144xf32>
    %c0_19 = arith.constant 0 : index
    %c0_20 = arith.constant 0 : index
    %20 = vector.load %arg2[%c0_19, %c0_20] : memref<16x36xf32, #tpu.memory_space<vmem>>, vector<16x36xf32>
    %cst_21 = arith.constant dense<0.000000e+00> : vector<16x144xf32>
    %21 = tpu.matmul %20, %19, %cst_21 {dimension_numbers = #tpu.dot_dimension_numbers<[1], [0], [0], [1], [0, 0, 1, 1], [], []>} : vector<16x36xf32>, vector<36x144xf32>, vector<16x144xf32> -> vector<16x144xf32>
    %c0_22 = arith.constant 0 : index
    %c0_23 = arith.constant 0 : index
    %22 = vector.load %arg3[%c0_22, %c0_23] : memref<16x1xf32, #tpu.memory_space<vmem>>, vector<16x1xf32>
    %23 = vector.broadcast %22 : vector<16x1xf32> to vector<16x144xf32>
    %24 = arith.addf %21, %23 : vector<16x144xf32>
    %cst_24 = arith.constant 0.000000e+00 : f32
    %25 = vector.broadcast %cst_24 : f32 to vector<16x144xf32>
    %26 = arith.maximumf %24, %25 : vector<16x144xf32>
    %27 = arith.addf %0, %26 : vector<16x144xf32>
    %c0_25 = arith.constant 0 : index
    %c4_26 = arith.constant 4 : index
    %c9_27 = arith.constant 9 : index
    %28 = vector.load %arg1[%c0_25, %c4_26, %c9_27] : memref<1x8x256xf32, #tpu.memory_space<vmem>>, vector<1x4x144xf32>
    %29 = vector.shape_cast %28 : vector<1x4x144xf32> to vector<4x144xf32>
    %c0_28 = arith.constant 0 : index
    %c0_29 = arith.constant 0 : index
    %c10_30 = arith.constant 10 : index
    %30 = vector.load %arg1[%c0_28, %c0_29, %c10_30] : memref<1x8x256xf32, #tpu.memory_space<vmem>>, vector<1x4x144xf32>
    %31 = vector.shape_cast %30 : vector<1x4x144xf32> to vector<4x144xf32>
    %c0_31 = arith.constant 0 : index
    %c4_32 = arith.constant 4 : index
    %c10_33 = arith.constant 10 : index
    %32 = vector.load %arg1[%c0_31, %c4_32, %c10_33] : memref<1x8x256xf32, #tpu.memory_space<vmem>>, vector<1x4x144xf32>
    %33 = vector.shape_cast %32 : vector<1x4x144xf32> to vector<4x144xf32>
    %c0_34 = arith.constant 0 : index
    %c4_35 = arith.constant 4 : index
    %c18_36 = arith.constant 18 : index
    %34 = vector.load %arg1[%c0_34, %c4_35, %c18_36] : memref<1x8x256xf32, #tpu.memory_space<vmem>>, vector<1x4x144xf32>
    %35 = vector.shape_cast %34 : vector<1x4x144xf32> to vector<4x144xf32>
    %c0_37 = arith.constant 0 : index
    %c0_38 = arith.constant 0 : index
    %c19_39 = arith.constant 19 : index
    %36 = vector.load %arg1[%c0_37, %c0_38, %c19_39] : memref<1x8x256xf32, #tpu.memory_space<vmem>>, vector<1x4x144xf32>
    %37 = vector.shape_cast %36 : vector<1x4x144xf32> to vector<4x144xf32>
    %c0_40 = arith.constant 0 : index
    %c4_41 = arith.constant 4 : index
    %c19_42 = arith.constant 19 : index
    %38 = vector.load %arg1[%c0_40, %c4_41, %c19_42] : memref<1x8x256xf32, #tpu.memory_space<vmem>>, vector<1x4x144xf32>
    %39 = vector.shape_cast %38 : vector<1x4x144xf32> to vector<4x144xf32>
    %c0_43 = arith.constant 0 : index
    %c4_44 = arith.constant 4 : index
    %c27_45 = arith.constant 27 : index
    %40 = vector.load %arg1[%c0_43, %c4_44, %c27_45] : memref<1x8x256xf32, #tpu.memory_space<vmem>>, vector<1x4x144xf32>
    %41 = vector.shape_cast %40 : vector<1x4x144xf32> to vector<4x144xf32>
    %c0_46 = arith.constant 0 : index
    %c0_47 = arith.constant 0 : index
    %c28_48 = arith.constant 28 : index
    %42 = vector.load %arg1[%c0_46, %c0_47, %c28_48] : memref<1x8x256xf32, #tpu.memory_space<vmem>>, vector<1x4x144xf32>
    %43 = vector.shape_cast %42 : vector<1x4x144xf32> to vector<4x144xf32>
    %c0_49 = arith.constant 0 : index
    %c4_50 = arith.constant 4 : index
    %c28_51 = arith.constant 28 : index
    %44 = vector.load %arg1[%c0_49, %c4_50, %c28_51] : memref<1x8x256xf32, #tpu.memory_space<vmem>>, vector<1x4x144xf32>
    %45 = vector.shape_cast %44 : vector<1x4x144xf32> to vector<4x144xf32>
    %46 = tpu.concatenate %29, %31, %33, %35, %37, %39, %41, %43, %45 in 0 : vector<4x144xf32>, vector<4x144xf32>, vector<4x144xf32>, vector<4x144xf32>, vector<4x144xf32>, vector<4x144xf32>, vector<4x144xf32>, vector<4x144xf32>, vector<4x144xf32> -> vector<36x144xf32>
    %c0_52 = arith.constant 0 : index
    %c0_53 = arith.constant 0 : index
    %47 = vector.load %arg2[%c0_52, %c0_53] : memref<16x36xf32, #tpu.memory_space<vmem>>, vector<16x36xf32>
    %cst_54 = arith.constant dense<0.000000e+00> : vector<16x144xf32>
    %48 = tpu.matmul %47, %46, %cst_54 {dimension_numbers = #tpu.dot_dimension_numbers<[1], [0], [0], [1], [0, 0, 1, 1], [], []>} : vector<16x36xf32>, vector<36x144xf32>, vector<16x144xf32> -> vector<16x144xf32>
    %c0_55 = arith.constant 0 : index
    %c0_56 = arith.constant 0 : index
    %49 = vector.load %arg3[%c0_55, %c0_56] : memref<16x1xf32, #tpu.memory_space<vmem>>, vector<16x1xf32>
    %50 = vector.broadcast %49 : vector<16x1xf32> to vector<16x144xf32>
    %51 = arith.addf %48, %50 : vector<16x144xf32>
    %cst_57 = arith.constant 0.000000e+00 : f32
    %52 = vector.broadcast %cst_57 : f32 to vector<16x144xf32>
    %53 = arith.maximumf %51, %52 : vector<16x144xf32>
    %54 = arith.addf %27, %53 : vector<16x144xf32>
    %c0_58 = arith.constant 0 : index
    %c0_59 = arith.constant 0 : index
    %c18_60 = arith.constant 18 : index
    %55 = vector.load %arg1[%c0_58, %c0_59, %c18_60] : memref<1x8x256xf32, #tpu.memory_space<vmem>>, vector<1x4x144xf32>
    %56 = vector.shape_cast %55 : vector<1x4x144xf32> to vector<4x144xf32>
    %c0_61 = arith.constant 0 : index
    %c4_62 = arith.constant 4 : index
    %c18_63 = arith.constant 18 : index
    %57 = vector.load %arg1[%c0_61, %c4_62, %c18_63] : memref<1x8x256xf32, #tpu.memory_space<vmem>>, vector<1x4x144xf32>
    %58 = vector.shape_cast %57 : vector<1x4x144xf32> to vector<4x144xf32>
    %c0_64 = arith.constant 0 : index
    %c0_65 = arith.constant 0 : index
    %c19_66 = arith.constant 19 : index
    %59 = vector.load %arg1[%c0_64, %c0_65, %c19_66] : memref<1x8x256xf32, #tpu.memory_space<vmem>>, vector<1x4x144xf32>
    %60 = vector.shape_cast %59 : vector<1x4x144xf32> to vector<4x144xf32>
    %c0_67 = arith.constant 0 : index
    %c0_68 = arith.constant 0 : index
    %c27_69 = arith.constant 27 : index
    %61 = vector.load %arg1[%c0_67, %c0_68, %c27_69] : memref<1x8x256xf32, #tpu.memory_space<vmem>>, vector<1x4x144xf32>
    %62 = vector.shape_cast %61 : vector<1x4x144xf32> to vector<4x144xf32>
    %c0_70 = arith.constant 0 : index
    %c4_71 = arith.constant 4 : index
    %c27_72 = arith.constant 27 : index
    %63 = vector.load %arg1[%c0_70, %c4_71, %c27_72] : memref<1x8x256xf32, #tpu.memory_space<vmem>>, vector<1x4x144xf32>
    %64 = vector.shape_cast %63 : vector<1x4x144xf32> to vector<4x144xf32>
    %c0_73 = arith.constant 0 : index
    %c0_74 = arith.constant 0 : index
    %c28_75 = arith.constant 28 : index
    %65 = vector.load %arg1[%c0_73, %c0_74, %c28_75] : memref<1x8x256xf32, #tpu.memory_space<vmem>>, vector<1x4x144xf32>
    %66 = vector.shape_cast %65 : vector<1x4x144xf32> to vector<4x144xf32>
    %c0_76 = arith.constant 0 : index
    %c0_77 = arith.constant 0 : index
    %c36 = arith.constant 36 : index
    %67 = vector.load %arg1[%c0_76, %c0_77, %c36] : memref<1x8x256xf32, #tpu.memory_space<vmem>>, vector<1x4x144xf32>
    %68 = vector.shape_cast %67 : vector<1x4x144xf32> to vector<4x144xf32>
    %c0_78 = arith.constant 0 : index
    %c4_79 = arith.constant 4 : index
    %c36_80 = arith.constant 36 : index
    %69 = vector.load %arg1[%c0_78, %c4_79, %c36_80] : memref<1x8x256xf32, #tpu.memory_space<vmem>>, vector<1x4x144xf32>
    %70 = vector.shape_cast %69 : vector<1x4x144xf32> to vector<4x144xf32>
    %c0_81 = arith.constant 0 : index
    %c0_82 = arith.constant 0 : index
    %c37 = arith.constant 37 : index
    %71 = vector.load %arg1[%c0_81, %c0_82, %c37] : memref<1x8x256xf32, #tpu.memory_space<vmem>>, vector<1x4x144xf32>
    %72 = vector.shape_cast %71 : vector<1x4x144xf32> to vector<4x144xf32>
    %73 = tpu.concatenate %56, %58, %60, %62, %64, %66, %68, %70, %72 in 0 : vector<4x144xf32>, vector<4x144xf32>, vector<4x144xf32>, vector<4x144xf32>, vector<4x144xf32>, vector<4x144xf32>, vector<4x144xf32>, vector<4x144xf32>, vector<4x144xf32> -> vector<36x144xf32>
    %c0_83 = arith.constant 0 : index
    %c0_84 = arith.constant 0 : index
    %74 = vector.load %arg2[%c0_83, %c0_84] : memref<16x36xf32, #tpu.memory_space<vmem>>, vector<16x36xf32>
    %cst_85 = arith.constant dense<0.000000e+00> : vector<16x144xf32>
    %75 = tpu.matmul %74, %73, %cst_85 {dimension_numbers = #tpu.dot_dimension_numbers<[1], [0], [0], [1], [0, 0, 1, 1], [], []>} : vector<16x36xf32>, vector<36x144xf32>, vector<16x144xf32> -> vector<16x144xf32>
    %c0_86 = arith.constant 0 : index
    %c0_87 = arith.constant 0 : index
    %76 = vector.load %arg3[%c0_86, %c0_87] : memref<16x1xf32, #tpu.memory_space<vmem>>, vector<16x1xf32>
    %77 = vector.broadcast %76 : vector<16x1xf32> to vector<16x144xf32>
    %78 = arith.addf %75, %77 : vector<16x144xf32>
    %cst_88 = arith.constant 0.000000e+00 : f32
    %79 = vector.broadcast %cst_88 : f32 to vector<16x144xf32>
    %80 = arith.maximumf %78, %79 : vector<16x144xf32>
    %81 = arith.addf %54, %80 : vector<16x144xf32>
    %c0_89 = arith.constant 0 : index
    %c4_90 = arith.constant 4 : index
    %c18_91 = arith.constant 18 : index
    %82 = vector.load %arg1[%c0_89, %c4_90, %c18_91] : memref<1x8x256xf32, #tpu.memory_space<vmem>>, vector<1x4x144xf32>
    %83 = vector.shape_cast %82 : vector<1x4x144xf32> to vector<4x144xf32>
    %c0_92 = arith.constant 0 : index
    %c0_93 = arith.constant 0 : index
    %c19_94 = arith.constant 19 : index
    %84 = vector.load %arg1[%c0_92, %c0_93, %c19_94] : memref<1x8x256xf32, #tpu.memory_space<vmem>>, vector<1x4x144xf32>
    %85 = vector.shape_cast %84 : vector<1x4x144xf32> to vector<4x144xf32>
    %c0_95 = arith.constant 0 : index
    %c4_96 = arith.constant 4 : index
    %c19_97 = arith.constant 19 : index
    %86 = vector.load %arg1[%c0_95, %c4_96, %c19_97] : memref<1x8x256xf32, #tpu.memory_space<vmem>>, vector<1x4x144xf32>
    %87 = vector.shape_cast %86 : vector<1x4x144xf32> to vector<4x144xf32>
    %c0_98 = arith.constant 0 : index
    %c4_99 = arith.constant 4 : index
    %c27_100 = arith.constant 27 : index
    %88 = vector.load %arg1[%c0_98, %c4_99, %c27_100] : memref<1x8x256xf32, #tpu.memory_space<vmem>>, vector<1x4x144xf32>
    %89 = vector.shape_cast %88 : vector<1x4x144xf32> to vector<4x144xf32>
    %c0_101 = arith.constant 0 : index
    %c0_102 = arith.constant 0 : index
    %c28_103 = arith.constant 28 : index
    %90 = vector.load %arg1[%c0_101, %c0_102, %c28_103] : memref<1x8x256xf32, #tpu.memory_space<vmem>>, vector<1x4x144xf32>
    %91 = vector.shape_cast %90 : vector<1x4x144xf32> to vector<4x144xf32>
    %c0_104 = arith.constant 0 : index
    %c4_105 = arith.constant 4 : index
    %c28_106 = arith.constant 28 : index
    %92 = vector.load %arg1[%c0_104, %c4_105, %c28_106] : memref<1x8x256xf32, #tpu.memory_space<vmem>>, vector<1x4x144xf32>
    %93 = vector.shape_cast %92 : vector<1x4x144xf32> to vector<4x144xf32>
    %c0_107 = arith.constant 0 : index
    %c4_108 = arith.constant 4 : index
    %c36_109 = arith.constant 36 : index
    %94 = vector.load %arg1[%c0_107, %c4_108, %c36_109] : memref<1x8x256xf32, #tpu.memory_space<vmem>>, vector<1x4x144xf32>
    %95 = vector.shape_cast %94 : vector<1x4x144xf32> to vector<4x144xf32>
    %c0_110 = arith.constant 0 : index
    %c0_111 = arith.constant 0 : index
    %c37_112 = arith.constant 37 : index
    %96 = vector.load %arg1[%c0_110, %c0_111, %c37_112] : memref<1x8x256xf32, #tpu.memory_space<vmem>>, vector<1x4x144xf32>
    %97 = vector.shape_cast %96 : vector<1x4x144xf32> to vector<4x144xf32>
    %c0_113 = arith.constant 0 : index
    %c4_114 = arith.constant 4 : index
    %c37_115 = arith.constant 37 : index
    %98 = vector.load %arg1[%c0_113, %c4_114, %c37_115] : memref<1x8x256xf32, #tpu.memory_space<vmem>>, vector<1x4x144xf32>
    %99 = vector.shape_cast %98 : vector<1x4x144xf32> to vector<4x144xf32>
    %100 = tpu.concatenate %83, %85, %87, %89, %91, %93, %95, %97, %99 in 0 : vector<4x144xf32>, vector<4x144xf32>, vector<4x144xf32>, vector<4x144xf32>, vector<4x144xf32>, vector<4x144xf32>, vector<4x144xf32>, vector<4x144xf32>, vector<4x144xf32> -> vector<36x144xf32>
    %c0_116 = arith.constant 0 : index
    %c0_117 = arith.constant 0 : index
    %101 = vector.load %arg2[%c0_116, %c0_117] : memref<16x36xf32, #tpu.memory_space<vmem>>, vector<16x36xf32>
    %cst_118 = arith.constant dense<0.000000e+00> : vector<16x144xf32>
    %102 = tpu.matmul %101, %100, %cst_118 {dimension_numbers = #tpu.dot_dimension_numbers<[1], [0], [0], [1], [0, 0, 1, 1], [], []>} : vector<16x36xf32>, vector<36x144xf32>, vector<16x144xf32> -> vector<16x144xf32>
    %c0_119 = arith.constant 0 : index
    %c0_120 = arith.constant 0 : index
    %103 = vector.load %arg3[%c0_119, %c0_120] : memref<16x1xf32, #tpu.memory_space<vmem>>, vector<16x1xf32>
    %104 = vector.broadcast %103 : vector<16x1xf32> to vector<16x144xf32>
    %105 = arith.addf %102, %104 : vector<16x144xf32>
    %cst_121 = arith.constant 0.000000e+00 : f32
    %106 = vector.broadcast %cst_121 : f32 to vector<16x144xf32>
    %107 = arith.maximumf %105, %106 : vector<16x144xf32>
    %108 = arith.addf %81, %107 : vector<16x144xf32>
    %cst_122 = arith.constant 2.500000e-01 : f32
    %109 = vector.broadcast %cst_122 : f32 to vector<16x144xf32>
    %110 = arith.mulf %109, %108 : vector<16x144xf32>
    %c0_123 = arith.constant 0 : index
    %c0_124 = arith.constant 0 : index
    %111 = vector.load %arg4[%c0_123, %c0_124] : memref<1x144xf32, #tpu.memory_space<vmem>>, vector<1x144xf32>
    %112 = vector.broadcast %111 : vector<1x144xf32> to vector<16x144xf32>
    %113 = arith.mulf %110, %112 : vector<16x144xf32>
    %cst_125 = arith.constant 0.000000e+00 : f32
    %114 = vector.broadcast %cst_125 : f32 to vector<16x36xf32>
    %cst_126 = arith.constant 0.000000e+00 : f32
    %115 = vector.broadcast %cst_126 : f32 to vector<16x76xf32>
    %116 = tpu.concatenate %114, %113, %115 in 1 : vector<16x36xf32>, vector<16x144xf32>, vector<16x76xf32> -> vector<16x256xf32>
    %c0_127 = arith.constant 0 : index
    %c0_128 = arith.constant 0 : index
    %c0_129 = arith.constant 0 : index
    %117 = vector.load %arg5[%c0_127, %c0_128, %c0_129] : memref<1x16x256xf32, #tpu.memory_space<vmem>>, vector<1x16x256xf32>
    %118 = vector.shape_cast %117 : vector<1x16x256xf32> to vector<16x256xf32>
    %119 = vector.shape_cast %116 : vector<16x256xf32> to vector<1x16x256xf32>
    tpu.vector_store %arg5[%c0_127, %c0_128, %c0_129], %119 {strides = array<i32>} : memref<1x16x256xf32, #tpu.memory_space<vmem>>, vector<1x16x256xf32>,
    return
  }
  func.func @transform_0(%arg0: i32) -> (i32, i32, i32) {
    %c0_i32 = arith.constant 0 : i32
    %c0_i32_0 = arith.constant 0 : i32
    %c0_i32_1 = arith.constant 0 : i32
    return %arg0, %c0_i32, %c0_i32_0 : i32, i32, i32
  }
  func.func @transform_1(%arg0: i32) -> (i32, i32) {
    %c0_i32 = arith.constant 0 : i32
    %c0_i32_0 = arith.constant 0 : i32
    %c0_i32_1 = arith.constant 0 : i32
    return %c0_i32, %c0_i32_0 : i32, i32
  }
  func.func @transform_2(%arg0: i32) -> (i32, i32) {
    %c0_i32 = arith.constant 0 : i32
    %c0_i32_0 = arith.constant 0 : i32
    %c0_i32_1 = arith.constant 0 : i32
    return %c0_i32, %c0_i32_0 : i32, i32
  }
  func.func @transform_3(%arg0: i32) -> (i32, i32) {
    %c0_i32 = arith.constant 0 : i32
    %c0_i32_0 = arith.constant 0 : i32
    %c0_i32_1 = arith.constant 0 : i32
    return %c0_i32, %c0_i32_0 : i32, i32
  }
  func.func @transform_4(%arg0: i32) -> (i32, i32, i32) {
    %c0_i32 = arith.constant 0 : i32
    %c0_i32_0 = arith.constant 0 : i32
    %c0_i32_1 = arith.constant 0 : i32
    return %arg0, %c0_i32, %c0_i32_0 : i32, i32, i32
  }
}

module attributes {stable_mosaic.version = 11 : i64} {
  func.func @_mid_kernel(%arg0: i32, %arg1: memref<1x16x256xf32, #tpu.memory_space<vmem>>, %arg2: memref<16x144xf32, #tpu.memory_space<vmem>>, %arg3: memref<16x1xf32, #tpu.memory_space<vmem>>, %arg4: memref<16x144xf32, #tpu.memory_space<vmem>>, %arg5: memref<16x1xf32, #tpu.memory_space<vmem>>, %arg6: memref<1x144xf32, #tpu.memory_space<vmem>>, %arg7: memref<1x16x256xf32, #tpu.memory_space<vmem>>) attributes {dimension_semantics = [#tpu.dimension_semantics<parallel>], iteration_bounds = array<i64: 2>, scalar_prefetch = 0 : i64, scratch_operands = 0 : i64, tpu.core_type = #tpu.core_type<tc>, window_params = [{transform_indices = @transform_0, window_bounds = array<i64: 1, 16, 256>}, {pipeline_mode = #tpu.pipeline_mode<synchronous>, transform_indices = @transform_1, window_bounds = array<i64: 16, 144>}, {pipeline_mode = #tpu.pipeline_mode<synchronous>, transform_indices = @transform_2, window_bounds = array<i64: 16, 1>}, {pipeline_mode = #tpu.pipeline_mode<synchronous>, transform_indices = @transform_3, window_bounds = array<i64: 16, 144>}, {pipeline_mode = #tpu.pipeline_mode<synchronous>, transform_indices = @transform_4, window_bounds = array<i64: 16, 1>}, {pipeline_mode = #tpu.pipeline_mode<synchronous>, transform_indices = @transform_5, window_bounds = array<i64: 1, 144>}, {transform_indices = @transform_6, window_bounds = array<i64: 1, 16, 256>}]} {
    %c0 = arith.constant 0 : index
    %c0_0 = arith.constant 0 : index
    %c17 = arith.constant 17 : index
    %0 = vector.load %arg1[%c0, %c0_0, %c17] : memref<1x16x256xf32, #tpu.memory_space<vmem>>, vector<1x16x144xf32>
    %1 = vector.shape_cast %0 : vector<1x16x144xf32> to vector<16x144xf32>
    %c0_1 = arith.constant 0 : index
    %c0_2 = arith.constant 0 : index
    %c18 = arith.constant 18 : index
    %2 = vector.load %arg1[%c0_1, %c0_2, %c18] : memref<1x16x256xf32, #tpu.memory_space<vmem>>, vector<1x16x144xf32>
    %3 = vector.shape_cast %2 : vector<1x16x144xf32> to vector<16x144xf32>
    %c0_3 = arith.constant 0 : index
    %c0_4 = arith.constant 0 : index
    %c19 = arith.constant 19 : index
    %4 = vector.load %arg1[%c0_3, %c0_4, %c19] : memref<1x16x256xf32, #tpu.memory_space<vmem>>, vector<1x16x144xf32>
    %5 = vector.shape_cast %4 : vector<1x16x144xf32> to vector<16x144xf32>
    %c0_5 = arith.constant 0 : index
    %c0_6 = arith.constant 0 : index
    %c35 = arith.constant 35 : index
    %6 = vector.load %arg1[%c0_5, %c0_6, %c35] : memref<1x16x256xf32, #tpu.memory_space<vmem>>, vector<1x16x144xf32>
    %7 = vector.shape_cast %6 : vector<1x16x144xf32> to vector<16x144xf32>
    %c0_7 = arith.constant 0 : index
    %c0_8 = arith.constant 0 : index
    %c36 = arith.constant 36 : index
    %8 = vector.load %arg1[%c0_7, %c0_8, %c36] : memref<1x16x256xf32, #tpu.memory_space<vmem>>, vector<1x16x144xf32>
    %9 = vector.shape_cast %8 : vector<1x16x144xf32> to vector<16x144xf32>
    %c0_9 = arith.constant 0 : index
    %c0_10 = arith.constant 0 : index
    %c37 = arith.constant 37 : index
    %10 = vector.load %arg1[%c0_9, %c0_10, %c37] : memref<1x16x256xf32, #tpu.memory_space<vmem>>, vector<1x16x144xf32>
    %11 = vector.shape_cast %10 : vector<1x16x144xf32> to vector<16x144xf32>
    %c0_11 = arith.constant 0 : index
    %c0_12 = arith.constant 0 : index
    %c53 = arith.constant 53 : index
    %12 = vector.load %arg1[%c0_11, %c0_12, %c53] : memref<1x16x256xf32, #tpu.memory_space<vmem>>, vector<1x16x144xf32>
    %13 = vector.shape_cast %12 : vector<1x16x144xf32> to vector<16x144xf32>
    %c0_13 = arith.constant 0 : index
    %c0_14 = arith.constant 0 : index
    %c54 = arith.constant 54 : index
    %14 = vector.load %arg1[%c0_13, %c0_14, %c54] : memref<1x16x256xf32, #tpu.memory_space<vmem>>, vector<1x16x144xf32>
    %15 = vector.shape_cast %14 : vector<1x16x144xf32> to vector<16x144xf32>
    %c0_15 = arith.constant 0 : index
    %c0_16 = arith.constant 0 : index
    %c55 = arith.constant 55 : index
    %16 = vector.load %arg1[%c0_15, %c0_16, %c55] : memref<1x16x256xf32, #tpu.memory_space<vmem>>, vector<1x16x144xf32>
    %17 = vector.shape_cast %16 : vector<1x16x144xf32> to vector<16x144xf32>
    %18 = tpu.concatenate %1, %3, %5, %7, %9, %11, %13, %15, %17 in 0 : vector<16x144xf32>, vector<16x144xf32>, vector<16x144xf32>, vector<16x144xf32>, vector<16x144xf32>, vector<16x144xf32>, vector<16x144xf32>, vector<16x144xf32>, vector<16x144xf32> -> vector<144x144xf32>
    %c0_17 = arith.constant 0 : index
    %c0_18 = arith.constant 0 : index
    %19 = vector.load %arg2[%c0_17, %c0_18] : memref<16x144xf32, #tpu.memory_space<vmem>>, vector<16x144xf32>
    %cst = arith.constant dense<0.000000e+00> : vector<16x144xf32>
    %20 = tpu.matmul %19, %18, %cst {dimension_numbers = #tpu.dot_dimension_numbers<[1], [0], [0], [1], [0, 0, 1, 1], [], []>} : vector<16x144xf32>, vector<144x144xf32>, vector<16x144xf32> -> vector<16x144xf32>
    %c0_19 = arith.constant 0 : index
    %c0_20 = arith.constant 0 : index
    %21 = vector.load %arg3[%c0_19, %c0_20] : memref<16x1xf32, #tpu.memory_space<vmem>>, vector<16x1xf32>
    %22 = vector.broadcast %21 : vector<16x1xf32> to vector<16x144xf32>
    %23 = arith.addf %20, %22 : vector<16x144xf32>
    %cst_21 = arith.constant 0.000000e+00 : f32
    %24 = vector.broadcast %cst_21 : f32 to vector<16x144xf32>
    %25 = arith.maximumf %23, %24 : vector<16x144xf32>
    %c0_22 = arith.constant 0 : index
    %c0_23 = arith.constant 0 : index
    %26 = vector.load %arg6[%c0_22, %c0_23] : memref<1x144xf32, #tpu.memory_space<vmem>>, vector<1x144xf32>
    %27 = vector.broadcast %26 : vector<1x144xf32> to vector<16x144xf32>
    %28 = arith.mulf %25, %27 : vector<16x144xf32>
    %cst_24 = arith.constant 0.000000e+00 : f32
    %29 = vector.broadcast %cst_24 : f32 to vector<16x36xf32>
    %cst_25 = arith.constant 0.000000e+00 : f32
    %30 = vector.broadcast %cst_25 : f32 to vector<16x76xf32>
    %31 = tpu.concatenate %29, %28, %30 in 1 : vector<16x36xf32>, vector<16x144xf32>, vector<16x76xf32> -> vector<16x256xf32>
    %32 = vector.extract_strided_slice %31 {offsets = [0, 17], sizes = [16, 144], strides = [1, 1]} : vector<16x256xf32> to vector<16x144xf32>
    %33 = vector.extract_strided_slice %31 {offsets = [0, 18], sizes = [16, 144], strides = [1, 1]} : vector<16x256xf32> to vector<16x144xf32>
    %34 = vector.extract_strided_slice %31 {offsets = [0, 19], sizes = [16, 144], strides = [1, 1]} : vector<16x256xf32> to vector<16x144xf32>
    %35 = vector.extract_strided_slice %31 {offsets = [0, 35], sizes = [16, 144], strides = [1, 1]} : vector<16x256xf32> to vector<16x144xf32>
    %36 = vector.extract_strided_slice %31 {offsets = [0, 36], sizes = [16, 144], strides = [1, 1]} : vector<16x256xf32> to vector<16x144xf32>
    %37 = vector.extract_strided_slice %31 {offsets = [0, 37], sizes = [16, 144], strides = [1, 1]} : vector<16x256xf32> to vector<16x144xf32>
    %38 = vector.extract_strided_slice %31 {offsets = [0, 53], sizes = [16, 144], strides = [1, 1]} : vector<16x256xf32> to vector<16x144xf32>
    %39 = vector.extract_strided_slice %31 {offsets = [0, 54], sizes = [16, 144], strides = [1, 1]} : vector<16x256xf32> to vector<16x144xf32>
    %40 = vector.extract_strided_slice %31 {offsets = [0, 55], sizes = [16, 144], strides = [1, 1]} : vector<16x256xf32> to vector<16x144xf32>
    %41 = tpu.concatenate %32, %33, %34, %35, %36, %37, %38, %39, %40 in 0 : vector<16x144xf32>, vector<16x144xf32>, vector<16x144xf32>, vector<16x144xf32>, vector<16x144xf32>, vector<16x144xf32>, vector<16x144xf32>, vector<16x144xf32>, vector<16x144xf32> -> vector<144x144xf32>
    %c0_26 = arith.constant 0 : index
    %c0_27 = arith.constant 0 : index
    %42 = vector.load %arg4[%c0_26, %c0_27] : memref<16x144xf32, #tpu.memory_space<vmem>>, vector<16x144xf32>
    %cst_28 = arith.constant dense<0.000000e+00> : vector<16x144xf32>
    %43 = tpu.matmul %42, %41, %cst_28 {dimension_numbers = #tpu.dot_dimension_numbers<[1], [0], [0], [1], [0, 0, 1, 1], [], []>} : vector<16x144xf32>, vector<144x144xf32>, vector<16x144xf32> -> vector<16x144xf32>
    %c0_29 = arith.constant 0 : index
    %c0_30 = arith.constant 0 : index
    %44 = vector.load %arg5[%c0_29, %c0_30] : memref<16x1xf32, #tpu.memory_space<vmem>>, vector<16x1xf32>
    %45 = vector.broadcast %44 : vector<16x1xf32> to vector<16x144xf32>
    %46 = arith.addf %43, %45 : vector<16x144xf32>
    %cst_31 = arith.constant 0.000000e+00 : f32
    %47 = vector.broadcast %cst_31 : f32 to vector<16x144xf32>
    %48 = arith.maximumf %46, %47 : vector<16x144xf32>
    %cst_32 = arith.constant 0.000000e+00 : f32
    %49 = vector.broadcast %cst_32 : f32 to vector<16x112xf32>
    %50 = tpu.concatenate %48, %49 in 1 : vector<16x144xf32>, vector<16x112xf32> -> vector<16x256xf32>
    %c0_33 = arith.constant 0 : index
    %c0_34 = arith.constant 0 : index
    %c0_35 = arith.constant 0 : index
    %51 = vector.load %arg7[%c0_33, %c0_34, %c0_35] : memref<1x16x256xf32, #tpu.memory_space<vmem>>, vector<1x16x256xf32>
    %52 = vector.shape_cast %51 : vector<1x16x256xf32> to vector<16x256xf32>
    %53 = vector.shape_cast %50 : vector<16x256xf32> to vector<1x16x256xf32>
    tpu.vector_store %arg7[%c0_33, %c0_34, %c0_35], %53 {strides = array<i32>} : memref<1x16x256xf32, #tpu.memory_space<vmem>>, vector<1x16x256xf32>,
    return
  }
  func.func @transform_0(%arg0: i32) -> (i32, i32, i32) {
    %c0_i32 = arith.constant 0 : i32
    %c0_i32_0 = arith.constant 0 : i32
    %c0_i32_1 = arith.constant 0 : i32
    return %arg0, %c0_i32, %c0_i32_0 : i32, i32, i32
  }
  func.func @transform_1(%arg0: i32) -> (i32, i32) {
    %c0_i32 = arith.constant 0 : i32
    %c0_i32_0 = arith.constant 0 : i32
    %c0_i32_1 = arith.constant 0 : i32
    return %c0_i32, %c0_i32_0 : i32, i32
  }
  func.func @transform_2(%arg0: i32) -> (i32, i32) {
    %c0_i32 = arith.constant 0 : i32
    %c0_i32_0 = arith.constant 0 : i32
    %c0_i32_1 = arith.constant 0 : i32
    return %c0_i32, %c0_i32_0 : i32, i32
  }
  func.func @transform_3(%arg0: i32) -> (i32, i32) {
    %c0_i32 = arith.constant 0 : i32
    %c0_i32_0 = arith.constant 0 : i32
    %c0_i32_1 = arith.constant 0 : i32
    return %c0_i32, %c0_i32_0 : i32, i32
  }
  func.func @transform_4(%arg0: i32) -> (i32, i32) {
    %c0_i32 = arith.constant 0 : i32
    %c0_i32_0 = arith.constant 0 : i32
    %c0_i32_1 = arith.constant 0 : i32
    return %c0_i32, %c0_i32_0 : i32, i32
  }
  func.func @transform_5(%arg0: i32) -> (i32, i32) {
    %c0_i32 = arith.constant 0 : i32
    %c0_i32_0 = arith.constant 0 : i32
    %c0_i32_1 = arith.constant 0 : i32
    return %c0_i32, %c0_i32_0 : i32, i32
  }
  func.func @transform_6(%arg0: i32) -> (i32, i32, i32) {
    %c0_i32 = arith.constant 0 : i32
    %c0_i32_0 = arith.constant 0 : i32
    %c0_i32_1 = arith.constant 0 : i32
    return %arg0, %c0_i32, %c0_i32_0 : i32, i32, i32
  }
}

module attributes {stable_mosaic.version = 11 : i64} {
  func.func @_adapt_mask_kernel(%arg0: i32, %arg1: memref<1x4x384xf32, #tpu.memory_space<vmem>>, %arg2: memref<4x36xf32, #tpu.memory_space<vmem>>, %arg3: memref<1x72x8xf32, #tpu.memory_space<vmem>>, %arg4: memref<9x16x8xf32, #tpu.memory_space<vmem>>, %arg5: memref<9x8x18xf32, #tpu.memory_space<vmem>>, %arg6: memref<1x1xf32, #tpu.memory_space<vmem>>, %arg7: memref<1x4x384xf32, #tpu.memory_space<vmem>>) attributes {dimension_semantics = [#tpu.dimension_semantics<parallel>], iteration_bounds = array<i64: 2>, scalar_prefetch = 0 : i64, scratch_operands = 0 : i64, tpu.core_type = #tpu.core_type<tc>, window_params = [{transform_indices = @transform_0, window_bounds = array<i64: 1, 4, 384>}, {pipeline_mode = #tpu.pipeline_mode<synchronous>, transform_indices = @transform_1, window_bounds = array<i64: 4, 36>}, {transform_indices = @transform_2, window_bounds = array<i64: 1, 72, 8>}, {pipeline_mode = #tpu.pipeline_mode<synchronous>, transform_indices = @transform_3, window_bounds = array<i64: 9, 16, 8>}, {pipeline_mode = #tpu.pipeline_mode<synchronous>, transform_indices = @transform_4, window_bounds = array<i64: 9, 8, 18>}, {pipeline_mode = #tpu.pipeline_mode<synchronous>, transform_indices = @transform_5, window_bounds = array<i64: 1, 1>}, {transform_indices = @transform_6, window_bounds = array<i64: 1, 4, 384>}]} {
    %cst = arith.constant 0.000000e+00 : f32
    %0 = vector.broadcast %cst : f32 to vector<16x18xf32>
    %c0 = arith.constant 0 : index
    %c0_0 = arith.constant 0 : index
    %c0_1 = arith.constant 0 : index
    %1 = vector.load %arg3[%c0, %c0_0, %c0_1] : memref<1x72x8xf32, #tpu.memory_space<vmem>>, vector<1x8x8xf32>
    %2 = vector.shape_cast %1 : vector<1x8x8xf32> to vector<8x8xf32>
    %c0_2 = arith.constant 0 : index
    %c0_3 = arith.constant 0 : index
    %c0_4 = arith.constant 0 : index
    %3 = vector.load %arg5[%c0_2, %c0_3, %c0_4] : memref<9x8x18xf32, #tpu.memory_space<vmem>>, vector<1x8x18xf32>
    %4 = vector.shape_cast %3 : vector<1x8x18xf32> to vector<8x18xf32>
    %cst_5 = arith.constant dense<0.000000e+00> : vector<8x18xf32>
    %5 = tpu.matmul %2, %4, %cst_5 {dimension_numbers = #tpu.dot_dimension_numbers<[1], [0], [0], [1], [0, 0, 1, 1], [], []>} : vector<8x8xf32>, vector<8x18xf32>, vector<8x18xf32> -> vector<8x18xf32>
    %c0_6 = arith.constant 0 : index
    %c0_7 = arith.constant 0 : index
    %c0_8 = arith.constant 0 : index
    %6 = vector.load %arg4[%c0_6, %c0_7, %c0_8] : memref<9x16x8xf32, #tpu.memory_space<vmem>>, vector<1x16x8xf32>
    %7 = vector.shape_cast %6 : vector<1x16x8xf32> to vector<16x8xf32>
    %cst_9 = arith.constant dense<0.000000e+00> : vector<16x18xf32>
    %8 = tpu.matmul %7, %5, %cst_9 {dimension_numbers = #tpu.dot_dimension_numbers<[1], [0], [0], [1], [0, 0, 1, 1], [], []>} : vector<16x8xf32>, vector<8x18xf32>, vector<16x18xf32> -> vector<16x18xf32>
    %9 = arith.addf %0, %8 : vector<16x18xf32>
    %c0_10 = arith.constant 0 : index
    %c8 = arith.constant 8 : index
    %c0_11 = arith.constant 0 : index
    %10 = vector.load %arg3[%c0_10, %c8, %c0_11] : memref<1x72x8xf32, #tpu.memory_space<vmem>>, vector<1x8x8xf32>
    %11 = vector.shape_cast %10 : vector<1x8x8xf32> to vector<8x8xf32>
    %c1 = arith.constant 1 : index
    %c0_12 = arith.constant 0 : index
    %c0_13 = arith.constant 0 : index
    %12 = vector.load %arg5[%c1, %c0_12, %c0_13] : memref<9x8x18xf32, #tpu.memory_space<vmem>>, vector<1x8x18xf32>
    %13 = vector.shape_cast %12 : vector<1x8x18xf32> to vector<8x18xf32>
    %cst_14 = arith.constant dense<0.000000e+00> : vector<8x18xf32>
    %14 = tpu.matmul %11, %13, %cst_14 {dimension_numbers = #tpu.dot_dimension_numbers<[1], [0], [0], [1], [0, 0, 1, 1], [], []>} : vector<8x8xf32>, vector<8x18xf32>, vector<8x18xf32> -> vector<8x18xf32>
    %c1_15 = arith.constant 1 : index
    %c0_16 = arith.constant 0 : index
    %c0_17 = arith.constant 0 : index
    %15 = vector.load %arg4[%c1_15, %c0_16, %c0_17] : memref<9x16x8xf32, #tpu.memory_space<vmem>>, vector<1x16x8xf32>
    %16 = vector.shape_cast %15 : vector<1x16x8xf32> to vector<16x8xf32>
    %cst_18 = arith.constant dense<0.000000e+00> : vector<16x18xf32>
    %17 = tpu.matmul %16, %14, %cst_18 {dimension_numbers = #tpu.dot_dimension_numbers<[1], [0], [0], [1], [0, 0, 1, 1], [], []>} : vector<16x8xf32>, vector<8x18xf32>, vector<16x18xf32> -> vector<16x18xf32>
    %18 = arith.addf %9, %17 : vector<16x18xf32>
    %c0_19 = arith.constant 0 : index
    %c16 = arith.constant 16 : index
    %c0_20 = arith.constant 0 : index
    %19 = vector.load %arg3[%c0_19, %c16, %c0_20] : memref<1x72x8xf32, #tpu.memory_space<vmem>>, vector<1x8x8xf32>
    %20 = vector.shape_cast %19 : vector<1x8x8xf32> to vector<8x8xf32>
    %c2 = arith.constant 2 : index
    %c0_21 = arith.constant 0 : index
    %c0_22 = arith.constant 0 : index
    %21 = vector.load %arg5[%c2, %c0_21, %c0_22] : memref<9x8x18xf32, #tpu.memory_space<vmem>>, vector<1x8x18xf32>
    %22 = vector.shape_cast %21 : vector<1x8x18xf32> to vector<8x18xf32>
    %cst_23 = arith.constant dense<0.000000e+00> : vector<8x18xf32>
    %23 = tpu.matmul %20, %22, %cst_23 {dimension_numbers = #tpu.dot_dimension_numbers<[1], [0], [0], [1], [0, 0, 1, 1], [], []>} : vector<8x8xf32>, vector<8x18xf32>, vector<8x18xf32> -> vector<8x18xf32>
    %c2_24 = arith.constant 2 : index
    %c0_25 = arith.constant 0 : index
    %c0_26 = arith.constant 0 : index
    %24 = vector.load %arg4[%c2_24, %c0_25, %c0_26] : memref<9x16x8xf32, #tpu.memory_space<vmem>>, vector<1x16x8xf32>
    %25 = vector.shape_cast %24 : vector<1x16x8xf32> to vector<16x8xf32>
    %cst_27 = arith.constant dense<0.000000e+00> : vector<16x18xf32>
    %26 = tpu.matmul %25, %23, %cst_27 {dimension_numbers = #tpu.dot_dimension_numbers<[1], [0], [0], [1], [0, 0, 1, 1], [], []>} : vector<16x8xf32>, vector<8x18xf32>, vector<16x18xf32> -> vector<16x18xf32>
    %27 = arith.addf %18, %26 : vector<16x18xf32>
    %c0_28 = arith.constant 0 : index
    %c24 = arith.constant 24 : index
    %c0_29 = arith.constant 0 : index
    %28 = vector.load %arg3[%c0_28, %c24, %c0_29] : memref<1x72x8xf32, #tpu.memory_space<vmem>>, vector<1x8x8xf32>
    %29 = vector.shape_cast %28 : vector<1x8x8xf32> to vector<8x8xf32>
    %c3 = arith.constant 3 : index
    %c0_30 = arith.constant 0 : index
    %c0_31 = arith.constant 0 : index
    %30 = vector.load %arg5[%c3, %c0_30, %c0_31] : memref<9x8x18xf32, #tpu.memory_space<vmem>>, vector<1x8x18xf32>
    %31 = vector.shape_cast %30 : vector<1x8x18xf32> to vector<8x18xf32>
    %cst_32 = arith.constant dense<0.000000e+00> : vector<8x18xf32>
    %32 = tpu.matmul %29, %31, %cst_32 {dimension_numbers = #tpu.dot_dimension_numbers<[1], [0], [0], [1], [0, 0, 1, 1], [], []>} : vector<8x8xf32>, vector<8x18xf32>, vector<8x18xf32> -> vector<8x18xf32>
    %c3_33 = arith.constant 3 : index
    %c0_34 = arith.constant 0 : index
    %c0_35 = arith.constant 0 : index
    %33 = vector.load %arg4[%c3_33, %c0_34, %c0_35] : memref<9x16x8xf32, #tpu.memory_space<vmem>>, vector<1x16x8xf32>
    %34 = vector.shape_cast %33 : vector<1x16x8xf32> to vector<16x8xf32>
    %cst_36 = arith.constant dense<0.000000e+00> : vector<16x18xf32>
    %35 = tpu.matmul %34, %32, %cst_36 {dimension_numbers = #tpu.dot_dimension_numbers<[1], [0], [0], [1], [0, 0, 1, 1], [], []>} : vector<16x8xf32>, vector<8x18xf32>, vector<16x18xf32> -> vector<16x18xf32>
    %36 = arith.addf %27, %35 : vector<16x18xf32>
    %c0_37 = arith.constant 0 : index
    %c32 = arith.constant 32 : index
    %c0_38 = arith.constant 0 : index
    %37 = vector.load %arg3[%c0_37, %c32, %c0_38] : memref<1x72x8xf32, #tpu.memory_space<vmem>>, vector<1x8x8xf32>
    %38 = vector.shape_cast %37 : vector<1x8x8xf32> to vector<8x8xf32>
    %c4 = arith.constant 4 : index
    %c0_39 = arith.constant 0 : index
    %c0_40 = arith.constant 0 : index
    %39 = vector.load %arg5[%c4, %c0_39, %c0_40] : memref<9x8x18xf32, #tpu.memory_space<vmem>>, vector<1x8x18xf32>
    %40 = vector.shape_cast %39 : vector<1x8x18xf32> to vector<8x18xf32>
    %cst_41 = arith.constant dense<0.000000e+00> : vector<8x18xf32>
    %41 = tpu.matmul %38, %40, %cst_41 {dimension_numbers = #tpu.dot_dimension_numbers<[1], [0], [0], [1], [0, 0, 1, 1], [], []>} : vector<8x8xf32>, vector<8x18xf32>, vector<8x18xf32> -> vector<8x18xf32>
    %c4_42 = arith.constant 4 : index
    %c0_43 = arith.constant 0 : index
    %c0_44 = arith.constant 0 : index
    %42 = vector.load %arg4[%c4_42, %c0_43, %c0_44] : memref<9x16x8xf32, #tpu.memory_space<vmem>>, vector<1x16x8xf32>
    %43 = vector.shape_cast %42 : vector<1x16x8xf32> to vector<16x8xf32>
    %cst_45 = arith.constant dense<0.000000e+00> : vector<16x18xf32>
    %44 = tpu.matmul %43, %41, %cst_45 {dimension_numbers = #tpu.dot_dimension_numbers<[1], [0], [0], [1], [0, 0, 1, 1], [], []>} : vector<16x8xf32>, vector<8x18xf32>, vector<16x18xf32> -> vector<16x18xf32>
    %45 = arith.addf %36, %44 : vector<16x18xf32>
    %c0_46 = arith.constant 0 : index
    %c40 = arith.constant 40 : index
    %c0_47 = arith.constant 0 : index
    %46 = vector.load %arg3[%c0_46, %c40, %c0_47] : memref<1x72x8xf32, #tpu.memory_space<vmem>>, vector<1x8x8xf32>
    %47 = vector.shape_cast %46 : vector<1x8x8xf32> to vector<8x8xf32>
    %c5 = arith.constant 5 : index
    %c0_48 = arith.constant 0 : index
    %c0_49 = arith.constant 0 : index
    %48 = vector.load %arg5[%c5, %c0_48, %c0_49] : memref<9x8x18xf32, #tpu.memory_space<vmem>>, vector<1x8x18xf32>
    %49 = vector.shape_cast %48 : vector<1x8x18xf32> to vector<8x18xf32>
    %cst_50 = arith.constant dense<0.000000e+00> : vector<8x18xf32>
    %50 = tpu.matmul %47, %49, %cst_50 {dimension_numbers = #tpu.dot_dimension_numbers<[1], [0], [0], [1], [0, 0, 1, 1], [], []>} : vector<8x8xf32>, vector<8x18xf32>, vector<8x18xf32> -> vector<8x18xf32>
    %c5_51 = arith.constant 5 : index
    %c0_52 = arith.constant 0 : index
    %c0_53 = arith.constant 0 : index
    %51 = vector.load %arg4[%c5_51, %c0_52, %c0_53] : memref<9x16x8xf32, #tpu.memory_space<vmem>>, vector<1x16x8xf32>
    %52 = vector.shape_cast %51 : vector<1x16x8xf32> to vector<16x8xf32>
    %cst_54 = arith.constant dense<0.000000e+00> : vector<16x18xf32>
    %53 = tpu.matmul %52, %50, %cst_54 {dimension_numbers = #tpu.dot_dimension_numbers<[1], [0], [0], [1], [0, 0, 1, 1], [], []>} : vector<16x8xf32>, vector<8x18xf32>, vector<16x18xf32> -> vector<16x18xf32>
    %54 = arith.addf %45, %53 : vector<16x18xf32>
    %c0_55 = arith.constant 0 : index
    %c48 = arith.constant 48 : index
    %c0_56 = arith.constant 0 : index
    %55 = vector.load %arg3[%c0_55, %c48, %c0_56] : memref<1x72x8xf32, #tpu.memory_space<vmem>>, vector<1x8x8xf32>
    %56 = vector.shape_cast %55 : vector<1x8x8xf32> to vector<8x8xf32>
    %c6 = arith.constant 6 : index
    %c0_57 = arith.constant 0 : index
    %c0_58 = arith.constant 0 : index
    %57 = vector.load %arg5[%c6, %c0_57, %c0_58] : memref<9x8x18xf32, #tpu.memory_space<vmem>>, vector<1x8x18xf32>
    %58 = vector.shape_cast %57 : vector<1x8x18xf32> to vector<8x18xf32>
    %cst_59 = arith.constant dense<0.000000e+00> : vector<8x18xf32>
    %59 = tpu.matmul %56, %58, %cst_59 {dimension_numbers = #tpu.dot_dimension_numbers<[1], [0], [0], [1], [0, 0, 1, 1], [], []>} : vector<8x8xf32>, vector<8x18xf32>, vector<8x18xf32> -> vector<8x18xf32>
    %c6_60 = arith.constant 6 : index
    %c0_61 = arith.constant 0 : index
    %c0_62 = arith.constant 0 : index
    %60 = vector.load %arg4[%c6_60, %c0_61, %c0_62] : memref<9x16x8xf32, #tpu.memory_space<vmem>>, vector<1x16x8xf32>
    %61 = vector.shape_cast %60 : vector<1x16x8xf32> to vector<16x8xf32>
    %cst_63 = arith.constant dense<0.000000e+00> : vector<16x18xf32>
    %62 = tpu.matmul %61, %59, %cst_63 {dimension_numbers = #tpu.dot_dimension_numbers<[1], [0], [0], [1], [0, 0, 1, 1], [], []>} : vector<16x8xf32>, vector<8x18xf32>, vector<16x18xf32> -> vector<16x18xf32>
    %63 = arith.addf %54, %62 : vector<16x18xf32>
    %c0_64 = arith.constant 0 : index
    %c56 = arith.constant 56 : index
    %c0_65 = arith.constant 0 : index
    %64 = vector.load %arg3[%c0_64, %c56, %c0_65] : memref<1x72x8xf32, #tpu.memory_space<vmem>>, vector<1x8x8xf32>
    %65 = vector.shape_cast %64 : vector<1x8x8xf32> to vector<8x8xf32>
    %c7 = arith.constant 7 : index
    %c0_66 = arith.constant 0 : index
    %c0_67 = arith.constant 0 : index
    %66 = vector.load %arg5[%c7, %c0_66, %c0_67] : memref<9x8x18xf32, #tpu.memory_space<vmem>>, vector<1x8x18xf32>
    %67 = vector.shape_cast %66 : vector<1x8x18xf32> to vector<8x18xf32>
    %cst_68 = arith.constant dense<0.000000e+00> : vector<8x18xf32>
    %68 = tpu.matmul %65, %67, %cst_68 {dimension_numbers = #tpu.dot_dimension_numbers<[1], [0], [0], [1], [0, 0, 1, 1], [], []>} : vector<8x8xf32>, vector<8x18xf32>, vector<8x18xf32> -> vector<8x18xf32>
    %c7_69 = arith.constant 7 : index
    %c0_70 = arith.constant 0 : index
    %c0_71 = arith.constant 0 : index
    %69 = vector.load %arg4[%c7_69, %c0_70, %c0_71] : memref<9x16x8xf32, #tpu.memory_space<vmem>>, vector<1x16x8xf32>
    %70 = vector.shape_cast %69 : vector<1x16x8xf32> to vector<16x8xf32>
    %cst_72 = arith.constant dense<0.000000e+00> : vector<16x18xf32>
    %71 = tpu.matmul %70, %68, %cst_72 {dimension_numbers = #tpu.dot_dimension_numbers<[1], [0], [0], [1], [0, 0, 1, 1], [], []>} : vector<16x8xf32>, vector<8x18xf32>, vector<16x18xf32> -> vector<16x18xf32>
    %72 = arith.addf %63, %71 : vector<16x18xf32>
    %c0_73 = arith.constant 0 : index
    %c64 = arith.constant 64 : index
    %c0_74 = arith.constant 0 : index
    %73 = vector.load %arg3[%c0_73, %c64, %c0_74] : memref<1x72x8xf32, #tpu.memory_space<vmem>>, vector<1x8x8xf32>
    %74 = vector.shape_cast %73 : vector<1x8x8xf32> to vector<8x8xf32>
    %c8_75 = arith.constant 8 : index
    %c0_76 = arith.constant 0 : index
    %c0_77 = arith.constant 0 : index
    %75 = vector.load %arg5[%c8_75, %c0_76, %c0_77] : memref<9x8x18xf32, #tpu.memory_space<vmem>>, vector<1x8x18xf32>
    %76 = vector.shape_cast %75 : vector<1x8x18xf32> to vector<8x18xf32>
    %cst_78 = arith.constant dense<0.000000e+00> : vector<8x18xf32>
    %77 = tpu.matmul %74, %76, %cst_78 {dimension_numbers = #tpu.dot_dimension_numbers<[1], [0], [0], [1], [0, 0, 1, 1], [], []>} : vector<8x8xf32>, vector<8x18xf32>, vector<8x18xf32> -> vector<8x18xf32>
    %c8_79 = arith.constant 8 : index
    %c0_80 = arith.constant 0 : index
    %c0_81 = arith.constant 0 : index
    %78 = vector.load %arg4[%c8_79, %c0_80, %c0_81] : memref<9x16x8xf32, #tpu.memory_space<vmem>>, vector<1x16x8xf32>
    %79 = vector.shape_cast %78 : vector<1x16x8xf32> to vector<16x8xf32>
    %cst_82 = arith.constant dense<0.000000e+00> : vector<16x18xf32>
    %80 = tpu.matmul %79, %77, %cst_82 {dimension_numbers = #tpu.dot_dimension_numbers<[1], [0], [0], [1], [0, 0, 1, 1], [], []>} : vector<16x8xf32>, vector<8x18xf32>, vector<16x18xf32> -> vector<16x18xf32>
    %81 = arith.addf %72, %80 : vector<16x18xf32>
    %c0_83 = arith.constant 0 : index
    %c0_84 = arith.constant 0 : index
    %82 = vector.load %arg6[%c0_83, %c0_84] : memref<1x1xf32, #tpu.memory_space<vmem>>, vector<1x1xf32>
    %83 = vector.broadcast %82 : vector<1x1xf32> to vector<16x18xf32>
    %84 = arith.addf %81, %83 : vector<16x18xf32>
    %85 = arith.negf %84 : vector<16x18xf32>
    %86 = math.exp %85 : vector<16x18xf32>
    %cst_85 = arith.constant 1.000000e+00 : f32
    %87 = vector.broadcast %cst_85 : f32 to vector<16x18xf32>
    %88 = arith.addf %87, %86 : vector<16x18xf32>
    %89 = arith.divf %87, %88 : vector<16x18xf32>
    %90 = vector.extract_strided_slice %89 {offsets = [0, 0], sizes = [1, 18], strides = [1, 1]} : vector<16x18xf32> to vector<1x18xf32>
    %91 = vector.extract_strided_slice %89 {offsets = [1, 0], sizes = [1, 18], strides = [1, 1]} : vector<16x18xf32> to vector<1x18xf32>
    %92 = vector.extract_strided_slice %89 {offsets = [2, 0], sizes = [1, 18], strides = [1, 1]} : vector<16x18xf32> to vector<1x18xf32>
    %93 = vector.extract_strided_slice %89 {offsets = [3, 0], sizes = [1, 18], strides = [1, 1]} : vector<16x18xf32> to vector<1x18xf32>
    %94 = vector.extract_strided_slice %89 {offsets = [4, 0], sizes = [1, 18], strides = [1, 1]} : vector<16x18xf32> to vector<1x18xf32>
    %95 = vector.extract_strided_slice %89 {offsets = [5, 0], sizes = [1, 18], strides = [1, 1]} : vector<16x18xf32> to vector<1x18xf32>
    %96 = vector.extract_strided_slice %89 {offsets = [6, 0], sizes = [1, 18], strides = [1, 1]} : vector<16x18xf32> to vector<1x18xf32>
    %97 = vector.extract_strided_slice %89 {offsets = [7, 0], sizes = [1, 18], strides = [1, 1]} : vector<16x18xf32> to vector<1x18xf32>
    %98 = vector.extract_strided_slice %89 {offsets = [8, 0], sizes = [1, 18], strides = [1, 1]} : vector<16x18xf32> to vector<1x18xf32>
    %99 = vector.extract_strided_slice %89 {offsets = [9, 0], sizes = [1, 18], strides = [1, 1]} : vector<16x18xf32> to vector<1x18xf32>
    %100 = vector.extract_strided_slice %89 {offsets = [10, 0], sizes = [1, 18], strides = [1, 1]} : vector<16x18xf32> to vector<1x18xf32>
    %101 = vector.extract_strided_slice %89 {offsets = [11, 0], sizes = [1, 18], strides = [1, 1]} : vector<16x18xf32> to vector<1x18xf32>
    %102 = vector.extract_strided_slice %89 {offsets = [12, 0], sizes = [1, 18], strides = [1, 1]} : vector<16x18xf32> to vector<1x18xf32>
    %103 = vector.extract_strided_slice %89 {offsets = [13, 0], sizes = [1, 18], strides = [1, 1]} : vector<16x18xf32> to vector<1x18xf32>
    %104 = vector.extract_strided_slice %89 {offsets = [14, 0], sizes = [1, 18], strides = [1, 1]} : vector<16x18xf32> to vector<1x18xf32>
    %105 = vector.extract_strided_slice %89 {offsets = [15, 0], sizes = [1, 18], strides = [1, 1]} : vector<16x18xf32> to vector<1x18xf32>
    %106 = tpu.concatenate %90, %91, %92, %93, %94, %95, %96, %97, %98, %99, %100, %101, %102, %103, %104, %105 in 1 : vector<1x18xf32>, vector<1x18xf32>, vector<1x18xf32>, vector<1x18xf32>, vector<1x18xf32>, vector<1x18xf32>, vector<1x18xf32>, vector<1x18xf32>, vector<1x18xf32>, vector<1x18xf32>, vector<1x18xf32>, vector<1x18xf32>, vector<1x18xf32>, vector<1x18xf32>, vector<1x18xf32>, vector<1x18xf32> -> vector<1x288xf32>
    %c0_86 = arith.constant 0 : index
    %c0_87 = arith.constant 0 : index
    %c17 = arith.constant 17 : index
    %107 = vector.load %arg1[%c0_86, %c0_87, %c17] : memref<1x4x384xf32, #tpu.memory_space<vmem>>, vector<1x4x288xf32>
    %108 = vector.shape_cast %107 : vector<1x4x288xf32> to vector<4x288xf32>
    %c0_88 = arith.constant 0 : index
    %c0_89 = arith.constant 0 : index
    %c18 = arith.constant 18 : index
    %109 = vector.load %arg1[%c0_88, %c0_89, %c18] : memref<1x4x384xf32, #tpu.memory_space<vmem>>, vector<1x4x288xf32>
    %110 = vector.shape_cast %109 : vector<1x4x288xf32> to vector<4x288xf32>
    %c0_90 = arith.constant 0 : index
    %c0_91 = arith.constant 0 : index
    %c19 = arith.constant 19 : index
    %111 = vector.load %arg1[%c0_90, %c0_91, %c19] : memref<1x4x384xf32, #tpu.memory_space<vmem>>, vector<1x4x288xf32>
    %112 = vector.shape_cast %111 : vector<1x4x288xf32> to vector<4x288xf32>
    %c0_92 = arith.constant 0 : index
    %c0_93 = arith.constant 0 : index
    %c35 = arith.constant 35 : index
    %113 = vector.load %arg1[%c0_92, %c0_93, %c35] : memref<1x4x384xf32, #tpu.memory_space<vmem>>, vector<1x4x288xf32>
    %114 = vector.shape_cast %113 : vector<1x4x288xf32> to vector<4x288xf32>
    %c0_94 = arith.constant 0 : index
    %c0_95 = arith.constant 0 : index
    %c36 = arith.constant 36 : index
    %115 = vector.load %arg1[%c0_94, %c0_95, %c36] : memref<1x4x384xf32, #tpu.memory_space<vmem>>, vector<1x4x288xf32>
    %116 = vector.shape_cast %115 : vector<1x4x288xf32> to vector<4x288xf32>
    %c0_96 = arith.constant 0 : index
    %c0_97 = arith.constant 0 : index
    %c37 = arith.constant 37 : index
    %117 = vector.load %arg1[%c0_96, %c0_97, %c37] : memref<1x4x384xf32, #tpu.memory_space<vmem>>, vector<1x4x288xf32>
    %118 = vector.shape_cast %117 : vector<1x4x288xf32> to vector<4x288xf32>
    %c0_98 = arith.constant 0 : index
    %c0_99 = arith.constant 0 : index
    %c53 = arith.constant 53 : index
    %119 = vector.load %arg1[%c0_98, %c0_99, %c53] : memref<1x4x384xf32, #tpu.memory_space<vmem>>, vector<1x4x288xf32>
    %120 = vector.shape_cast %119 : vector<1x4x288xf32> to vector<4x288xf32>
    %c0_100 = arith.constant 0 : index
    %c0_101 = arith.constant 0 : index
    %c54 = arith.constant 54 : index
    %121 = vector.load %arg1[%c0_100, %c0_101, %c54] : memref<1x4x384xf32, #tpu.memory_space<vmem>>, vector<1x4x288xf32>
    %122 = vector.shape_cast %121 : vector<1x4x288xf32> to vector<4x288xf32>
    %c0_102 = arith.constant 0 : index
    %c0_103 = arith.constant 0 : index
    %c55 = arith.constant 55 : index
    %123 = vector.load %arg1[%c0_102, %c0_103, %c55] : memref<1x4x384xf32, #tpu.memory_space<vmem>>, vector<1x4x288xf32>
    %124 = vector.shape_cast %123 : vector<1x4x288xf32> to vector<4x288xf32>
    %125 = tpu.concatenate %108, %110, %112, %114, %116, %118, %120, %122, %124 in 0 : vector<4x288xf32>, vector<4x288xf32>, vector<4x288xf32>, vector<4x288xf32>, vector<4x288xf32>, vector<4x288xf32>, vector<4x288xf32>, vector<4x288xf32>, vector<4x288xf32> -> vector<36x288xf32>
    %c0_104 = arith.constant 0 : index
    %c0_105 = arith.constant 0 : index
    %126 = vector.load %arg2[%c0_104, %c0_105] : memref<4x36xf32, #tpu.memory_space<vmem>>, vector<4x36xf32>
    %cst_106 = arith.constant dense<0.000000e+00> : vector<4x288xf32>
    %127 = tpu.matmul %126, %125, %cst_106 {dimension_numbers = #tpu.dot_dimension_numbers<[1], [0], [0], [1], [0, 0, 1, 1], [], []>} : vector<4x36xf32>, vector<36x288xf32>, vector<4x288xf32> -> vector<4x288xf32>
    %c0_107 = arith.constant 0 : index
    %c0_108 = arith.constant 0 : index
    %c36_109 = arith.constant 36 : index
    %128 = vector.load %arg1[%c0_107, %c0_108, %c36_109] : memref<1x4x384xf32, #tpu.memory_space<vmem>>, vector<1x4x288xf32>
    %129 = vector.shape_cast %128 : vector<1x4x288xf32> to vector<4x288xf32>
    %130 = vector.broadcast %106 : vector<1x288xf32> to vector<4x288xf32>
    %131 = arith.mulf %127, %130 : vector<4x288xf32>
    %132 = arith.addf %129, %131 : vector<4x288xf32>
    %cst_110 = arith.constant 0.000000e+00 : f32
    %133 = vector.broadcast %cst_110 : f32 to vector<4x96xf32>
    %134 = tpu.concatenate %132, %133 in 1 : vector<4x288xf32>, vector<4x96xf32> -> vector<4x384xf32>
    %c0_111 = arith.constant 0 : index
    %c0_112 = arith.constant 0 : index
    %c0_113 = arith.constant 0 : index
    %135 = vector.load %arg7[%c0_111, %c0_112, %c0_113] : memref<1x4x384xf32, #tpu.memory_space<vmem>>, vector<1x4x384xf32>
    %136 = vector.shape_cast %135 : vector<1x4x384xf32> to vector<4x384xf32>
    %137 = vector.shape_cast %134 : vector<4x384xf32> to vector<1x4x384xf32>
    tpu.vector_store %arg7[%c0_111, %c0_112, %c0_113], %137 {strides = array<i32>} : memref<1x4x384xf32, #tpu.memory_space<vmem>>, vector<1x4x384xf32>,
    return
  }
  func.func @transform_0(%arg0: i32) -> (i32, i32, i32) {
    %c0_i32 = arith.constant 0 : i32
    %c0_i32_0 = arith.constant 0 : i32
    %c0_i32_1 = arith.constant 0 : i32
    return %arg0, %c0_i32, %c0_i32_0 : i32, i32, i32
  }
  func.func @transform_1(%arg0: i32) -> (i32, i32) {
    %c0_i32 = arith.constant 0 : i32
    %c0_i32_0 = arith.constant 0 : i32
    %c0_i32_1 = arith.constant 0 : i32
    return %c0_i32, %c0_i32_0 : i32, i32
  }
  func.func @transform_2(%arg0: i32) -> (i32, i32, i32) {
    %c0_i32 = arith.constant 0 : i32
    %c0_i32_0 = arith.constant 0 : i32
    %c0_i32_1 = arith.constant 0 : i32
    return %arg0, %c0_i32, %c0_i32_0 : i32, i32, i32
  }
  func.func @transform_3(%arg0: i32) -> (i32, i32, i32) {
    %c0_i32 = arith.constant 0 : i32
    %c0_i32_0 = arith.constant 0 : i32
    %c0_i32_1 = arith.constant 0 : i32
    %c0_i32_2 = arith.constant 0 : i32
    return %c0_i32, %c0_i32_0, %c0_i32_1 : i32, i32, i32
  }
  func.func @transform_4(%arg0: i32) -> (i32, i32, i32) {
    %c0_i32 = arith.constant 0 : i32
    %c0_i32_0 = arith.constant 0 : i32
    %c0_i32_1 = arith.constant 0 : i32
    %c0_i32_2 = arith.constant 0 : i32
    return %c0_i32, %c0_i32_0, %c0_i32_1 : i32, i32, i32
  }
  func.func @transform_5(%arg0: i32) -> (i32, i32) {
    %c0_i32 = arith.constant 0 : i32
    %c0_i32_0 = arith.constant 0 : i32
    %c0_i32_1 = arith.constant 0 : i32
    return %c0_i32, %c0_i32_0 : i32, i32
  }
  func.func @transform_6(%arg0: i32) -> (i32, i32, i32) {
    %c0_i32 = arith.constant 0 : i32
    %c0_i32_0 = arith.constant 0 : i32
    %c0_i32_1 = arith.constant 0 : i32
    return %arg0, %c0_i32, %c0_i32_0 : i32, i32, i32
  }
}

</mosaic_0001>

<llo_original>
// kernel: scale_aware_adapt_forward.3
$region0: #{scale_aware_adapt_forward.3}
  #allocation0 [shape = 'u32[]', space=smem, size = 0x4, offset = 0x4, fixed_abs, tag = 'smem constant byte address 0x4 - core index']
  #allocation1 [shape = 'u32[72,128]{1,0:T(1,128)}', space=vmem, size = 0x9000, scoped, tag = 'internal scratch']
  %s0 = inlined_call_operand.vmem [shape: f32[2,8,256], index: 0, kind: input, shape index: {}]
  %s1 = inlined_call_operand.vmem [shape: f32[16,36], index: 1, kind: input, shape index: {}]
  %s2 = inlined_call_operand.vmem [shape: f32[16,1], index: 2, kind: input, shape index: {}]
  %s3 = inlined_call_operand.vmem [shape: f32[1,144], index: 3, kind: input, shape index: {}]
  %s4 = inlined_call_operand.vmem [shape: f32[2,16,256], index: 4, kind: output, shape index: {}]
  %s5 = sld [smem:[#allocation0]]
  $region49: #{scale_aware_adapt_forward.3} parent=0
    _
  %s7 = ssub.s32 1, %s5
  %s8 = scalar_select 0, %s7, %s5
  loop: start=0, step=1, limit=4
  $region2: #{scale_aware_adapt_forward.3} parent=0 // loop_pre_header
    _
  $region3: #{scale_aware_adapt_forward.3} parent=0 // loop_header
    %s10 = sphi 0, %s14
    %p11 = scmp.ge.s32.totalorder %s10, 4
    %s20 = sphi 0, %s22
    %s23 = sphi 0, %s20
    %s24 = sphi 0, %s23
    %s40 = sphi 0, %s24
    %s44 = sphi 0, %s44
    %s46 = sphi 0, %s44
    %s47 = sphi 0, %s46
    %s61 = sphi 0, %s47
    %s65 = sphi 0, %s65
    %s67 = sphi 0, %s65
    %s68 = sphi 0, %s67
    %s82 = sphi 0, %s68
    %s86 = sphi 0, %s86
    %s88 = sphi 0, %s86
    %s89 = sphi 0, %s88
    %s103 = sphi 0, %s89
    %s109 = sphi 0, %s111
    %s112 = sphi 0, %s109
    %s113 = sphi 0, %s112
    %s129 = sphi 0, %s113
  $region4: #{scale_aware_adapt_forward.3} parent=0 // loop_header_branch
    %13 = sbr.rel (%p11) target = $region8
  $region5: #{scale_aware_adapt_forward.3} parent=0 // loop_body
    %s15 = ssub.s32 %s10, 1
    %s16 = ssub.s32 %s10, 2
    %s17 = sadd.s32 %s10, 1
    %s18 = ssub.s32 %s10, %s17
    %p19 = scmp.eq.s32.totalorder %s18, 0
    %s21 = sadd.s32 %s20, 1
    %s22 = scalar_select %p19, %s20, %s21
    %p25 = pneg %p19
    %p26 = scmp.eq.s32.totalorder %s10, 1
    %p27 = por %p25, %p26
    %p28 = scmp.ne.s32.totalorder %s20, %s23
    %p29 = scmp.eq.s32.totalorder %s10, 0
    %p30 = por %p28, %p29
    %p31 = scmp.ne.s32.totalorder %s20, %s23
    %p32 = scmp.eq.s32.totalorder %s15, 1
    %p33 = por %p31, %p32
    %p34 = scmp.ne.s32.totalorder %s23, %s24
    %p35 = scmp.eq.s32.totalorder %s15, 0
    %p36 = por %p34, %p35
    %p37 = scmp.ne.s32.totalorder %s23, %s24
    %p38 = scmp.eq.s32.totalorder %s16, 1
    %p39 = por %p37, %p38
    %p41 = scmp.ne.s32.totalorder %s24, %s40
    %p42 = scmp.eq.s32.totalorder %s16, 0
    %p43 = por %p41, %p42
    %s45 = sadd.s32 %s44, 1
    %p48 = scmp.eq.s32.totalorder %s10, 1
    %p49 = scmp.ne.s32.totalorder %s44, %s46
    %p50 = scmp.eq.s32.totalorder %s10, 0
    %p51 = por %p49, %p50
    %p52 = scmp.ne.s32.totalorder %s44, %s46
    %p53 = scmp.eq.s32.totalorder %s15, 1
    %p54 = por %p52, %p53
    %p55 = scmp.ne.s32.totalorder %s46, %s47
    %p56 = scmp.eq.s32.totalorder %s15, 0
    %p57 = por %p55, %p56
    %p58 = scmp.ne.s32.totalorder %s46, %s47
    %p59 = scmp.eq.s32.totalorder %s16, 1
    %p60 = por %p58, %p59
    %p62 = scmp.ne.s32.totalorder %s47, %s61
    %p63 = scmp.eq.s32.totalorder %s16, 0
    %p64 = por %p62, %p63
    %s66 = sadd.s32 %s65, 1
    %p69 = scmp.eq.s32.totalorder %s10, 1
    %p70 = scmp.ne.s32.totalorder %s65, %s67
    %p71 = scmp.eq.s32.totalorder %s10, 0
    %p72 = por %p70, %p71
    %p73 = scmp.ne.s32.totalorder %s65, %s67
    %p74 = scmp.eq.s32.totalorder %s15, 1
    %p75 = por %p73, %p74
    %p76 = scmp.ne.s32.totalorder %s67, %s68
    %p77 = scmp.eq.s32.totalorder %s15, 0
    %p78 = por %p76, %p77
    %p79 = scmp.ne.s32.totalorder %s67, %s68
    %p80 = scmp.eq.s32.totalorder %s16, 1
    %p81 = por %p79, %p80
    %p83 = scmp.ne.s32.totalorder %s68, %s82
    %p84 = scmp.eq.s32.totalorder %s16, 0
    %p85 = por %p83, %p84
    %s87 = sadd.s32 %s86, 1
    %p90 = scmp.eq.s32.totalorder %s10, 1
    %p91 = scmp.ne.s32.totalorder %s86, %s88
    %p92 = scmp.eq.s32.totalorder %s10, 0
    %p93 = por %p91, %p92
    %p94 = scmp.ne.s32.totalorder %s86, %s88
    %p95 = scmp.eq.s32.totalorder %s15, 1
    %p96 = por %p94, %p95
    %p97 = scmp.ne.s32.totalorder %s88, %s89
    %p98 = scmp.eq.s32.totalorder %s15, 0
    %p99 = por %p97, %p98
    %p100 = scmp.ne.s32.totalorder %s88, %s89
    %p101 = scmp.eq.s32.totalorder %s16, 1
    %p102 = por %p100, %p101
    %p104 = scmp.ne.s32.totalorder %s89, %s103
    %p105 = scmp.eq.s32.totalorder %s16, 0
    %p106 = por %p104, %p105
    %s107 = ssub.s32 %s10, %s17
    %p108 = scmp.eq.s32.totalorder %s107, 0
    %s110 = sadd.s32 %s109, 1
    %s111 = scalar_select %p108, %s109, %s110
    %p114 = pneg %p108
    %p115 = scmp.eq.s32.totalorder %s10, 1
    %p116 = por %p114, %p115
    %p117 = scmp.ne.s32.totalorder %s109, %s112
    %p118 = scmp.eq.s32.totalorder %s10, 0
    %p119 = por %p117, %p118
    %p120 = scmp.ne.s32.totalorder %s109, %s112
    %p121 = scmp.eq.s32.totalorder %s15, 1
    %p122 = por %p120, %p121
    %p123 = scmp.ne.s32.totalorder %s112, %s113
    %p124 = scmp.eq.s32.totalorder %s15, 0
    %p125 = por %p123, %p124
    %p126 = scmp.ne.s32.totalorder %s112, %s113
    %p127 = scmp.eq.s32.totalorder %s16, 1
    %p128 = por %p126, %p127
    %p130 = scmp.ne.s32.totalorder %s113, %s129
    %p131 = scmp.eq.s32.totalorder %s16, 0
    %p132 = por %p130, %p131
    %p133 = scmp.le.s32.totalorder 1, %s10
    %p134 = scmp.lt.s32.totalorder %s10, 3
    %p135 = pnand %p133, %p134
    %p136 = pneg %p135
    // Predicated region
    $region9: #{scale_aware_adapt_forward.3} parent=5 // pred_check
      _
    $region10: #{scale_aware_adapt_forward.3} parent=5 // pred_check_branch
      %138 = sbr.rel (%p135) target = $region12
    $region11: #{scale_aware_adapt_forward.3} parent=5 // pred_region
      %s139 = ssub.s32 %s10, 1
      // Predicated region
      $region13: #{scale_aware_adapt_forward.3} parent=11 // pred_check
        %p140 = pneg %p57
      $region14: #{scale_aware_adapt_forward.3} parent=11 // pred_check_branch
        %142 = sbr.rel (%p140) target = $region16
      $region15: #{scale_aware_adapt_forward.3} parent=11 // pred_region
        _
      $region16: #{scale_aware_adapt_forward.3} parent=11 // pred_fallthru
        _
      // Predicated region
      $region17: #{scale_aware_adapt_forward.3} parent=11 // pred_check
        %p143 = pneg %p78
      $region18: #{scale_aware_adapt_forward.3} parent=11 // pred_check_branch
        %145 = sbr.rel (%p143) target = $region20
      $region19: #{scale_aware_adapt_forward.3} parent=11 // pred_region
        _
      $region20: #{scale_aware_adapt_forward.3} parent=11 // pred_fallthru
        _
      // Predicated region
      $region21: #{scale_aware_adapt_forward.3} parent=11 // pred_check
        %p146 = pneg %p99
      $region22: #{scale_aware_adapt_forward.3} parent=11 // pred_check_branch
        %148 = sbr.rel (%p146) target = $region24
      $region23: #{scale_aware_adapt_forward.3} parent=11 // pred_region
        _
      $region24: #{scale_aware_adapt_forward.3} parent=11 // pred_fallthru
        _
    $region12: #{scale_aware_adapt_forward.3} parent=5 // pred_fallthru
      _
    %p149 = scmp.lt.s32.totalorder %s10, 2
    // Predicated region
    $region25: #{scale_aware_adapt_forward.3} parent=5 // pred_check
      %p150 = pneg %p149
    $region26: #{scale_aware_adapt_forward.3} parent=5 // pred_check_branch
      %152 = sbr.rel (%p150) target = $region28
    $region27: #{scale_aware_adapt_forward.3} parent=5 // pred_region
      // Predicated region
      $region29: #{scale_aware_adapt_forward.3} parent=27 // pred_check
        %p153 = pneg %p30
      $region30: #{scale_aware_adapt_forward.3} parent=27 // pred_check_branch
        %155 = sbr.rel (%p153) target = $region32
      $region31: #{scale_aware_adapt_forward.3} parent=27 // pred_region
        %p156 = scmp.lt.s32.totalorder %s10, 1
        %s157 = scalar_select %p156, %s10, 1
        %s158 = smul.addr %s157, 2
        %s159 = smul.addr %s158, 8
        %s160 = scalar_lea.vmem %s0, %s159
      $region32: #{scale_aware_adapt_forward.3} parent=27 // pred_fallthru
        _
    $region28: #{scale_aware_adapt_forward.3} parent=5 // pred_fallthru
      _
    %p161 = scmp.le.s32.totalorder 1, %s10
    %p162 = scmp.lt.s32.totalorder %s10, 3
    %p163 = pnand %p161, %p162
    %p164 = pneg %p163
    // Predicated region
    $region33: #{scale_aware_adapt_forward.3} parent=5 // pred_check
      _
    $region34: #{scale_aware_adapt_forward.3} parent=5 // pred_check_branch
      %166 = sbr.rel (%p163) target = $region36
    $region35: #{scale_aware_adapt_forward.3} parent=5 // pred_region
      %s167 = ssub.s32 %s10, 1
      %p168 = scmp.lt.s32.totalorder %s15, 1
      %s169 = scalar_select %p168, %s15, 1
      %s170 = smul.addr %s169, 2
      %s171 = smul.addr %s170, 8
      %s172 = scalar_lea.vmem %s0, %s171
      %p173 = pneg %p36
      %p174 = pneg %p33
      %p175 = pneg %p57
      %p176 = pneg %p54
      %p177 = pneg %p78
      %p178 = pneg %p75
      %p179 = pneg %p99
      %p180 = pneg %p96
      %p181 = pneg %p125
      %p182 = pneg %p122
      %p183 = scmp.lt.s32.totalorder %s15, 1
      %s184 = scalar_select %p183, %s15, 1
      %s185 = smul.addr %s184, 4
      %s186 = smul.addr %s185, 8
      %s187 = scalar_lea.vmem %s4, %s186
      %p188 = scmp.lt.s32.totalorder %s15, 1
      %s189 = scalar_select %p188, %s15, 1
      %s190 = smul.addr %s189, 2
      %s191 = smul.addr %s190, 8
      %s192 = scalar_lea.vmem %s0, %s191
      %p193 = scmp.lt.s32.totalorder %s15, 1
      %s194 = scalar_select %p193, %s15, 1
      %s195 = smul.addr %s194, 4
      %s196 = smul.addr %s195, 8
      %s197 = scalar_lea.vmem %s4, %s196
      %v198 = vld [vmem:[%s192] sm:$0xf]
      %v199 = vld [vmem:[%s192 + $0x8] sm:$0xf]
      %v200 = vld [vmem:[%s192] sm:$0xf0]
      %v201 = vld [vmem:[%s192 + $0x8] sm:$0xf0]
      %204 = vrot.lane.b32.xlu0 %v198, 127
      %v205 = vpop.permute.xlu0 %204
      %206 = vrot.lane.b32.xlu0 %v199, 127
      %v207 = vpop.permute.xlu0 %206
      %vm208 = vcmask 1039360
      %v209 = vsel %vm208, %v205, %v207
      %v212 = vrot.slane %v198, 4
      %v213 = vrot.slane %v199, 4
      %214 = vrot.lane.b32.xlu0 %v212, 119
      %v215 = vpop.permute.xlu0 %214
      %216 = vrot.lane.b32.xlu0 %v213, 119
      %v217 = vpop.permute.xlu0 %216
      %vm218 = vcmask 973824
      %v219 = vsel %vm218, %v215, %v217
      %v224 = vrot.slane %v200, 4
      %v225 = vrot.slane %v201, 4
      %226 = vrot.lane.b32.xlu0 %v224, 119
      %v227 = vpop.permute.xlu0 %226
      %228 = vrot.lane.b32.xlu0 %v225, 119
      %v229 = vpop.permute.xlu0 %228
      %v230 = vsel %vm218, %v227, %v229
      %233 = vrot.lane.b32.xlu0 %v212, 118
      %v234 = vpop.permute.xlu0 %233
      %235 = vrot.lane.b32.xlu0 %v213, 118
      %v236 = vpop.permute.xlu0 %235
      %vm237 = vcmask 965632
      %v238 = vsel %vm237, %v234, %v236
      %241 = vrot.lane.b32.xlu0 %v198, 110
      %v242 = vpop.permute.xlu0 %241
      %243 = vrot.lane.b32.xlu0 %v199, 110
      %v244 = vpop.permute.xlu0 %243
      %vm245 = vcmask 900096
      %v246 = vsel %vm245, %v242, %v244
      %249 = vrot.lane.b32.xlu0 %v200, 110
      %v250 = vpop.permute.xlu0 %249
      %251 = vrot.lane.b32.xlu0 %v201, 110
      %v252 = vpop.permute.xlu0 %251
      %v253 = vsel %vm245, %v250, %v252
      %256 = vrot.lane.b32.xlu0 %v198, 109
      %v257 = vpop.permute.xlu0 %256
      %258 = vrot.lane.b32.xlu0 %v199, 109
      %v259 = vpop.permute.xlu0 %258
      %vm260 = vcmask 891904
      %v261 = vsel %vm260, %v257, %v259
      %vm262 = vcmask 1043456
      %v263 = vsel %vm262, %v198, %v200
      %v264 = vsel %vm262, %v199, %v201
      %v265 = vsel %vm262, %v209, %v219
      %v266 = vsel %vm262, %v207, %v217
      %v267 = vsel %vm262, %v230, %v238
      %v268 = vsel %vm262, %v229, %v236
      %v269 = vsel %vm262, %v246, %v253
      %v270 = vsel %vm262, %v244, %v252
      %v271 = vld [vmem:[%s1] sm:$0xff]
      %v272 = vld [vmem:[%s1 + $0x8] sm:$0xff]
      %v273 = vld [vmem:[%s2] sm:$0xff]
      %v274 = vld [vmem:[%s2 + $0x8] sm:$0xff]
      %276 = vset.pattern.permute.xlu0 0
      %277 = vperm.xlu0 %276, %v273
      %v278 = vpop.permute.xlu0 %277
      %281 = vset.pattern.permute.xlu0 0
      %282 = vperm.xlu0 %281, %v274
      %v283 = vpop.permute.xlu0 %282
      %293 = vrot.lane.b32.xlu0 %v263, 119
      %v294 = vpop.permute.xlu0 %293
      %295 = vrot.lane.b32.xlu0 %v264, 119
      %v296 = vpop.permute.xlu0 %295
      %297 = vrot.lane.b32.xlu0 %v265, 119
      %v298 = vpop.permute.xlu0 %297
      %299 = vrot.lane.b32.xlu0 %v266, 119
      %v300 = vpop.permute.xlu0 %299
      %301 = vrot.lane.b32.xlu0 %v267, 119
      %v302 = vpop.permute.xlu0 %301
      %303 = vrot.lane.b32.xlu0 %v268, 119
      %v304 = vpop.permute.xlu0 %303
      %305 = vrot.lane.b32.xlu0 %v269, 119
      %v306 = vpop.permute.xlu0 %305
      %307 = vrot.lane.b32.xlu0 %v270, 119
      %v308 = vpop.permute.xlu0 %307
      %309 = vrot.lane.b32.xlu0 %v261, 119
      %v310 = vpop.permute.xlu0 %309
      %311 = vrot.lane.b32.xlu0 %v259, 119
      %v312 = vpop.permute.xlu0 %311
      %v313 = vsel %vm218, %v294, %v296
      %v314 = vsel %vm218, %v298, %v300
      %v315 = vsel %vm218, %v302, %v304
      %v316 = vsel %vm218, %v306, %v308
      %v317 = vsel %vm218, %v310, %v312
      %vm326 = vcmask 293888
      %v328 = vsel %vm326, %v271, 0
      %v331 = vsel %vm326, %v272, 0
      %v333 = vsel %vm262, %v317, 0
      %v335 = vsel %vm262, %v312, 0
      %337 = vmatpush.msra.mxu0 0.0
      %338 = vmatpush.msra.mxu0 0.0
      %339 = vmatpush.msra.mxu0 0.0
      %340 = vmatpush.msra.mxu0 0.0
      %341 = vmatpush.msra.mxu0 0.0
      %342 = vmatpush.msra.mxu0 0.0
      %343 = vmatpush.msra.mxu0 0.0
      %344 = vmatpush.msra.mxu0 0.0
      %345 = vmatpush.msra.mxu0 0.0
      %346 = vmatpush.msra.mxu0 0.0
      %347 = vmatpush.msra.mxu0 0.0
      %348 = vmatpush.msra.mxu0 %v333
      %349 = vmatpush.msra.mxu0 %v316
      %350 = vmatpush.msra.mxu0 %v315
      %351 = vmatpush.msra.mxu0 %v314
      %352 = vmatpush.msra.mxu0 %v313
      %353 = vmatmul.f32.gmra.mxu0 %v328
      %v354 = vpop.f32.mrf.mxu0
      %v355 = vadd.f32 %v278, %v354
      %356 = vmatmul.f32.gmra.mxu0 %v331
      %v357 = vpop.f32.mrf.mxu0
      %v358 = vadd.f32 %v283, %v357
      %359 = vdwg.mxu0
      %360 = vmatpush.msra.mxu0 0.0
      %361 = vmatpush.msra.mxu0 0.0
      %362 = vmatpush.msra.mxu0 0.0
      %363 = vmatpush.msra.mxu0 0.0
      %364 = vmatpush.msra.mxu0 0.0
      %365 = vmatpush.msra.mxu0 0.0
      %366 = vmatpush.msra.mxu0 0.0
      %367 = vmatpush.msra.mxu0 0.0
      %368 = vmatpush.msra.mxu0 0.0
      %369 = vmatpush.msra.mxu0 0.0
      %370 = vmatpush.msra.mxu0 0.0
      %371 = vmatpush.msra.mxu0 %v335
      %372 = vmatpush.msra.mxu0 %v308
      %373 = vmatpush.msra.mxu0 %v304
      %374 = vmatpush.msra.mxu0 %v300
      %375 = vmatpush.msra.mxu0 %v296
      %376 = vmatmul.f32.gmra.mxu0 %v328
      %v377 = vpop.f32.mrf.mxu0
      %v378 = vadd.f32 %v278, %v377
      %379 = vmatmul.f32.gmra.mxu0 %v331
      %v380 = vpop.f32.mrf.mxu0
      %v381 = vadd.f32 %v283, %v380
      %382 = vdwg.mxu0
      %v383 = vmax.f32 %v355, 0.0
      %v384 = vmax.f32 %v378, 0.0
      %v385 = vmax.f32 %v358, 0.0
      %v386 = vmax.f32 %v381, 0.0
      %v387 = vadd.f32 %v383, 0.0
      %v388 = vadd.f32 %v384, 0.0
      %v389 = vadd.f32 %v385, 0.0
      %v390 = vadd.f32 %v386, 0.0
      %393 = vrot.lane.b32.xlu0 %v212, 127
      %v394 = vpop.permute.xlu0 %393
      %395 = vrot.lane.b32.xlu0 %v213, 127
      %v396 = vpop.permute.xlu0 %395
      %v397 = vsel %vm208, %v394, %v396
      %400 = vrot.lane.b32.xlu0 %v224, 127
      %v401 = vpop.permute.xlu0 %400
      %402 = vrot.lane.b32.xlu0 %v225, 127
      %v403 = vpop.permute.xlu0 %402
      %v404 = vsel %vm208, %v401, %v403
      %407 = vrot.lane.b32.xlu0 %v200, 119
      %v408 = vpop.permute.xlu0 %407
      %409 = vrot.lane.b32.xlu0 %v201, 119
      %v410 = vpop.permute.xlu0 %409
      %v411 = vsel %vm218, %v408, %v410
      %414 = vrot.lane.b32.xlu0 %v198, 118
      %v415 = vpop.permute.xlu0 %414
      %416 = vrot.lane.b32.xlu0 %v199, 118
      %v417 = vpop.permute.xlu0 %416
      %v418 = vsel %vm237, %v415, %v417
      %421 = vrot.lane.b32.xlu0 %v200, 118
      %v422 = vpop.permute.xlu0 %421
      %423 = vrot.lane.b32.xlu0 %v201, 118
      %v424 = vpop.permute.xlu0 %423
      %v425 = vsel %vm237, %v422, %v424
      %428 = vrot.lane.b32.xlu0 %v224, 110
      %v429 = vpop.permute.xlu0 %428
      %430 = vrot.lane.b32.xlu0 %v225, 110
      %v431 = vpop.permute.xlu0 %430
      %v432 = vsel %vm245, %v429, %v431
      %435 = vrot.lane.b32.xlu0 %v212, 109
      %v436 = vpop.permute.xlu0 %435
      %437 = vrot.lane.b32.xlu0 %v213, 109
      %v438 = vpop.permute.xlu0 %437
      %v439 = vsel %vm260, %v436, %v438
      %442 = vrot.lane.b32.xlu0 %v224, 109
      %v443 = vpop.permute.xlu0 %442
      %444 = vrot.lane.b32.xlu0 %v225, 109
      %v445 = vpop.permute.xlu0 %444
      %v446 = vsel %vm260, %v443, %v445
      %v447 = vsel %vm262, %v224, %v397
      %v448 = vsel %vm262, %v225, %v396
      %v449 = vsel %vm262, %v404, %v411
      %v450 = vsel %vm262, %v403, %v410
      %v451 = vsel %vm262, %v418, %v425
      %v452 = vsel %vm262, %v417, %v424
      %v453 = vsel %vm262, %v432, %v439
      %v454 = vsel %vm262, %v431, %v438
      %463 = vrot.lane.b32.xlu0 %v447, 119
      %v464 = vpop.permute.xlu0 %463
      %465 = vrot.lane.b32.xlu0 %v448, 119
      %v466 = vpop.permute.xlu0 %465
      %467 = vrot.lane.b32.xlu0 %v449, 119
      %v468 = vpop.permute.xlu0 %467
      %469 = vrot.lane.b32.xlu0 %v450, 119
      %v470 = vpop.permute.xlu0 %469
      %471 = vrot.lane.b32.xlu0 %v451, 119
      %v472 = vpop.permute.xlu0 %471
      %473 = vrot.lane.b32.xlu0 %v452, 119
      %v474 = vpop.permute.xlu0 %473
      %475 = vrot.lane.b32.xlu0 %v453, 119
      %v476 = vpop.permute.xlu0 %475
      %477 = vrot.lane.b32.xlu0 %v454, 119
      %v478 = vpop.permute.xlu0 %477
      %479 = vrot.lane.b32.xlu0 %v446, 119
      %v480 = vpop.permute.xlu0 %479
      %481 = vrot.lane.b32.xlu0 %v445, 119
      %v482 = vpop.permute.xlu0 %481
      %v483 = vsel %vm218, %v464, %v466
      %v484 = vsel %vm218, %v468, %v470
      %v485 = vsel %vm218, %v472, %v474
      %v486 = vsel %vm218, %v476, %v478
      %v487 = vsel %vm218, %v480, %v482
      %v496 = vsel %vm262, %v487, 0
      %v498 = vsel %vm262, %v482, 0
      %500 = vmatpush.msra.mxu0 0.0
      %501 = vmatpush.msra.mxu0 0.0
      %502 = vmatpush.msra.mxu0 0.0
      %503 = vmatpush.msra.mxu0 0.0
      %504 = vmatpush.msra.mxu0 0.0
      %505 = vmatpush.msra.mxu0 0.0
      %506 = vmatpush.msra.mxu0 0.0
      %507 = vmatpush.msra.mxu0 0.0
      %508 = vmatpush.msra.mxu0 0.0
      %509 = vmatpush.msra.mxu0 0.0
      %510 = vmatpush.msra.mxu0 0.0
      %511 = vmatpush.msra.mxu0 %v496
      %512 = vmatpush.msra.mxu0 %v486
      %513 = vmatpush.msra.mxu0 %v485
      %514 = vmatpush.msra.mxu0 %v484
      %515 = vmatpush.msra.mxu0 %v483
      %516 = vmatmul.f32.gmra.mxu0 %v328
      %v517 = vpop.f32.mrf.mxu0
      %v518 = vadd.f32 %v278, %v517
      %519 = vmatmul.f32.gmra.mxu0 %v331
      %v520 = vpop.f32.mrf.mxu0
      %v521 = vadd.f32 %v283, %v520
      %522 = vdwg.mxu0
      %523 = vmatpush.msra.mxu0 0.0
      %524 = vmatpush.msra.mxu0 0.0
      %525 = vmatpush.msra.mxu0 0.0
      %526 = vmatpush.msra.mxu0 0.0
      %527 = vmatpush.msra.mxu0 0.0
      %528 = vmatpush.msra.mxu0 0.0
      %529 = vmatpush.msra.mxu0 0.0
      %530 = vmatpush.msra.mxu0 0.0
      %531 = vmatpush.msra.mxu0 0.0
      %532 = vmatpush.msra.mxu0 0.0
      %533 = vmatpush.msra.mxu0 0.0
      %534 = vmatpush.msra.mxu0 %v498
      %535 = vmatpush.msra.mxu0 %v478
      %536 = vmatpush.msra.mxu0 %v474
      %537 = vmatpush.msra.mxu0 %v470
      %538 = vmatpush.msra.mxu0 %v466
      %539 = vmatmul.f32.gmra.mxu0 %v328
      %v540 = vpop.f32.mrf.mxu0
      %v541 = vadd.f32 %v278, %v540
      %542 = vmatmul.f32.gmra.mxu0 %v331
      %v543 = vpop.f32.mrf.mxu0
      %v544 = vadd.f32 %v283, %v543
      %545 = vdwg.mxu0
      %v546 = vmax.f32 %v518, 0.0
      %v547 = vmax.f32 %v541, 0.0
      %v548 = vmax.f32 %v521, 0.0
      %v549 = vmax.f32 %v544, 0.0
      %v550 = vadd.f32 %v387, %v546
      %v551 = vadd.f32 %v388, %v547
      %v552 = vadd.f32 %v389, %v548
      %v553 = vadd.f32 %v390, %v549
      %554 = vrot.lane.b32.xlu0 %v263, 110
      %v555 = vpop.permute.xlu0 %554
      %556 = vrot.lane.b32.xlu0 %v264, 110
      %v557 = vpop.permute.xlu0 %556
      %558 = vrot.lane.b32.xlu0 %v265, 110
      %v559 = vpop.permute.xlu0 %558
      %560 = vrot.lane.b32.xlu0 %v266, 110
      %v561 = vpop.permute.xlu0 %560
      %562 = vrot.lane.b32.xlu0 %v267, 110
      %v563 = vpop.permute.xlu0 %562
      %564 = vrot.lane.b32.xlu0 %v268, 110
      %v565 = vpop.permute.xlu0 %564
      %566 = vrot.lane.b32.xlu0 %v269, 110
      %v567 = vpop.permute.xlu0 %566
      %568 = vrot.lane.b32.xlu0 %v270, 110
      %v569 = vpop.permute.xlu0 %568
      %570 = vrot.lane.b32.xlu0 %v261, 110
      %v571 = vpop.permute.xlu0 %570
      %572 = vrot.lane.b32.xlu0 %v259, 110
      %v573 = vpop.permute.xlu0 %572
      %v574 = vsel %vm245, %v555, %v557
      %v575 = vsel %vm245, %v559, %v561
      %v576 = vsel %vm245, %v563, %v565
      %v577 = vsel %vm245, %v567, %v569
      %v578 = vsel %vm245, %v571, %v573
      %v587 = vsel %vm262, %v578, 0
      %v589 = vsel %vm262, %v573, 0
      %591 = vmatpush.msra.mxu0 0.0
      %592 = vmatpush.msra.mxu0 0.0
      %593 = vmatpush.msra.mxu0 0.0
      %594 = vmatpush.msra.mxu0 0.0
      %595 = vmatpush.msra.mxu0 0.0
      %596 = vmatpush.msra.mxu0 0.0
      %597 = vmatpush.msra.mxu0 0.0
      %598 = vmatpush.msra.mxu0 0.0
      %599 = vmatpush.msra.mxu0 0.0
      %600 = vmatpush.msra.mxu0 0.0
      %601 = vmatpush.msra.mxu0 0.0
      %602 = vmatpush.msra.mxu0 %v587
      %603 = vmatpush.msra.mxu0 %v577
      %604 = vmatpush.msra.mxu0 %v576
      %605 = vmatpush.msra.mxu0 %v575
      %606 = vmatpush.msra.mxu0 %v574
      %607 = vmatmul.f32.gmra.mxu0 %v328
      %v608 = vpop.f32.mrf.mxu0
      %v609 = vadd.f32 %v278, %v608
      %610 = vmatmul.f32.gmra.mxu0 %v331
      %v611 = vpop.f32.mrf.mxu0
      %v612 = vadd.f32 %v283, %v611
      %613 = vdwg.mxu0
      %614 = vmatpush.msra.mxu0 0.0
      %615 = vmatpush.msra.mxu0 0.0
      %616 = vmatpush.msra.mxu0 0.0
      %617 = vmatpush.msra.mxu0 0.0
      %618 = vmatpush.msra.mxu0 0.0
      %619 = vmatpush.msra.mxu0 0.0
      %620 = vmatpush.msra.mxu0 0.0
      %621 = vmatpush.msra.mxu0 0.0
      %622 = vmatpush.msra.mxu0 0.0
      %623 = vmatpush.msra.mxu0 0.0
      %624 = vmatpush.msra.mxu0 0.0
      %625 = vmatpush.msra.mxu0 %v589
      %626 = vmatpush.msra.mxu0 %v569
      %627 = vmatpush.msra.mxu0 %v565
      %628 = vmatpush.msra.mxu0 %v561
      %629 = vmatpush.msra.mxu0 %v557
      %630 = vmatmul.f32.gmra.mxu0 %v328
      %v631 = vpop.f32.mrf.mxu0
      %v632 = vadd.f32 %v278, %v631
      %633 = vmatmul.f32.gmra.mxu0 %v331
      %v634 = vpop.f32.mrf.mxu0
      %v635 = vadd.f32 %v283, %v634
      %636 = vdwg.mxu0
      %v637 = vmax.f32 %v609, 0.0
      %v638 = vmax.f32 %v632, 0.0
      %v639 = vmax.f32 %v612, 0.0
      %v640 = vmax.f32 %v635, 0.0
      %v641 = vadd.f32 %v550, %v637
      %v642 = vadd.f32 %v551, %v638
      %v643 = vadd.f32 %v552, %v639
      %v644 = vadd.f32 %v553, %v640
      %645 = vrot.lane.b32.xlu0 %v447, 110
      %v646 = vpop.permute.xlu0 %645
      %647 = vrot.lane.b32.xlu0 %v448, 110
      %v648 = vpop.permute.xlu0 %647
      %649 = vrot.lane.b32.xlu0 %v449, 110
      %v650 = vpop.permute.xlu0 %649
      %651 = vrot.lane.b32.xlu0 %v450, 110
      %v652 = vpop.permute.xlu0 %651
      %653 = vrot.lane.b32.xlu0 %v451, 110
      %v654 = vpop.permute.xlu0 %653
      %655 = vrot.lane.b32.xlu0 %v452, 110
      %v656 = vpop.permute.xlu0 %655
      %657 = vrot.lane.b32.xlu0 %v453, 110
      %v658 = vpop.permute.xlu0 %657
      %659 = vrot.lane.b32.xlu0 %v454, 110
      %v660 = vpop.permute.xlu0 %659
      %661 = vrot.lane.b32.xlu0 %v446, 110
      %v662 = vpop.permute.xlu0 %661
      %663 = vrot.lane.b32.xlu0 %v445, 110
      %v664 = vpop.permute.xlu0 %663
      %v665 = vsel %vm245, %v646, %v648
      %v666 = vsel %vm245, %v650, %v652
      %v667 = vsel %vm245, %v654, %v656
      %v668 = vsel %vm245, %v658, %v660
      %v669 = vsel %vm245, %v662, %v664
      %v678 = vsel %vm262, %v669, 0
      %v680 = vsel %vm262, %v664, 0
      %682 = vmatpush.msra.mxu0 0.0
      %683 = vmatpush.msra.mxu0 0.0
      %684 = vmatpush.msra.mxu0 0.0
      %685 = vmatpush.msra.mxu0 0.0
      %686 = vmatpush.msra.mxu0 0.0
      %687 = vmatpush.msra.mxu0 0.0
      %688 = vmatpush.msra.mxu0 0.0
      %689 = vmatpush.msra.mxu0 0.0
      %690 = vmatpush.msra.mxu0 0.0
      %691 = vmatpush.msra.mxu0 0.0
      %692 = vmatpush.msra.mxu0 0.0
      %693 = vmatpush.msra.mxu0 %v678
      %694 = vmatpush.msra.mxu0 %v668
      %695 = vmatpush.msra.mxu0 %v667
      %696 = vmatpush.msra.mxu0 %v666
      %697 = vmatpush.msra.mxu0 %v665
      %698 = vmatmul.f32.gmra.mxu0 %v328
      %v699 = vpop.f32.mrf.mxu0
      %v700 = vadd.f32 %v278, %v699
      %701 = vmatmul.f32.gmra.mxu0 %v331
      %v702 = vpop.f32.mrf.mxu0
      %v703 = vadd.f32 %v283, %v702
      %704 = vdwg.mxu0
      %705 = vmatpush.msra.mxu0 0.0
      %706 = vmatpush.msra.mxu0 0.0
      %707 = vmatpush.msra.mxu0 0.0
      %708 = vmatpush.msra.mxu0 0.0
      %709 = vmatpush.msra.mxu0 0.0
      %710 = vmatpush.msra.mxu0 0.0
      %711 = vmatpush.msra.mxu0 0.0
      %712 = vmatpush.msra.mxu0 0.0
      %713 = vmatpush.msra.mxu0 0.0
      %714 = vmatpush.msra.mxu0 0.0
      %715 = vmatpush.msra.mxu0 0.0
      %716 = vmatpush.msra.mxu0 %v680
      %717 = vmatpush.msra.mxu0 %v660
      %718 = vmatpush.msra.mxu0 %v656
      %719 = vmatpush.msra.mxu0 %v652
      %720 = vmatpush.msra.mxu0 %v648
      %721 = vmatmul.f32.gmra.mxu0 %v328
      %v722 = vpop.f32.mrf.mxu0
      %v723 = vadd.f32 %v278, %v722
      %724 = vmatmul.f32.gmra.mxu0 %v331
      %v725 = vpop.f32.mrf.mxu0
      %v726 = vadd.f32 %v283, %v725
      %727 = vdwg.mxu0
      %v728 = vmax.f32 %v700, 0.0
      %v729 = vmax.f32 %v723, 0.0
      %v730 = vmax.f32 %v703, 0.0
      %v731 = vmax.f32 %v726, 0.0
      %v732 = vadd.f32 %v641, %v728
      %v733 = vadd.f32 %v642, %v729
      %v734 = vadd.f32 %v643, %v730
      %v735 = vadd.f32 %v644, %v731
      %v736 = vmul.f32 %v732, 0.25
      %v737 = vmul.f32 %v733, 0.25
      %v738 = vmul.f32 %v734, 0.25
      %v739 = vmul.f32 %v735, 0.25
      %v740 = vld [vmem:[%s3] sm:$0x3]
      %v742 = vperm.slane %v740, 0
      %v743 = vperm.slane %v740, 1
      %v746 = vmul.f32 %v736, %v742
      %v747 = vmul.f32 %v737, %v743
      %v748 = vmul.f32 %v738, %v742
      %v749 = vmul.f32 %v739, %v743
      %754 = vrot.lane.b32.xlu0 %v746, 36
      %v755 = vpop.permute.xlu0 %754
      %756 = vrot.lane.b32.xlu0 %v747, 36
      %v757 = vpop.permute.xlu0 %756
      %758 = vrot.lane.b32.xlu0 %v748, 36
      %v759 = vpop.permute.xlu0 %758
      %760 = vrot.lane.b32.xlu0 %v749, 36
      %v761 = vpop.permute.xlu0 %760
      %v762 = vsel %vm326, %v755, %v757
      %v763 = vsel %vm326, %v759, %v761
      %v768 = vsel %vm326, 0.0, %v755
      %v769 = vsel %vm326, 0.0, %v759
      %vm770 = vcmask 424960
      %v771 = vsel %vm770, %v762, 0.0
      %v772 = vsel %vm770, %v763, 0.0
      %773 = vst [vmem:[%s197] sm:$0xff] %v768
      %774 = vst [vmem:[%s197 + $0x8] sm:$0xff] %v771
      %775 = vst [vmem:[%s197 + $0x10] sm:$0xff] %v769
      %776 = vst [vmem:[%s197 + $0x18] sm:$0xff] %v772
      %p777 = scmp.lt.s32.totalorder %s15, 1
      %s778 = scalar_select %p777, %s15, 1
      %s779 = smul.addr %s778, 4
      %s780 = smul.addr %s779, 8
      %s781 = scalar_lea.vmem %s4, %s780
      // Predicated region
      $region37: #{scale_aware_adapt_forward.3} parent=35 // pred_check
        %p782 = pneg %p122
      $region38: #{scale_aware_adapt_forward.3} parent=35 // pred_check_branch
        %784 = sbr.rel (%p782) target = $region40
      $region39: #{scale_aware_adapt_forward.3} parent=35 // pred_region
        _
      $region40: #{scale_aware_adapt_forward.3} parent=35 // pred_fallthru
        _
    $region36: #{scale_aware_adapt_forward.3} parent=5 // pred_fallthru
      _
    %p785 = scmp.le.s32.totalorder 2, %s10
    // Predicated region
    $region41: #{scale_aware_adapt_forward.3} parent=5 // pred_check
      %p786 = pneg %p785
    $region42: #{scale_aware_adapt_forward.3} parent=5 // pred_check_branch
      %788 = sbr.rel (%p786) target = $region44
    $region43: #{scale_aware_adapt_forward.3} parent=5 // pred_region
      %s789 = ssub.s32 %s10, 2
      // Predicated region
      $region45: #{scale_aware_adapt_forward.3} parent=43 // pred_check
        %p790 = pneg %p128
      $region46: #{scale_aware_adapt_forward.3} parent=43 // pred_check_branch
        %792 = sbr.rel (%p790) target = $region48
      $region47: #{scale_aware_adapt_forward.3} parent=43 // pred_region
        %p793 = scmp.lt.s32.totalorder %s16, 1
        %s794 = scalar_select %p793, %s16, 1
        %s795 = smul.addr %s794, 4
        %s796 = smul.addr %s795, 8
        %s797 = scalar_lea.vmem %s4, %s796
      $region48: #{scale_aware_adapt_forward.3} parent=43 // pred_fallthru
        _
    $region44: #{scale_aware_adapt_forward.3} parent=5 // pred_fallthru
      _
  $region6: #{scale_aware_adapt_forward.3} parent=0 // loop_footer
    %s14 = sadd.s32 1, %s10
  $region7: #{scale_aware_adapt_forward.3} parent=0 // loop_footer_branch
    %9 = sbr.rel target = $region3
  $region8: #{scale_aware_adapt_forward.3} parent=0 // loop_exit
    _

// kernel: scale_aware_adapt_forward.4
$region0: #{scale_aware_adapt_forward.4}
  #allocation0 [shape = 'u32[]', space=smem, size = 0x4, offset = 0x4, fixed_abs, tag = 'smem constant byte address 0x4 - core index']
  #allocation1 [shape = 'u32[72,128]{1,0:T(1,128)}', space=vmem, size = 0x9000, scoped, tag = 'internal scratch']
  %s0 = inlined_call_operand.vmem [shape: f32[2,16,256], index: 0, kind: input, shape index: {}]
  %s1 = inlined_call_operand.vmem [shape: f32[16,144], index: 1, kind: input, shape index: {}]
  %s2 = inlined_call_operand.vmem [shape: f32[16,1], index: 2, kind: input, shape index: {}]
  %s3 = inlined_call_operand.vmem [shape: f32[16,144], index: 3, kind: input, shape index: {}]
  %s4 = inlined_call_operand.vmem [shape: f32[16,1], index: 4, kind: input, shape index: {}]
  %s5 = inlined_call_operand.vmem [shape: f32[1,144], index: 5, kind: input, shape index: {}]
  %s6 = inlined_call_operand.vmem [shape: f32[2,16,256], index: 6, kind: output, shape index: {}]
  %s7 = sld [smem:[#allocation0]]
  $region57: #{scale_aware_adapt_forward.4} parent=0
    _
  %s9 = ssub.s32 1, %s7
  %s10 = scalar_select 0, %s9, %s7
  loop: start=0, step=1, limit=4
  $region2: #{scale_aware_adapt_forward.4} parent=0 // loop_pre_header
    _
  $region3: #{scale_aware_adapt_forward.4} parent=0 // loop_header
    %s12 = sphi 0, %s16
    %p13 = scmp.ge.s32.totalorder %s12, 4
    %s22 = sphi 0, %s24
    %s25 = sphi 0, %s22
    %s26 = sphi 0, %s25
    %s42 = sphi 0, %s26
    %s46 = sphi 0, %s46
    %s48 = sphi 0, %s46
    %s49 = sphi 0, %s48
    %s63 = sphi 0, %s49
    %s67 = sphi 0, %s67
    %s69 = sphi 0, %s67
    %s70 = sphi 0, %s69
    %s84 = sphi 0, %s70
    %s88 = sphi 0, %s88
    %s90 = sphi 0, %s88
    %s91 = sphi 0, %s90
    %s105 = sphi 0, %s91
    %s109 = sphi 0, %s109
    %s111 = sphi 0, %s109
    %s112 = sphi 0, %s111
    %s126 = sphi 0, %s112
    %s130 = sphi 0, %s130
    %s132 = sphi 0, %s130
    %s133 = sphi 0, %s132
    %s147 = sphi 0, %s133
    %s153 = sphi 0, %s155
    %s156 = sphi 0, %s153
    %s157 = sphi 0, %s156
    %s173 = sphi 0, %s157
  $region4: #{scale_aware_adapt_forward.4} parent=0 // loop_header_branch
    %15 = sbr.rel (%p13) target = $region8
  $region5: #{scale_aware_adapt_forward.4} parent=0 // loop_body
    %s17 = ssub.s32 %s12, 1
    %s18 = ssub.s32 %s12, 2
    %s19 = sadd.s32 %s12, 1
    %s20 = ssub.s32 %s12, %s19
    %p21 = scmp.eq.s32.totalorder %s20, 0
    %s23 = sadd.s32 %s22, 1
    %s24 = scalar_select %p21, %s22, %s23
    %p27 = pneg %p21
    %p28 = scmp.eq.s32.totalorder %s12, 1
    %p29 = por %p27, %p28
    %p30 = scmp.ne.s32.totalorder %s22, %s25
    %p31 = scmp.eq.s32.totalorder %s12, 0
    %p32 = por %p30, %p31
    %p33 = scmp.ne.s32.totalorder %s22, %s25
    %p34 = scmp.eq.s32.totalorder %s17, 1
    %p35 = por %p33, %p34
    %p36 = scmp.ne.s32.totalorder %s25, %s26
    %p37 = scmp.eq.s32.totalorder %s17, 0
    %p38 = por %p36, %p37
    %p39 = scmp.ne.s32.totalorder %s25, %s26
    %p40 = scmp.eq.s32.totalorder %s18, 1
    %p41 = por %p39, %p40
    %p43 = scmp.ne.s32.totalorder %s26, %s42
    %p44 = scmp.eq.s32.totalorder %s18, 0
    %p45 = por %p43, %p44
    %s47 = sadd.s32 %s46, 1
    %p50 = scmp.eq.s32.totalorder %s12, 1
    %p51 = scmp.ne.s32.totalorder %s46, %s48
    %p52 = scmp.eq.s32.totalorder %s12, 0
    %p53 = por %p51, %p52
    %p54 = scmp.ne.s32.totalorder %s46, %s48
    %p55 = scmp.eq.s32.totalorder %s17, 1
    %p56 = por %p54, %p55
    %p57 = scmp.ne.s32.totalorder %s48, %s49
    %p58 = scmp.eq.s32.totalorder %s17, 0
    %p59 = por %p57, %p58
    %p60 = scmp.ne.s32.totalorder %s48, %s49
    %p61 = scmp.eq.s32.totalorder %s18, 1
    %p62 = por %p60, %p61
    %p64 = scmp.ne.s32.totalorder %s49, %s63
    %p65 = scmp.eq.s32.totalorder %s18, 0
    %p66 = por %p64, %p65
    %s68 = sadd.s32 %s67, 1
    %p71 = scmp.eq.s32.totalorder %s12, 1
    %p72 = scmp.ne.s32.totalorder %s67, %s69
    %p73 = scmp.eq.s32.totalorder %s12, 0
    %p74 = por %p72, %p73
    %p75 = scmp.ne.s32.totalorder %s67, %s69
    %p76 = scmp.eq.s32.totalorder %s17, 1
    %p77 = por %p75, %p76
    %p78 = scmp.ne.s32.totalorder %s69, %s70
    %p79 = scmp.eq.s32.totalorder %s17, 0
    %p80 = por %p78, %p79
    %p81 = scmp.ne.s32.totalorder %s69, %s70
    %p82 = scmp.eq.s32.totalorder %s18, 1
    %p83 = por %p81, %p82
    %p85 = scmp.ne.s32.totalorder %s70, %s84
    %p86 = scmp.eq.s32.totalorder %s18, 0
    %p87 = por %p85, %p86
    %s89 = sadd.s32 %s88, 1
    %p92 = scmp.eq.s32.totalorder %s12, 1
    %p93 = scmp.ne.s32.totalorder %s88, %s90
    %p94 = scmp.eq.s32.totalorder %s12, 0
    %p95 = por %p93, %p94
    %p96 = scmp.ne.s32.totalorder %s88, %s90
    %p97 = scmp.eq.s32.totalorder %s17, 1
    %p98 = por %p96, %p97
    %p99 = scmp.ne.s32.totalorder %s90, %s91
    %p100 = scmp.eq.s32.totalorder %s17, 0
    %p101 = por %p99, %p100
    %p102 = scmp.ne.s32.totalorder %s90, %s91
    %p103 = scmp.eq.s32.totalorder %s18, 1
    %p104 = por %p102, %p103
    %p106 = scmp.ne.s32.totalorder %s91, %s105
    %p107 = scmp.eq.s32.totalorder %s18, 0
    %p108 = por %p106, %p107
    %s110 = sadd.s32 %s109, 1
    %p113 = scmp.eq.s32.totalorder %s12, 1
    %p114 = scmp.ne.s32.totalorder %s109, %s111
    %p115 = scmp.eq.s32.totalorder %s12, 0
    %p116 = por %p114, %p115
    %p117 = scmp.ne.s32.totalorder %s109, %s111
    %p118 = scmp.eq.s32.totalorder %s17, 1
    %p119 = por %p117, %p118
    %p120 = scmp.ne.s32.totalorder %s111, %s112
    %p121 = scmp.eq.s32.totalorder %s17, 0
    %p122 = por %p120, %p121
    %p123 = scmp.ne.s32.totalorder %s111, %s112
    %p124 = scmp.eq.s32.totalorder %s18, 1
    %p125 = por %p123, %p124
    %p127 = scmp.ne.s32.totalorder %s112, %s126
    %p128 = scmp.eq.s32.totalorder %s18, 0
    %p129 = por %p127, %p128
    %s131 = sadd.s32 %s130, 1
    %p134 = scmp.eq.s32.totalorder %s12, 1
    %p135 = scmp.ne.s32.totalorder %s130, %s132
    %p136 = scmp.eq.s32.totalorder %s12, 0
    %p137 = por %p135, %p136
    %p138 = scmp.ne.s32.totalorder %s130, %s132
    %p139 = scmp.eq.s32.totalorder %s17, 1
    %p140 = por %p138, %p139
    %p141 = scmp.ne.s32.totalorder %s132, %s133
    %p142 = scmp.eq.s32.totalorder %s17, 0
    %p143 = por %p141, %p142
    %p144 = scmp.ne.s32.totalorder %s132, %s133
    %p145 = scmp.eq.s32.totalorder %s18, 1
    %p146 = por %p144, %p145
    %p148 = scmp.ne.s32.totalorder %s133, %s147
    %p149 = scmp.eq.s32.totalorder %s18, 0
    %p150 = por %p148, %p149
    %s151 = ssub.s32 %s12, %s19
    %p152 = scmp.eq.s32.totalorder %s151, 0
    %s154 = sadd.s32 %s153, 1
    %s155 = scalar_select %p152, %s153, %s154
    %p158 = pneg %p152
    %p159 = scmp.eq.s32.totalorder %s12, 1
    %p160 = por %p158, %p159
    %p161 = scmp.ne.s32.totalorder %s153, %s156
    %p162 = scmp.eq.s32.totalorder %s12, 0
    %p163 = por %p161, %p162
    %p164 = scmp.ne.s32.totalorder %s153, %s156
    %p165 = scmp.eq.s32.totalorder %s17, 1
    %p166 = por %p164, %p165
    %p167 = scmp.ne.s32.totalorder %s156, %s157
    %p168 = scmp.eq.s32.totalorder %s17, 0
    %p169 = por %p167, %p168
    %p170 = scmp.ne.s32.totalorder %s156, %s157
    %p171 = scmp.eq.s32.totalorder %s18, 1
    %p172 = por %p170, %p171
    %p174 = scmp.ne.s32.totalorder %s157, %s173
    %p175 = scmp.eq.s32.totalorder %s18, 0
    %p176 = por %p174, %p175
    %p177 = scmp.le.s32.totalorder 1, %s12
    %p178 = scmp.lt.s32.totalorder %s12, 3
    %p179 = pnand %p177, %p178
    %p180 = pneg %p179
    // Predicated region
    $region9: #{scale_aware_adapt_forward.4} parent=5 // pred_check
      _
    $region10: #{scale_aware_adapt_forward.4} parent=5 // pred_check_branch
      %182 = sbr.rel (%p179) target = $region12
    $region11: #{scale_aware_adapt_forward.4} parent=5 // pred_region
      %s183 = ssub.s32 %s12, 1
      // Predicated region
      $region13: #{scale_aware_adapt_forward.4} parent=11 // pred_check
        %p184 = pneg %p59
      $region14: #{scale_aware_adapt_forward.4} parent=11 // pred_check_branch
        %186 = sbr.rel (%p184) target = $region16
      $region15: #{scale_aware_adapt_forward.4} parent=11 // pred_region
        _
      $region16: #{scale_aware_adapt_forward.4} parent=11 // pred_fallthru
        _
      // Predicated region
      $region17: #{scale_aware_adapt_forward.4} parent=11 // pred_check
        %p187 = pneg %p80
      $region18: #{scale_aware_adapt_forward.4} parent=11 // pred_check_branch
        %189 = sbr.rel (%p187) target = $region20
      $region19: #{scale_aware_adapt_forward.4} parent=11 // pred_region
        _
      $region20: #{scale_aware_adapt_forward.4} parent=11 // pred_fallthru
        _
      // Predicated region
      $region21: #{scale_aware_adapt_forward.4} parent=11 // pred_check
        %p190 = pneg %p101
      $region22: #{scale_aware_adapt_forward.4} parent=11 // pred_check_branch
        %192 = sbr.rel (%p190) target = $region24
      $region23: #{scale_aware_adapt_forward.4} parent=11 // pred_region
        _
      $region24: #{scale_aware_adapt_forward.4} parent=11 // pred_fallthru
        _
      // Predicated region
      $region25: #{scale_aware_adapt_forward.4} parent=11 // pred_check
        %p193 = pneg %p122
      $region26: #{scale_aware_adapt_forward.4} parent=11 // pred_check_branch
        %195 = sbr.rel (%p193) target = $region28
      $region27: #{scale_aware_adapt_forward.4} parent=11 // pred_region
        _
      $region28: #{scale_aware_adapt_forward.4} parent=11 // pred_fallthru
        _
      // Predicated region
      $region29: #{scale_aware_adapt_forward.4} parent=11 // pred_check
        %p196 = pneg %p143
      $region30: #{scale_aware_adapt_forward.4} parent=11 // pred_check_branch
        %198 = sbr.rel (%p196) target = $region32
      $region31: #{scale_aware_adapt_forward.4} parent=11 // pred_region
        _
      $region32: #{scale_aware_adapt_forward.4} parent=11 // pred_fallthru
        _
    $region12: #{scale_aware_adapt_forward.4} parent=5 // pred_fallthru
      _
    %p199 = scmp.lt.s32.totalorder %s12, 2
    // Predicated region
    $region33: #{scale_aware_adapt_forward.4} parent=5 // pred_check
      %p200 = pneg %p199
    $region34: #{scale_aware_adapt_forward.4} parent=5 // pred_check_branch
      %202 = sbr.rel (%p200) target = $region36
    $region35: #{scale_aware_adapt_forward.4} parent=5 // pred_region
      // Predicated region
      $region37: #{scale_aware_adapt_forward.4} parent=35 // pred_check
        %p203 = pneg %p32
      $region38: #{scale_aware_adapt_forward.4} parent=35 // pred_check_branch
        %205 = sbr.rel (%p203) target = $region40
      $region39: #{scale_aware_adapt_forward.4} parent=35 // pred_region
        %p206 = scmp.lt.s32.totalorder %s12, 1
        %s207 = scalar_select %p206, %s12, 1
        %s208 = smul.addr %s207, 4
        %s209 = smul.addr %s208, 8
        %s210 = scalar_lea.vmem %s0, %s209
      $region40: #{scale_aware_adapt_forward.4} parent=35 // pred_fallthru
        _
    $region36: #{scale_aware_adapt_forward.4} parent=5 // pred_fallthru
      _
    %p211 = scmp.le.s32.totalorder 1, %s12
    %p212 = scmp.lt.s32.totalorder %s12, 3
    %p213 = pnand %p211, %p212
    %p214 = pneg %p213
    // Predicated region
    $region41: #{scale_aware_adapt_forward.4} parent=5 // pred_check
      _
    $region42: #{scale_aware_adapt_forward.4} parent=5 // pred_check_branch
      %216 = sbr.rel (%p213) target = $region44
    $region43: #{scale_aware_adapt_forward.4} parent=5 // pred_region
      %s217 = ssub.s32 %s12, 1
      %p218 = scmp.lt.s32.totalorder %s17, 1
      %s219 = scalar_select %p218, %s17, 1
      %s220 = smul.addr %s219, 4
      %s221 = smul.addr %s220, 8
      %s222 = scalar_lea.vmem %s0, %s221
      %p223 = pneg %p38
      %p224 = pneg %p35
      %p225 = pneg %p59
      %p226 = pneg %p56
      %p227 = pneg %p80
      %p228 = pneg %p77
      %p229 = pneg %p101
      %p230 = pneg %p98
      %p231 = pneg %p122
      %p232 = pneg %p119
      %p233 = pneg %p143
      %p234 = pneg %p140
      %p235 = pneg %p169
      %p236 = pneg %p166
      %p237 = scmp.lt.s32.totalorder %s17, 1
      %s238 = scalar_select %p237, %s17, 1
      %s239 = smul.addr %s238, 4
      %s240 = smul.addr %s239, 8
      %s241 = scalar_lea.vmem %s6, %s240
      %p242 = scmp.lt.s32.totalorder %s17, 1
      %s243 = scalar_select %p242, %s17, 1
      %s244 = smul.addr %s243, 4
      %s245 = smul.addr %s244, 8
      %s246 = scalar_lea.vmem %s0, %s245
      %p247 = scmp.lt.s32.totalorder %s17, 1
      %s248 = scalar_select %p247, %s17, 1
      %s249 = smul.addr %s248, 4
      %s250 = smul.addr %s249, 8
      %s251 = scalar_lea.vmem %s6, %s250
      %v252 = vld [vmem:[%s246] sm:$0xff]
      %v253 = vld [vmem:[%s246 + $0x8] sm:$0xff]
      %v254 = vld [vmem:[%s246 + $0x10] sm:$0xff]
      %v255 = vld [vmem:[%s246 + $0x18] sm:$0xff]
      %260 = vrot.lane.b32.xlu0 %v252, 127
      %v261 = vpop.permute.xlu0 %260
      %262 = vrot.lane.b32.xlu0 %v253, 127
      %v263 = vpop.permute.xlu0 %262
      %264 = vrot.lane.b32.xlu0 %v254, 127
      %v265 = vpop.permute.xlu0 %264
      %266 = vrot.lane.b32.xlu0 %v255, 127
      %v267 = vpop.permute.xlu0 %266
      %vm268 = vcmask 1039360
      %v269 = vsel %vm268, %v261, %v263
      %v270 = vsel %vm268, %v265, %v267
      %271 = vrot.lane.b32.xlu0 %v252, 126
      %v272 = vpop.permute.xlu0 %271
      %273 = vrot.lane.b32.xlu0 %v253, 126
      %v274 = vpop.permute.xlu0 %273
      %275 = vrot.lane.b32.xlu0 %v254, 126
      %v276 = vpop.permute.xlu0 %275
      %277 = vrot.lane.b32.xlu0 %v255, 126
      %v278 = vpop.permute.xlu0 %277
      %vm279 = vcmask 1031168
      %v280 = vsel %vm279, %v272, %v274
      %v281 = vsel %vm279, %v276, %v278
      %282 = vrot.lane.b32.xlu0 %v252, 110
      %v283 = vpop.permute.xlu0 %282
      %284 = vrot.lane.b32.xlu0 %v253, 110
      %v285 = vpop.permute.xlu0 %284
      %286 = vrot.lane.b32.xlu0 %v254, 110
      %v287 = vpop.permute.xlu0 %286
      %288 = vrot.lane.b32.xlu0 %v255, 110
      %v289 = vpop.permute.xlu0 %288
      %vm290 = vcmask 900096
      %v291 = vsel %vm290, %v283, %v285
      %v292 = vsel %vm290, %v287, %v289
      %293 = vrot.lane.b32.xlu0 %v252, 109
      %v294 = vpop.permute.xlu0 %293
      %295 = vrot.lane.b32.xlu0 %v253, 109
      %v296 = vpop.permute.xlu0 %295
      %297 = vrot.lane.b32.xlu0 %v254, 109
      %v298 = vpop.permute.xlu0 %297
      %299 = vrot.lane.b32.xlu0 %v255, 109
      %v300 = vpop.permute.xlu0 %299
      %vm301 = vcmask 891904
      %v302 = vsel %vm301, %v294, %v296
      %v303 = vsel %vm301, %v298, %v300
      %304 = vrot.lane.b32.xlu0 %v252, 108
      %v305 = vpop.permute.xlu0 %304
      %306 = vrot.lane.b32.xlu0 %v253, 108
      %v307 = vpop.permute.xlu0 %306
      %308 = vrot.lane.b32.xlu0 %v254, 108
      %v309 = vpop.permute.xlu0 %308
      %310 = vrot.lane.b32.xlu0 %v255, 108
      %v311 = vpop.permute.xlu0 %310
      %vm312 = vcmask 883712
      %v313 = vsel %vm312, %v305, %v307
      %v314 = vsel %vm312, %v309, %v311
      %315 = vrot.lane.b32.xlu0 %v252, 92
      %v316 = vpop.permute.xlu0 %315
      %317 = vrot.lane.b32.xlu0 %v253, 92
      %v318 = vpop.permute.xlu0 %317
      %319 = vrot.lane.b32.xlu0 %v254, 92
      %v320 = vpop.permute.xlu0 %319
      %321 = vrot.lane.b32.xlu0 %v255, 92
      %v322 = vpop.permute.xlu0 %321
      %vm323 = vcmask 752640
      %v324 = vsel %vm323, %v316, %v318
      %v325 = vsel %vm323, %v320, %v322
      %326 = vrot.lane.b32.xlu0 %v252, 91
      %v327 = vpop.permute.xlu0 %326
      %328 = vrot.lane.b32.xlu0 %v253, 91
      %v329 = vpop.permute.xlu0 %328
      %330 = vrot.lane.b32.xlu0 %v254, 91
      %v331 = vpop.permute.xlu0 %330
      %332 = vrot.lane.b32.xlu0 %v255, 91
      %v333 = vpop.permute.xlu0 %332
      %vm334 = vcmask 744448
      %v335 = vsel %vm334, %v327, %v329
      %v336 = vsel %vm334, %v331, %v333
      %337 = vrot.lane.b32.xlu0 %v252, 90
      %v338 = vpop.permute.xlu0 %337
      %339 = vrot.lane.b32.xlu0 %v253, 90
      %v340 = vpop.permute.xlu0 %339
      %341 = vrot.lane.b32.xlu0 %v254, 90
      %v342 = vpop.permute.xlu0 %341
      %343 = vrot.lane.b32.xlu0 %v255, 90
      %v344 = vpop.permute.xlu0 %343
      %vm345 = vcmask 736256
      %v346 = vsel %vm345, %v338, %v340
      %v347 = vsel %vm345, %v342, %v344
      %v348 = vld [vmem:[%s1] sm:$0xff]
      %v349 = vld [vmem:[%s1 + $0x8] sm:$0xff]
      %v350 = vld [vmem:[%s1 + $0x10] sm:$0xff]
      %v351 = vld [vmem:[%s1 + $0x18] sm:$0xff]
      %v352 = vld [vmem:[%s2] sm:$0xff]
      %v353 = vld [vmem:[%s2 + $0x8] sm:$0xff]
      %355 = vset.pattern.permute.xlu0 0
      %356 = vperm.xlu0 %355, %v352
      %v357 = vpop.permute.xlu0 %356
      %360 = vset.pattern.permute.xlu0 0
      %361 = vperm.xlu0 %360, %v353
      %v362 = vpop.permute.xlu0 %361
      %364 = vrot.lane.b32.xlu0 %v252, 111
      %v365 = vpop.permute.xlu0 %364
      %366 = vrot.lane.b32.xlu0 %v253, 111
      %v367 = vpop.permute.xlu0 %366
      %368 = vrot.lane.b32.xlu0 %v254, 111
      %v369 = vpop.permute.xlu0 %368
      %370 = vrot.lane.b32.xlu0 %v255, 111
      %v371 = vpop.permute.xlu0 %370
      %372 = vrot.lane.b32.xlu0 %v269, 111
      %v373 = vpop.permute.xlu0 %372
      %374 = vrot.lane.b32.xlu0 %v263, 111
      %v375 = vpop.permute.xlu0 %374
      %376 = vrot.lane.b32.xlu0 %v270, 111
      %v377 = vpop.permute.xlu0 %376
      %378 = vrot.lane.b32.xlu0 %v267, 111
      %v379 = vpop.permute.xlu0 %378
      %380 = vrot.lane.b32.xlu0 %v280, 111
      %v381 = vpop.permute.xlu0 %380
      %382 = vrot.lane.b32.xlu0 %v274, 111
      %v383 = vpop.permute.xlu0 %382
      %384 = vrot.lane.b32.xlu0 %v281, 111
      %v385 = vpop.permute.xlu0 %384
      %386 = vrot.lane.b32.xlu0 %v278, 111
      %v387 = vpop.permute.xlu0 %386
      %388 = vrot.lane.b32.xlu0 %v291, 111
      %v389 = vpop.permute.xlu0 %388
      %390 = vrot.lane.b32.xlu0 %v285, 111
      %v391 = vpop.permute.xlu0 %390
      %392 = vrot.lane.b32.xlu0 %v292, 111
      %v393 = vpop.permute.xlu0 %392
      %394 = vrot.lane.b32.xlu0 %v289, 111
      %v395 = vpop.permute.xlu0 %394
      %396 = vrot.lane.b32.xlu0 %v302, 111
      %v397 = vpop.permute.xlu0 %396
      %398 = vrot.lane.b32.xlu0 %v296, 111
      %v399 = vpop.permute.xlu0 %398
      %400 = vrot.lane.b32.xlu0 %v303, 111
      %v401 = vpop.permute.xlu0 %400
      %402 = vrot.lane.b32.xlu0 %v300, 111
      %v403 = vpop.permute.xlu0 %402
      %404 = vrot.lane.b32.xlu0 %v313, 111
      %v405 = vpop.permute.xlu0 %404
      %406 = vrot.lane.b32.xlu0 %v307, 111
      %v407 = vpop.permute.xlu0 %406
      %408 = vrot.lane.b32.xlu0 %v314, 111
      %v409 = vpop.permute.xlu0 %408
      %410 = vrot.lane.b32.xlu0 %v311, 111
      %v411 = vpop.permute.xlu0 %410
      %412 = vrot.lane.b32.xlu0 %v324, 111
      %v413 = vpop.permute.xlu0 %412
      %414 = vrot.lane.b32.xlu0 %v318, 111
      %v415 = vpop.permute.xlu0 %414
      %416 = vrot.lane.b32.xlu0 %v325, 111
      %v417 = vpop.permute.xlu0 %416
      %418 = vrot.lane.b32.xlu0 %v322, 111
      %v419 = vpop.permute.xlu0 %418
      %420 = vrot.lane.b32.xlu0 %v335, 111
      %v421 = vpop.permute.xlu0 %420
      %422 = vrot.lane.b32.xlu0 %v329, 111
      %v423 = vpop.permute.xlu0 %422
      %424 = vrot.lane.b32.xlu0 %v336, 111
      %v425 = vpop.permute.xlu0 %424
      %426 = vrot.lane.b32.xlu0 %v333, 111
      %v427 = vpop.permute.xlu0 %426
      %428 = vrot.lane.b32.xlu0 %v346, 111
      %v429 = vpop.permute.xlu0 %428
      %430 = vrot.lane.b32.xlu0 %v340, 111
      %v431 = vpop.permute.xlu0 %430
      %432 = vrot.lane.b32.xlu0 %v347, 111
      %v433 = vpop.permute.xlu0 %432
      %434 = vrot.lane.b32.xlu0 %v344, 111
      %v435 = vpop.permute.xlu0 %434
      %vm436 = vcmask 908288
      %v437 = vsel %vm436, %v365, %v367
      %v438 = vsel %vm436, %v369, %v371
      %v439 = vsel %vm436, %v373, %v375
      %v440 = vsel %vm436, %v377, %v379
      %v441 = vsel %vm436, %v381, %v383
      %v442 = vsel %vm436, %v385, %v387
      %v443 = vsel %vm436, %v389, %v391
      %v444 = vsel %vm436, %v393, %v395
      %v445 = vsel %vm436, %v397, %v399
      %v446 = vsel %vm436, %v401, %v403
      %v447 = vsel %vm436, %v405, %v407
      %v448 = vsel %vm436, %v409, %v411
      %v449 = vsel %vm436, %v413, %v415
      %v450 = vsel %vm436, %v417, %v419
      %v451 = vsel %vm436, %v421, %v423
      %v452 = vsel %vm436, %v425, %v427
      %v453 = vsel %vm436, %v429, %v431
      %v454 = vsel %vm436, %v433, %v435
      %vm491 = vcmask 130048
      %v493 = vsel %vm491, %v349, 0
      %v496 = vsel %vm491, %v351, 0
      %498 = vmatpush.msra.mxu0 %v452
      %499 = vmatpush.msra.mxu0 %v451
      %500 = vmatpush.msra.mxu0 %v450
      %501 = vmatpush.msra.mxu0 %v449
      %502 = vmatpush.msra.mxu0 %v448
      %503 = vmatpush.msra.mxu0 %v447
      %504 = vmatpush.msra.mxu0 %v446
      %505 = vmatpush.msra.mxu0 %v445
      %506 = vmatpush.msra.mxu0 %v444
      %507 = vmatpush.msra.mxu0 %v443
      %508 = vmatpush.msra.mxu0 %v442
      %509 = vmatpush.msra.mxu0 %v441
      %510 = vmatpush.msra.mxu0 %v440
      %511 = vmatpush.msra.mxu0 %v439
      %512 = vmatpush.msra.mxu0 %v438
      %513 = vmatpush.msra.mxu0 %v437
      %514 = vmatmul.f32.gmra.mxu0 %v348
      %v515 = vpop.f32.mrf.mxu0
      %v516 = vadd.f32 %v357, %v515
      %517 = vmatmul.f32.gmra.mxu0 %v350
      %v518 = vpop.f32.mrf.mxu0
      %v519 = vadd.f32 %v362, %v518
      %520 = vdwg.mxu0
      %521 = vmatpush.msra.mxu0 0.0
      %522 = vmatpush.msra.mxu0 0.0
      %523 = vmatpush.msra.mxu0 0.0
      %524 = vmatpush.msra.mxu0 0.0
      %525 = vmatpush.msra.mxu0 0.0
      %526 = vmatpush.msra.mxu0 0.0
      %527 = vmatpush.msra.mxu0 0.0
      %528 = vmatpush.msra.mxu0 0.0
      %529 = vmatpush.msra.mxu0 0.0
      %530 = vmatpush.msra.mxu0 0.0
      %531 = vmatpush.msra.mxu0 0.0
      %532 = vmatpush.msra.mxu0 0.0
      %533 = vmatpush.msra.mxu0 0.0
      %534 = vmatpush.msra.mxu0 0.0
      %535 = vmatpush.msra.mxu0 %v454
      %536 = vmatpush.msra.mxu0 %v453
      %537 = vmatmul.f32.gmra.mxu0 %v493
      %v538 = vpop.f32.mrf.mxu0
      %v539 = vadd.f32 %v516, %v538
      %540 = vmatmul.f32.gmra.mxu0 %v496
      %v541 = vpop.f32.mrf.mxu0
      %v542 = vadd.f32 %v519, %v541
      %543 = vdwg.mxu0
      %544 = vmatpush.msra.mxu0 %v427
      %545 = vmatpush.msra.mxu0 %v423
      %546 = vmatpush.msra.mxu0 %v419
      %547 = vmatpush.msra.mxu0 %v415
      %548 = vmatpush.msra.mxu0 %v411
      %549 = vmatpush.msra.mxu0 %v407
      %550 = vmatpush.msra.mxu0 %v403
      %551 = vmatpush.msra.mxu0 %v399
      %552 = vmatpush.msra.mxu0 %v395
      %553 = vmatpush.msra.mxu0 %v391
      %554 = vmatpush.msra.mxu0 %v387
      %555 = vmatpush.msra.mxu0 %v383
      %556 = vmatpush.msra.mxu0 %v379
      %557 = vmatpush.msra.mxu0 %v375
      %558 = vmatpush.msra.mxu0 %v371
      %559 = vmatpush.msra.mxu0 %v367
      %560 = vmatmul.f32.gmra.mxu0 %v348
      %v561 = vpop.f32.mrf.mxu0
      %v562 = vadd.f32 %v357, %v561
      %563 = vmatmul.f32.gmra.mxu0 %v350
      %v564 = vpop.f32.mrf.mxu0
      %v565 = vadd.f32 %v362, %v564
      %566 = vdwg.mxu0
      %567 = vmatpush.msra.mxu0 0.0
      %568 = vmatpush.msra.mxu0 0.0
      %569 = vmatpush.msra.mxu0 0.0
      %570 = vmatpush.msra.mxu0 0.0
      %571 = vmatpush.msra.mxu0 0.0
      %572 = vmatpush.msra.mxu0 0.0
      %573 = vmatpush.msra.mxu0 0.0
      %574 = vmatpush.msra.mxu0 0.0
      %575 = vmatpush.msra.mxu0 0.0
      %576 = vmatpush.msra.mxu0 0.0
      %577 = vmatpush.msra.mxu0 0.0
      %578 = vmatpush.msra.mxu0 0.0
      %579 = vmatpush.msra.mxu0 0.0
      %580 = vmatpush.msra.mxu0 0.0
      %581 = vmatpush.msra.mxu0 %v435
      %582 = vmatpush.msra.mxu0 %v431
      %583 = vmatmul.f32.gmra.mxu0 %v493
      %v584 = vpop.f32.mrf.mxu0
      %v585 = vadd.f32 %v562, %v584
      %586 = vmatmul.f32.gmra.mxu0 %v496
      %v587 = vpop.f32.mrf.mxu0
      %v588 = vadd.f32 %v565, %v587
      %589 = vdwg.mxu0
      %v590 = vmax.f32 %v539, 0.0
      %v591 = vmax.f32 %v585, 0.0
      %v592 = vmax.f32 %v542, 0.0
      %v593 = vmax.f32 %v588, 0.0
      %v594 = vld [vmem:[%s5] sm:$0x3]
      %v596 = vperm.slane %v594, 0
      %v597 = vperm.slane %v594, 1
      %v600 = vmul.f32 %v590, %v596
      %v601 = vmul.f32 %v591, %v597
      %v602 = vmul.f32 %v592, %v596
      %v603 = vmul.f32 %v593, %v597
      %608 = vrot.lane.b32.xlu0 %v600, 36
      %v609 = vpop.permute.xlu0 %608
      %610 = vrot.lane.b32.xlu0 %v601, 36
      %v611 = vpop.permute.xlu0 %610
      %612 = vrot.lane.b32.xlu0 %v602, 36
      %v613 = vpop.permute.xlu0 %612
      %614 = vrot.lane.b32.xlu0 %v603, 36
      %v615 = vpop.permute.xlu0 %614
      %vm616 = vcmask 293888
      %v617 = vsel %vm616, %v609, %v611
      %v618 = vsel %vm616, %v613, %v615
      %v623 = vsel %vm616, 0.0, %v609
      %v624 = vsel %vm616, 0.0, %v613
      %vm625 = vcmask 424960
      %v626 = vsel %vm625, %v617, 0.0
      %v627 = vsel %vm625, %v618, 0.0
      %632 = vrot.lane.b32.xlu0 %v623, 127
      %v633 = vpop.permute.xlu0 %632
      %634 = vrot.lane.b32.xlu0 %v626, 127
      %v635 = vpop.permute.xlu0 %634
      %636 = vrot.lane.b32.xlu0 %v624, 127
      %v637 = vpop.permute.xlu0 %636
      %638 = vrot.lane.b32.xlu0 %v627, 127
      %v639 = vpop.permute.xlu0 %638
      %v640 = vsel %vm268, %v633, %v635
      %v641 = vsel %vm268, %v637, %v639
      %642 = vrot.lane.b32.xlu0 %v623, 126
      %v643 = vpop.permute.xlu0 %642
      %644 = vrot.lane.b32.xlu0 %v626, 126
      %v645 = vpop.permute.xlu0 %644
      %646 = vrot.lane.b32.xlu0 %v624, 126
      %v647 = vpop.permute.xlu0 %646
      %648 = vrot.lane.b32.xlu0 %v627, 126
      %v649 = vpop.permute.xlu0 %648
      %v650 = vsel %vm279, %v643, %v645
      %v651 = vsel %vm279, %v647, %v649
      %652 = vrot.lane.b32.xlu0 %v623, 110
      %v653 = vpop.permute.xlu0 %652
      %654 = vrot.lane.b32.xlu0 %v626, 110
      %v655 = vpop.permute.xlu0 %654
      %656 = vrot.lane.b32.xlu0 %v624, 110
      %v657 = vpop.permute.xlu0 %656
      %658 = vrot.lane.b32.xlu0 %v627, 110
      %v659 = vpop.permute.xlu0 %658
      %v660 = vsel %vm290, %v653, %v655
      %v661 = vsel %vm290, %v657, %v659
      %662 = vrot.lane.b32.xlu0 %v623, 109
      %v663 = vpop.permute.xlu0 %662
      %664 = vrot.lane.b32.xlu0 %v626, 109
      %v665 = vpop.permute.xlu0 %664
      %666 = vrot.lane.b32.xlu0 %v624, 109
      %v667 = vpop.permute.xlu0 %666
      %668 = vrot.lane.b32.xlu0 %v627, 109
      %v669 = vpop.permute.xlu0 %668
      %v670 = vsel %vm301, %v663, %v665
      %v671 = vsel %vm301, %v667, %v669
      %672 = vrot.lane.b32.xlu0 %v623, 108
      %v673 = vpop.permute.xlu0 %672
      %674 = vrot.lane.b32.xlu0 %v626, 108
      %v675 = vpop.permute.xlu0 %674
      %676 = vrot.lane.b32.xlu0 %v624, 108
      %v677 = vpop.permute.xlu0 %676
      %678 = vrot.lane.b32.xlu0 %v627, 108
      %v679 = vpop.permute.xlu0 %678
      %v680 = vsel %vm312, %v673, %v675
      %v681 = vsel %vm312, %v677, %v679
      %682 = vrot.lane.b32.xlu0 %v623, 92
      %v683 = vpop.permute.xlu0 %682
      %684 = vrot.lane.b32.xlu0 %v626, 92
      %v685 = vpop.permute.xlu0 %684
      %686 = vrot.lane.b32.xlu0 %v624, 92
      %v687 = vpop.permute.xlu0 %686
      %688 = vrot.lane.b32.xlu0 %v627, 92
      %v689 = vpop.permute.xlu0 %688
      %v690 = vsel %vm323, %v683, %v685
      %v691 = vsel %vm323, %v687, %v689
      %692 = vrot.lane.b32.xlu0 %v623, 91
      %v693 = vpop.permute.xlu0 %692
      %694 = vrot.lane.b32.xlu0 %v626, 91
      %v695 = vpop.permute.xlu0 %694
      %696 = vrot.lane.b32.xlu0 %v624, 91
      %v697 = vpop.permute.xlu0 %696
      %698 = vrot.lane.b32.xlu0 %v627, 91
      %v699 = vpop.permute.xlu0 %698
      %v700 = vsel %vm334, %v693, %v695
      %v701 = vsel %vm334, %v697, %v699
      %702 = vrot.lane.b32.xlu0 %v623, 90
      %v703 = vpop.permute.xlu0 %702
      %704 = vrot.lane.b32.xlu0 %v626, 90
      %v705 = vpop.permute.xlu0 %704
      %706 = vrot.lane.b32.xlu0 %v624, 90
      %v707 = vpop.permute.xlu0 %706
      %708 = vrot.lane.b32.xlu0 %v627, 90
      %v709 = vpop.permute.xlu0 %708
      %v710 = vsel %vm345, %v703, %v705
      %v711 = vsel %vm345, %v707, %v709
      %v712 = vld [vmem:[%s3] sm:$0xff]
      %v713 = vld [vmem:[%s3 + $0x8] sm:$0xff]
      %v714 = vld [vmem:[%s3 + $0x10] sm:$0xff]
      %v715 = vld [vmem:[%s3 + $0x18] sm:$0xff]
      %v716 = vld [vmem:[%s4] sm:$0xff]
      %v717 = vld [vmem:[%s4 + $0x8] sm:$0xff]
      %719 = vset.pattern.permute.xlu0 0
      %720 = vperm.xlu0 %719, %v716
      %v721 = vpop.permute.xlu0 %720
      %724 = vset.pattern.permute.xlu0 0
      %725 = vperm.xlu0 %724, %v717
      %v726 = vpop.permute.xlu0 %725
      %728 = vrot.lane.b32.xlu0 %v623, 111
      %v729 = vpop.permute.xlu0 %728
      %730 = vrot.lane.b32.xlu0 %v626, 111
      %v731 = vpop.permute.xlu0 %730
      %732 = vrot.lane.b32.xlu0 %v624, 111
      %v733 = vpop.permute.xlu0 %732
      %734 = vrot.lane.b32.xlu0 %v627, 111
      %v735 = vpop.permute.xlu0 %734
      %736 = vrot.lane.b32.xlu0 %v640, 111
      %v737 = vpop.permute.xlu0 %736
      %738 = vrot.lane.b32.xlu0 %v635, 111
      %v739 = vpop.permute.xlu0 %738
      %740 = vrot.lane.b32.xlu0 %v641, 111
      %v741 = vpop.permute.xlu0 %740
      %742 = vrot.lane.b32.xlu0 %v639, 111
      %v743 = vpop.permute.xlu0 %742
      %744 = vrot.lane.b32.xlu0 %v650, 111
      %v745 = vpop.permute.xlu0 %744
      %746 = vrot.lane.b32.xlu0 %v645, 111
      %v747 = vpop.permute.xlu0 %746
      %748 = vrot.lane.b32.xlu0 %v651, 111
      %v749 = vpop.permute.xlu0 %748
      %750 = vrot.lane.b32.xlu0 %v649, 111
      %v751 = vpop.permute.xlu0 %750
      %752 = vrot.lane.b32.xlu0 %v660, 111
      %v753 = vpop.permute.xlu0 %752
      %754 = vrot.lane.b32.xlu0 %v655, 111
      %v755 = vpop.permute.xlu0 %754
      %756 = vrot.lane.b32.xlu0 %v661, 111
      %v757 = vpop.permute.xlu0 %756
      %758 = vrot.lane.b32.xlu0 %v659, 111
      %v759 = vpop.permute.xlu0 %758
      %760 = vrot.lane.b32.xlu0 %v670, 111
      %v761 = vpop.permute.xlu0 %760
      %762 = vrot.lane.b32.xlu0 %v665, 111
      %v763 = vpop.permute.xlu0 %762
      %764 = vrot.lane.b32.xlu0 %v671, 111
      %v765 = vpop.permute.xlu0 %764
      %766 = vrot.lane.b32.xlu0 %v669, 111
      %v767 = vpop.permute.xlu0 %766
      %768 = vrot.lane.b32.xlu0 %v680, 111
      %v769 = vpop.permute.xlu0 %768
      %770 = vrot.lane.b32.xlu0 %v675, 111
      %v771 = vpop.permute.xlu0 %770
      %772 = vrot.lane.b32.xlu0 %v681, 111
      %v773 = vpop.permute.xlu0 %772
      %774 = vrot.lane.b32.xlu0 %v679, 111
      %v775 = vpop.permute.xlu0 %774
      %776 = vrot.lane.b32.xlu0 %v690, 111
      %v777 = vpop.permute.xlu0 %776
      %778 = vrot.lane.b32.xlu0 %v685, 111
      %v779 = vpop.permute.xlu0 %778
      %780 = vrot.lane.b32.xlu0 %v691, 111
      %v781 = vpop.permute.xlu0 %780
      %782 = vrot.lane.b32.xlu0 %v689, 111
      %v783 = vpop.permute.xlu0 %782
      %784 = vrot.lane.b32.xlu0 %v700, 111
      %v785 = vpop.permute.xlu0 %784
      %786 = vrot.lane.b32.xlu0 %v695, 111
      %v787 = vpop.permute.xlu0 %786
      %788 = vrot.lane.b32.xlu0 %v701, 111
      %v789 = vpop.permute.xlu0 %788
      %790 = vrot.lane.b32.xlu0 %v699, 111
      %v791 = vpop.permute.xlu0 %790
      %792 = vrot.lane.b32.xlu0 %v710, 111
      %v793 = vpop.permute.xlu0 %792
      %794 = vrot.lane.b32.xlu0 %v705, 111
      %v795 = vpop.permute.xlu0 %794
      %796 = vrot.lane.b32.xlu0 %v711, 111
      %v797 = vpop.permute.xlu0 %796
      %798 = vrot.lane.b32.xlu0 %v709, 111
      %v799 = vpop.permute.xlu0 %798
      %v800 = vsel %vm436, %v729, %v731
      %v801 = vsel %vm436, %v733, %v735
      %v802 = vsel %vm436, %v737, %v739
      %v803 = vsel %vm436, %v741, %v743
      %v804 = vsel %vm436, %v745, %v747
      %v805 = vsel %vm436, %v749, %v751
      %v806 = vsel %vm436, %v753, %v755
      %v807 = vsel %vm436, %v757, %v759
      %v808 = vsel %vm436, %v761, %v763
      %v809 = vsel %vm436, %v765, %v767
      %v810 = vsel %vm436, %v769, %v771
      %v811 = vsel %vm436, %v773, %v775
      %v812 = vsel %vm436, %v777, %v779
      %v813 = vsel %vm436, %v781, %v783
      %v814 = vsel %vm436, %v785, %v787
      %v815 = vsel %vm436, %v789, %v791
      %v816 = vsel %vm436, %v793, %v795
      %v817 = vsel %vm436, %v797, %v799
      %v855 = vsel %vm491, %v713, 0
      %v858 = vsel %vm491, %v715, 0
      %860 = vmatpush.msra.mxu0 %v815
      %861 = vmatpush.msra.mxu0 %v814
      %862 = vmatpush.msra.mxu0 %v813
      %863 = vmatpush.msra.mxu0 %v812
      %864 = vmatpush.msra.mxu0 %v811
      %865 = vmatpush.msra.mxu0 %v810
      %866 = vmatpush.msra.mxu0 %v809
      %867 = vmatpush.msra.mxu0 %v808
      %868 = vmatpush.msra.mxu0 %v807
      %869 = vmatpush.msra.mxu0 %v806
      %870 = vmatpush.msra.mxu0 %v805
      %871 = vmatpush.msra.mxu0 %v804
      %872 = vmatpush.msra.mxu0 %v803
      %873 = vmatpush.msra.mxu0 %v802
      %874 = vmatpush.msra.mxu0 %v801
      %875 = vmatpush.msra.mxu0 %v800
      %876 = vmatmul.f32.gmra.mxu0 %v712
      %v877 = vpop.f32.mrf.mxu0
      %v878 = vadd.f32 %v721, %v877
      %879 = vmatmul.f32.gmra.mxu0 %v714
      %v880 = vpop.f32.mrf.mxu0
      %v881 = vadd.f32 %v726, %v880
      %882 = vdwg.mxu0
      %883 = vmatpush.msra.mxu0 0.0
      %884 = vmatpush.msra.mxu0 0.0
      %885 = vmatpush.msra.mxu0 0.0
      %886 = vmatpush.msra.mxu0 0.0
      %887 = vmatpush.msra.mxu0 0.0
      %888 = vmatpush.msra.mxu0 0.0
      %889 = vmatpush.msra.mxu0 0.0
      %890 = vmatpush.msra.mxu0 0.0
      %891 = vmatpush.msra.mxu0 0.0
      %892 = vmatpush.msra.mxu0 0.0
      %893 = vmatpush.msra.mxu0 0.0
      %894 = vmatpush.msra.mxu0 0.0
      %895 = vmatpush.msra.mxu0 0.0
      %896 = vmatpush.msra.mxu0 0.0
      %897 = vmatpush.msra.mxu0 %v817
      %898 = vmatpush.msra.mxu0 %v816
      %899 = vmatmul.f32.gmra.mxu0 %v855
      %v900 = vpop.f32.mrf.mxu0
      %v901 = vadd.f32 %v878, %v900
      %902 = vmatmul.f32.gmra.mxu0 %v858
      %v903 = vpop.f32.mrf.mxu0
      %v904 = vadd.f32 %v881, %v903
      %905 = vdwg.mxu0
      %906 = vmatpush.msra.mxu0 %v791
      %907 = vmatpush.msra.mxu0 %v787
      %908 = vmatpush.msra.mxu0 %v783
      %909 = vmatpush.msra.mxu0 %v779
      %910 = vmatpush.msra.mxu0 %v775
      %911 = vmatpush.msra.mxu0 %v771
      %912 = vmatpush.msra.mxu0 %v767
      %913 = vmatpush.msra.mxu0 %v763
      %914 = vmatpush.msra.mxu0 %v759
      %915 = vmatpush.msra.mxu0 %v755
      %916 = vmatpush.msra.mxu0 %v751
      %917 = vmatpush.msra.mxu0 %v747
      %918 = vmatpush.msra.mxu0 %v743
      %919 = vmatpush.msra.mxu0 %v739
      %920 = vmatpush.msra.mxu0 %v735
      %921 = vmatpush.msra.mxu0 %v731
      %922 = vmatmul.f32.gmra.mxu0 %v712
      %v923 = vpop.f32.mrf.mxu0
      %v924 = vadd.f32 %v721, %v923
      %925 = vmatmul.f32.gmra.mxu0 %v714
      %v926 = vpop.f32.mrf.mxu0
      %v927 = vadd.f32 %v726, %v926
      %928 = vdwg.mxu0
      %929 = vmatpush.msra.mxu0 0.0
      %930 = vmatpush.msra.mxu0 0.0
      %931 = vmatpush.msra.mxu0 0.0
      %932 = vmatpush.msra.mxu0 0.0
      %933 = vmatpush.msra.mxu0 0.0
      %934 = vmatpush.msra.mxu0 0.0
      %935 = vmatpush.msra.mxu0 0.0
      %936 = vmatpush.msra.mxu0 0.0
      %937 = vmatpush.msra.mxu0 0.0
      %938 = vmatpush.msra.mxu0 0.0
      %939 = vmatpush.msra.mxu0 0.0
      %940 = vmatpush.msra.mxu0 0.0
      %941 = vmatpush.msra.mxu0 0.0
      %942 = vmatpush.msra.mxu0 0.0
      %943 = vmatpush.msra.mxu0 %v799
      %944 = vmatpush.msra.mxu0 %v795
      %945 = vmatmul.f32.gmra.mxu0 %v855
      %v946 = vpop.f32.mrf.mxu0
      %v947 = vadd.f32 %v924, %v946
      %948 = vmatmul.f32.gmra.mxu0 %v858
      %v949 = vpop.f32.mrf.mxu0
      %v950 = vadd.f32 %v927, %v949
      %951 = vdwg.mxu0
      %v952 = vmax.f32 %v901, 0.0
      %v953 = vmax.f32 %v947, 0.0
      %v954 = vmax.f32 %v904, 0.0
      %v955 = vmax.f32 %v950, 0.0
      %v956 = vsel %vm491, %v953, 0.0
      %v957 = vsel %vm491, %v955, 0.0
      %958 = vst [vmem:[%s251] sm:$0xff] %v952
      %959 = vst [vmem:[%s251 + $0x8] sm:$0xff] %v956
      %960 = vst [vmem:[%s251 + $0x10] sm:$0xff] %v954
      %961 = vst [vmem:[%s251 + $0x18] sm:$0xff] %v957
      %p962 = scmp.lt.s32.totalorder %s17, 1
      %s963 = scalar_select %p962, %s17, 1
      %s964 = smul.addr %s963, 4
      %s965 = smul.addr %s964, 8
      %s966 = scalar_lea.vmem %s6, %s965
      // Predicated region
      $region45: #{scale_aware_adapt_forward.4} parent=43 // pred_check
        %p967 = pneg %p166
      $region46: #{scale_aware_adapt_forward.4} parent=43 // pred_check_branch
        %969 = sbr.rel (%p967) target = $region48
      $region47: #{scale_aware_adapt_forward.4} parent=43 // pred_region
        _
      $region48: #{scale_aware_adapt_forward.4} parent=43 // pred_fallthru
        _
    $region44: #{scale_aware_adapt_forward.4} parent=5 // pred_fallthru
      _
    %p970 = scmp.le.s32.totalorder 2, %s12
    // Predicated region
    $region49: #{scale_aware_adapt_forward.4} parent=5 // pred_check
      %p971 = pneg %p970
    $region50: #{scale_aware_adapt_forward.4} parent=5 // pred_check_branch
      %973 = sbr.rel (%p971) target = $region52
    $region51: #{scale_aware_adapt_forward.4} parent=5 // pred_region
      %s974 = ssub.s32 %s12, 2
      // Predicated region
      $region53: #{scale_aware_adapt_forward.4} parent=51 // pred_check
        %p975 = pneg %p172
      $region54: #{scale_aware_adapt_forward.4} parent=51 // pred_check_branch
        %977 = sbr.rel (%p975) target = $region56
      $region55: #{scale_aware_adapt_forward.4} parent=51 // pred_region
        %p978 = scmp.lt.s32.totalorder %s18, 1
        %s979 = scalar_select %p978, %s18, 1
        %s980 = smul.addr %s979, 4
        %s981 = smul.addr %s980, 8
        %s982 = scalar_lea.vmem %s6, %s981
      $region56: #{scale_aware_adapt_forward.4} parent=51 // pred_fallthru
        _
    $region52: #{scale_aware_adapt_forward.4} parent=5 // pred_fallthru
      _
  $region6: #{scale_aware_adapt_forward.4} parent=0 // loop_footer
    %s16 = sadd.s32 1, %s12
  $region7: #{scale_aware_adapt_forward.4} parent=0 // loop_footer_branch
    %11 = sbr.rel target = $region3
  $region8: #{scale_aware_adapt_forward.4} parent=0 // loop_exit
    _

// kernel: scale_aware_adapt_forward.5
$region0: #{scale_aware_adapt_forward.5}
  #allocation0 [shape = 'u32[]', space=smem, size = 0x4, offset = 0x4, fixed_abs, tag = 'smem constant byte address 0x4 - core index']
  #allocation1 [shape = 'u32[72,128]{1,0:T(1,128)}', space=vmem, size = 0x9000, scoped, tag = 'internal scratch']
  #allocation2 [shape = 'f32[1,1]{1,0:T(1,128)S(1)}', space=vmem, size = 0x200, scoped, tag = 'scoped memory for scale_aware_adapt_forward.5']
  %s0 = inlined_call_operand.vmem [shape: f32[2,4,384], index: 0, kind: input, shape index: {}]
  %s1 = inlined_call_operand.vmem [shape: f32[4,36], index: 1, kind: input, shape index: {}]
  %s2 = inlined_call_operand.vmem [shape: f32[2,72,8], index: 2, kind: input, shape index: {}]
  %s3 = inlined_call_operand.vmem [shape: f32[9,16,8], index: 3, kind: input, shape index: {}]
  %s4 = inlined_call_operand.vmem [shape: f32[9,8,18], index: 4, kind: input, shape index: {}]
  %s5 = inlined_call_operand.<no memory space> [shape: f32[1,1], index: 5, kind: input, shape index: {}]
  %s6 = inlined_call_operand.vmem [shape: f32[2,4,384], index: 6, kind: output, shape index: {}]
  %s7 = sld [smem:[#allocation0]]
  $region57: #{scale_aware_adapt_forward.5} parent=0
    _
  %s9 = ssub.s32 1, %s7
  %s10 = scalar_select 0, %s9, %s7
  %v11 = vstv %s5
  %12 = vst [vmem:[#allocation2] sm:$0x1] %v11
  loop: start=0, step=1, limit=4
  $region2: #{scale_aware_adapt_forward.5} parent=0 // loop_pre_header
    _
  $region3: #{scale_aware_adapt_forward.5} parent=0 // loop_header
    %s14 = sphi 0, %s18
    %p15 = scmp.ge.s32.totalorder %s14, 4
    %s24 = sphi 0, %s26
    %s27 = sphi 0, %s24
    %s28 = sphi 0, %s27
    %s44 = sphi 0, %s28
    %s48 = sphi 0, %s48
    %s50 = sphi 0, %s48
    %s51 = sphi 0, %s50
    %s65 = sphi 0, %s51
    %s71 = sphi 0, %s73
    %s74 = sphi 0, %s71
    %s75 = sphi 0, %s74
    %s91 = sphi 0, %s75
    %s95 = sphi 0, %s95
    %s97 = sphi 0, %s95
    %s98 = sphi 0, %s97
    %s112 = sphi 0, %s98
    %s116 = sphi 0, %s116
    %s118 = sphi 0, %s116
    %s119 = sphi 0, %s118
    %s133 = sphi 0, %s119
    %s137 = sphi 0, %s137
    %s139 = sphi 0, %s137
    %s140 = sphi 0, %s139
    %s154 = sphi 0, %s140
    %s160 = sphi 0, %s162
    %s163 = sphi 0, %s160
    %s164 = sphi 0, %s163
    %s180 = sphi 0, %s164
  $region4: #{scale_aware_adapt_forward.5} parent=0 // loop_header_branch
    %17 = sbr.rel (%p15) target = $region8
  $region5: #{scale_aware_adapt_forward.5} parent=0 // loop_body
    %s19 = ssub.s32 %s14, 1
    %s20 = ssub.s32 %s14, 2
    %s21 = sadd.s32 %s14, 1
    %s22 = ssub.s32 %s14, %s21
    %p23 = scmp.eq.s32.totalorder %s22, 0
    %s25 = sadd.s32 %s24, 1
    %s26 = scalar_select %p23, %s24, %s25
    %p29 = pneg %p23
    %p30 = scmp.eq.s32.totalorder %s14, 1
    %p31 = por %p29, %p30
    %p32 = scmp.ne.s32.totalorder %s24, %s27
    %p33 = scmp.eq.s32.totalorder %s14, 0
    %p34 = por %p32, %p33
    %p35 = scmp.ne.s32.totalorder %s24, %s27
    %p36 = scmp.eq.s32.totalorder %s19, 1
    %p37 = por %p35, %p36
    %p38 = scmp.ne.s32.totalorder %s27, %s28
    %p39 = scmp.eq.s32.totalorder %s19, 0
    %p40 = por %p38, %p39
    %p41 = scmp.ne.s32.totalorder %s27, %s28
    %p42 = scmp.eq.s32.totalorder %s20, 1
    %p43 = por %p41, %p42
    %p45 = scmp.ne.s32.totalorder %s28, %s44
    %p46 = scmp.eq.s32.totalorder %s20, 0
    %p47 = por %p45, %p46
    %s49 = sadd.s32 %s48, 1
    %p52 = scmp.eq.s32.totalorder %s14, 1
    %p53 = scmp.ne.s32.totalorder %s48, %s50
    %p54 = scmp.eq.s32.totalorder %s14, 0
    %p55 = por %p53, %p54
    %p56 = scmp.ne.s32.totalorder %s48, %s50
    %p57 = scmp.eq.s32.totalorder %s19, 1
    %p58 = por %p56, %p57
    %p59 = scmp.ne.s32.totalorder %s50, %s51
    %p60 = scmp.eq.s32.totalorder %s19, 0
    %p61 = por %p59, %p60
    %p62 = scmp.ne.s32.totalorder %s50, %s51
    %p63 = scmp.eq.s32.totalorder %s20, 1
    %p64 = por %p62, %p63
    %p66 = scmp.ne.s32.totalorder %s51, %s65
    %p67 = scmp.eq.s32.totalorder %s20, 0
    %p68 = por %p66, %p67
    %s69 = ssub.s32 %s14, %s21
    %p70 = scmp.eq.s32.totalorder %s69, 0
    %s72 = sadd.s32 %s71, 1
    %s73 = scalar_select %p70, %s71, %s72
    %p76 = pneg %p70
    %p77 = scmp.eq.s32.totalorder %s14, 1
    %p78 = por %p76, %p77
    %p79 = scmp.ne.s32.totalorder %s71, %s74
    %p80 = scmp.eq.s32.totalorder %s14, 0
    %p81 = por %p79, %p80
    %p82 = scmp.ne.s32.totalorder %s71, %s74
    %p83 = scmp.eq.s32.totalorder %s19, 1
    %p84 = por %p82, %p83
    %p85 = scmp.ne.s32.totalorder %s74, %s75
    %p86 = scmp.eq.s32.totalorder %s19, 0
    %p87 = por %p85, %p86
    %p88 = scmp.ne.s32.totalorder %s74, %s75
    %p89 = scmp.eq.s32.totalorder %s20, 1
    %p90 = por %p88, %p89
    %p92 = scmp.ne.s32.totalorder %s75, %s91
    %p93 = scmp.eq.s32.totalorder %s20, 0
    %p94 = por %p92, %p93
    %s96 = sadd.s32 %s95, 1
    %p99 = scmp.eq.s32.totalorder %s14, 1
    %p100 = scmp.ne.s32.totalorder %s95, %s97
    %p101 = scmp.eq.s32.totalorder %s14, 0
    %p102 = por %p100, %p101
    %p103 = scmp.ne.s32.totalorder %s95, %s97
    %p104 = scmp.eq.s32.totalorder %s19, 1
    %p105 = por %p103, %p104
    %p106 = scmp.ne.s32.totalorder %s97, %s98
    %p107 = scmp.eq.s32.totalorder %s19, 0
    %p108 = por %p106, %p107
    %p109 = scmp.ne.s32.totalorder %s97, %s98
    %p110 = scmp.eq.s32.totalorder %s20, 1
    %p111 = por %p109, %p110
    %p113 = scmp.ne.s32.totalorder %s98, %s112
    %p114 = scmp.eq.s32.totalorder %s20, 0
    %p115 = por %p113, %p114
    %s117 = sadd.s32 %s116, 1
    %p120 = scmp.eq.s32.totalorder %s14, 1
    %p121 = scmp.ne.s32.totalorder %s116, %s118
    %p122 = scmp.eq.s32.totalorder %s14, 0
    %p123 = por %p121, %p122
    %p124 = scmp.ne.s32.totalorder %s116, %s118
    %p125 = scmp.eq.s32.totalorder %s19, 1
    %p126 = por %p124, %p125
    %p127 = scmp.ne.s32.totalorder %s118, %s119
    %p128 = scmp.eq.s32.totalorder %s19, 0
    %p129 = por %p127, %p128
    %p130 = scmp.ne.s32.totalorder %s118, %s119
    %p131 = scmp.eq.s32.totalorder %s20, 1
    %p132 = por %p130, %p131
    %p134 = scmp.ne.s32.totalorder %s119, %s133
    %p135 = scmp.eq.s32.totalorder %s20, 0
    %p136 = por %p134, %p135
    %s138 = sadd.s32 %s137, 1
    %p141 = scmp.eq.s32.totalorder %s14, 1
    %p142 = scmp.ne.s32.totalorder %s137, %s139
    %p143 = scmp.eq.s32.totalorder %s14, 0
    %p144 = por %p142, %p143
    %p145 = scmp.ne.s32.totalorder %s137, %s139
    %p146 = scmp.eq.s32.totalorder %s19, 1
    %p147 = por %p145, %p146
    %p148 = scmp.ne.s32.totalorder %s139, %s140
    %p149 = scmp.eq.s32.totalorder %s19, 0
    %p150 = por %p148, %p149
    %p151 = scmp.ne.s32.totalorder %s139, %s140
    %p152 = scmp.eq.s32.totalorder %s20, 1
    %p153 = por %p151, %p152
    %p155 = scmp.ne.s32.totalorder %s140, %s154
    %p156 = scmp.eq.s32.totalorder %s20, 0
    %p157 = por %p155, %p156
    %s158 = ssub.s32 %s14, %s21
    %p159 = scmp.eq.s32.totalorder %s158, 0
    %s161 = sadd.s32 %s160, 1
    %s162 = scalar_select %p159, %s160, %s161
    %p165 = pneg %p159
    %p166 = scmp.eq.s32.totalorder %s14, 1
    %p167 = por %p165, %p166
    %p168 = scmp.ne.s32.totalorder %s160, %s163
    %p169 = scmp.eq.s32.totalorder %s14, 0
    %p170 = por %p168, %p169
    %p171 = scmp.ne.s32.totalorder %s160, %s163
    %p172 = scmp.eq.s32.totalorder %s19, 1
    %p173 = por %p171, %p172
    %p174 = scmp.ne.s32.totalorder %s163, %s164
    %p175 = scmp.eq.s32.totalorder %s19, 0
    %p176 = por %p174, %p175
    %p177 = scmp.ne.s32.totalorder %s163, %s164
    %p178 = scmp.eq.s32.totalorder %s20, 1
    %p179 = por %p177, %p178
    %p181 = scmp.ne.s32.totalorder %s164, %s180
    %p182 = scmp.eq.s32.totalorder %s20, 0
    %p183 = por %p181, %p182
    %p184 = scmp.le.s32.totalorder 1, %s14
    %p185 = scmp.lt.s32.totalorder %s14, 3
    %p186 = pnand %p184, %p185
    %p187 = pneg %p186
    // Predicated region
    $region9: #{scale_aware_adapt_forward.5} parent=5 // pred_check
      _
    $region10: #{scale_aware_adapt_forward.5} parent=5 // pred_check_branch
      %189 = sbr.rel (%p186) target = $region12
    $region11: #{scale_aware_adapt_forward.5} parent=5 // pred_region
      %s190 = ssub.s32 %s14, 1
      // Predicated region
      $region13: #{scale_aware_adapt_forward.5} parent=11 // pred_check
        %p191 = pneg %p61
      $region14: #{scale_aware_adapt_forward.5} parent=11 // pred_check_branch
        %193 = sbr.rel (%p191) target = $region16
      $region15: #{scale_aware_adapt_forward.5} parent=11 // pred_region
        _
      $region16: #{scale_aware_adapt_forward.5} parent=11 // pred_fallthru
        _
      // Predicated region
      $region17: #{scale_aware_adapt_forward.5} parent=11 // pred_check
        %p194 = pneg %p108
      $region18: #{scale_aware_adapt_forward.5} parent=11 // pred_check_branch
        %196 = sbr.rel (%p194) target = $region20
      $region19: #{scale_aware_adapt_forward.5} parent=11 // pred_region
        _
      $region20: #{scale_aware_adapt_forward.5} parent=11 // pred_fallthru
        _
      // Predicated region
      $region21: #{scale_aware_adapt_forward.5} parent=11 // pred_check
        %p197 = pneg %p129
      $region22: #{scale_aware_adapt_forward.5} parent=11 // pred_check_branch
        %199 = sbr.rel (%p197) target = $region24
      $region23: #{scale_aware_adapt_forward.5} parent=11 // pred_region
        _
      $region24: #{scale_aware_adapt_forward.5} parent=11 // pred_fallthru
        _
      // Predicated region
      $region25: #{scale_aware_adapt_forward.5} parent=11 // pred_check
        %p200 = pneg %p150
      $region26: #{scale_aware_adapt_forward.5} parent=11 // pred_check_branch
        %202 = sbr.rel (%p200) target = $region28
      $region27: #{scale_aware_adapt_forward.5} parent=11 // pred_region
        _
      $region28: #{scale_aware_adapt_forward.5} parent=11 // pred_fallthru
        _
    $region12: #{scale_aware_adapt_forward.5} parent=5 // pred_fallthru
      _
    %p203 = scmp.lt.s32.totalorder %s14, 2
    // Predicated region
    $region29: #{scale_aware_adapt_forward.5} parent=5 // pred_check
      %p204 = pneg %p203
    $region30: #{scale_aware_adapt_forward.5} parent=5 // pred_check_branch
      %206 = sbr.rel (%p204) target = $region32
    $region31: #{scale_aware_adapt_forward.5} parent=5 // pred_region
      // Predicated region
      $region33: #{scale_aware_adapt_forward.5} parent=31 // pred_check
        %p207 = pneg %p34
      $region34: #{scale_aware_adapt_forward.5} parent=31 // pred_check_branch
        %209 = sbr.rel (%p207) target = $region36
      $region35: #{scale_aware_adapt_forward.5} parent=31 // pred_region
        %p210 = scmp.lt.s32.totalorder %s14, 1
        %s211 = scalar_select %p210, %s14, 1
        %s212 = smul.addr %s211, 3
        %s213 = smul.addr %s212, 4
        %s214 = scalar_lea.vmem %s0, %s213
      $region36: #{scale_aware_adapt_forward.5} parent=31 // pred_fallthru
        _
      // Predicated region
      $region37: #{scale_aware_adapt_forward.5} parent=31 // pred_check
        %p215 = pneg %p81
      $region38: #{scale_aware_adapt_forward.5} parent=31 // pred_check_branch
        %217 = sbr.rel (%p215) target = $region40
      $region39: #{scale_aware_adapt_forward.5} parent=31 // pred_region
        %p218 = scmp.lt.s32.totalorder %s14, 1
        %s219 = scalar_select %p218, %s14, 1
        %s220 = smul.addr %s219, 9
        %s221 = smul.addr %s220, 8
        %s222 = scalar_lea.vmem %s2, %s221
      $region40: #{scale_aware_adapt_forward.5} parent=31 // pred_fallthru
        _
    $region32: #{scale_aware_adapt_forward.5} parent=5 // pred_fallthru
      _
    %p223 = scmp.le.s32.totalorder 1, %s14
    %p224 = scmp.lt.s32.totalorder %s14, 3
    %p225 = pnand %p223, %p224
    %p226 = pneg %p225
    // Predicated region
    $region41: #{scale_aware_adapt_forward.5} parent=5 // pred_check
      _
    $region42: #{scale_aware_adapt_forward.5} parent=5 // pred_check_branch
      %228 = sbr.rel (%p225) target = $region44
    $region43: #{scale_aware_adapt_forward.5} parent=5 // pred_region
      %s229 = ssub.s32 %s14, 1
      %p230 = scmp.lt.s32.totalorder %s19, 1
      %s231 = scalar_select %p230, %s19, 1
      %s232 = smul.addr %s231, 3
      %s233 = smul.addr %s232, 4
      %s234 = scalar_lea.vmem %s0, %s233
      %p235 = pneg %p40
      %p236 = pneg %p37
      %p237 = pneg %p61
      %p238 = pneg %p58
      %p239 = scmp.lt.s32.totalorder %s19, 1
      %s240 = scalar_select %p239, %s19, 1
      %s241 = smul.addr %s240, 9
      %s242 = smul.addr %s241, 8
      %s243 = scalar_lea.vmem %s2, %s242
      %p244 = pneg %p87
      %p245 = pneg %p84
      %p246 = pneg %p108
      %p247 = pneg %p105
      %p248 = pneg %p129
      %p249 = pneg %p126
      %p250 = pneg %p150
      %p251 = pneg %p147
      %p252 = pneg %p176
      %p253 = pneg %p173
      %p254 = scmp.lt.s32.totalorder %s19, 1
      %s255 = scalar_select %p254, %s19, 1
      %s256 = smul.addr %s255, 3
      %s257 = smul.addr %s256, 4
      %s258 = scalar_lea.vmem %s6, %s257
      %p259 = scmp.lt.s32.totalorder %s19, 1
      %s260 = scalar_select %p259, %s19, 1
      %s261 = smul.addr %s260, 3
      %s262 = smul.addr %s261, 4
      %s263 = scalar_lea.vmem %s0, %s262
      %p264 = scmp.lt.s32.totalorder %s19, 1
      %s265 = scalar_select %p264, %s19, 1
      %s266 = smul.addr %s265, 9
      %s267 = smul.addr %s266, 8
      %s268 = scalar_lea.vmem %s2, %s267
      %p269 = scmp.lt.s32.totalorder %s19, 1
      %s270 = scalar_select %p269, %s19, 1
      %s271 = smul.addr %s270, 3
      %s272 = smul.addr %s271, 4
      %s273 = scalar_lea.vmem %s6, %s272
      %v274 = vld [vmem:[%s268] sm:$0xff]
      %v275 = vld [vmem:[%s4] sm:$0xff]
      %vm276 = vcmask 64512
      %v278 = vsel %vm276, %v274, 0
      %280 = vmatpush.msra.mxu0 0.0
      %281 = vmatpush.msra.mxu0 0.0
      %282 = vmatpush.msra.mxu0 0.0
      %283 = vmatpush.msra.mxu0 0.0
      %284 = vmatpush.msra.mxu0 0.0
      %285 = vmatpush.msra.mxu0 0.0
      %286 = vmatpush.msra.mxu0 0.0
      %287 = vmatpush.msra.mxu0 0.0
      %288 = vmatpush.msra.mxu0 0.0
      %289 = vmatpush.msra.mxu0 0.0
      %290 = vmatpush.msra.mxu0 0.0
      %291 = vmatpush.msra.mxu0 0.0
      %292 = vmatpush.msra.mxu0 0.0
      %293 = vmatpush.msra.mxu0 0.0
      %294 = vmatpush.msra.mxu0 0.0
      %295 = vmatpush.msra.mxu0 %v275
      %296 = vmatmul.f32.gmra.mxu0 %v278
      %v297 = vpop.f32.mrf.mxu0
      %v298 = vadd.f32 0.0, %v297
      %299 = vdwg.mxu0
      %v300 = vld [vmem:[%s3] sm:$0xff]
      %v301 = vld [vmem:[%s3 + $0x8] sm:$0xff]
      %v302 = vld [vmem:[%s268 + $0x8] sm:$0xff]
      %s303 = scalar_lea.vmem %s4, 8
      %v304 = vld [vmem:[%s303] sm:$0xff]
      %v306 = vsel %vm276, %v302, 0
      %308 = vmatpush.msra.mxu0 0.0
      %309 = vmatpush.msra.mxu0 0.0
      %310 = vmatpush.msra.mxu0 0.0
      %311 = vmatpush.msra.mxu0 0.0
      %312 = vmatpush.msra.mxu0 0.0
      %313 = vmatpush.msra.mxu0 0.0
      %314 = vmatpush.msra.mxu0 0.0
      %315 = vmatpush.msra.mxu0 0.0
      %316 = vmatpush.msra.mxu0 0.0
      %317 = vmatpush.msra.mxu0 0.0
      %318 = vmatpush.msra.mxu0 0.0
      %319 = vmatpush.msra.mxu0 0.0
      %320 = vmatpush.msra.mxu0 0.0
      %321 = vmatpush.msra.mxu0 0.0
      %322 = vmatpush.msra.mxu0 0.0
      %323 = vmatpush.msra.mxu0 %v304
      %324 = vmatmul.f32.gmra.mxu0 %v306
      %v325 = vpop.f32.mrf.mxu0
      %v326 = vadd.f32 0.0, %v325
      %327 = vdwg.mxu0
      %s328 = scalar_lea.vmem %s3, 16
      %v329 = vld [vmem:[%s328] sm:$0xff]
      %v330 = vld [vmem:[%s328 + $0x8] sm:$0xff]
      %v332 = vsel %vm276, %v329, 0
      %v335 = vsel %vm276, %v330, 0
      %337 = vmatpush.msra.mxu0 0.0
      %338 = vmatpush.msra.mxu0 0.0
      %339 = vmatpush.msra.mxu0 0.0
      %340 = vmatpush.msra.mxu0 0.0
      %341 = vmatpush.msra.mxu0 0.0
      %342 = vmatpush.msra.mxu0 0.0
      %343 = vmatpush.msra.mxu0 0.0
      %344 = vmatpush.msra.mxu0 0.0
      %345 = vmatpush.msra.mxu0 0.0
      %346 = vmatpush.msra.mxu0 0.0
      %347 = vmatpush.msra.mxu0 0.0
      %348 = vmatpush.msra.mxu0 0.0
      %349 = vmatpush.msra.mxu0 0.0
      %350 = vmatpush.msra.mxu0 0.0
      %351 = vmatpush.msra.mxu0 0.0
      %352 = vmatpush.msra.mxu0 %v326
      %353 = vmatmul.f32.gmra.mxu0 %v332
      %v354 = vpop.f32.mrf.mxu0
      %v355 = vadd.f32 0.0, %v354
      %356 = vmatmul.f32.gmra.mxu0 %v335
      %v357 = vpop.f32.mrf.mxu0
      %v358 = vadd.f32 0.0, %v357
      %359 = vdwg.mxu0
      %v361 = vsel %vm276, %v300, 0
      %v364 = vsel %vm276, %v301, 0
      %366 = vmatpush.msra.mxu0 0.0
      %367 = vmatpush.msra.mxu0 0.0
      %368 = vmatpush.msra.mxu0 0.0
      %369 = vmatpush.msra.mxu0 0.0
      %370 = vmatpush.msra.mxu0 0.0
      %371 = vmatpush.msra.mxu0 0.0
      %372 = vmatpush.msra.mxu0 0.0
      %373 = vmatpush.msra.mxu0 0.0
      %374 = vmatpush.msra.mxu0 0.0
      %375 = vmatpush.msra.mxu0 0.0
      %376 = vmatpush.msra.mxu0 0.0
      %377 = vmatpush.msra.mxu0 0.0
      %378 = vmatpush.msra.mxu0 0.0
      %379 = vmatpush.msra.mxu0 0.0
      %380 = vmatpush.msra.mxu0 0.0
      %381 = vmatpush.msra.mxu0 %v298
      %382 = vmatmul.f32.gmra.mxu0 %v361
      %v383 = vpop.f32.mrf.mxu0
      %v384 = vadd.f32 %v355, %v383
      %385 = vmatmul.f32.gmra.mxu0 %v364
      %v386 = vpop.f32.mrf.mxu0
      %v387 = vadd.f32 %v358, %v386
      %388 = vdwg.mxu0
      %v389 = vld [vmem:[%s268 + $0x10] sm:$0xff]
      %s390 = scalar_lea.vmem %s4, 16
      %v391 = vld [vmem:[%s390] sm:$0xff]
      %v393 = vsel %vm276, %v389, 0
      %395 = vmatpush.msra.mxu0 0.0
      %396 = vmatpush.msra.mxu0 0.0
      %397 = vmatpush.msra.mxu0 0.0
      %398 = vmatpush.msra.mxu0 0.0
      %399 = vmatpush.msra.mxu0 0.0
      %400 = vmatpush.msra.mxu0 0.0
      %401 = vmatpush.msra.mxu0 0.0
      %402 = vmatpush.msra.mxu0 0.0
      %403 = vmatpush.msra.mxu0 0.0
      %404 = vmatpush.msra.mxu0 0.0
      %405 = vmatpush.msra.mxu0 0.0
      %406 = vmatpush.msra.mxu0 0.0
      %407 = vmatpush.msra.mxu0 0.0
      %408 = vmatpush.msra.mxu0 0.0
      %409 = vmatpush.msra.mxu0 0.0
      %410 = vmatpush.msra.mxu0 %v391
      %411 = vmatmul.f32.gmra.mxu0 %v393
      %v412 = vpop.f32.mrf.mxu0
      %v413 = vadd.f32 0.0, %v412
      %414 = vdwg.mxu0
      %s415 = scalar_lea.vmem %s3, 32
      %v416 = vld [vmem:[%s415] sm:$0xff]
      %v417 = vld [vmem:[%s415 + $0x8] sm:$0xff]
      %v419 = vsel %vm276, %v416, 0
      %v422 = vsel %vm276, %v417, 0
      %424 = vmatpush.msra.mxu0 0.0
      %425 = vmatpush.msra.mxu0 0.0
      %426 = vmatpush.msra.mxu0 0.0
      %427 = vmatpush.msra.mxu0 0.0
      %428 = vmatpush.msra.mxu0 0.0
      %429 = vmatpush.msra.mxu0 0.0
      %430 = vmatpush.msra.mxu0 0.0
      %431 = vmatpush.msra.mxu0 0.0
      %432 = vmatpush.msra.mxu0 0.0
      %433 = vmatpush.msra.mxu0 0.0
      %434 = vmatpush.msra.mxu0 0.0
      %435 = vmatpush.msra.mxu0 0.0
      %436 = vmatpush.msra.mxu0 0.0
      %437 = vmatpush.msra.mxu0 0.0
      %438 = vmatpush.msra.mxu0 0.0
      %439 = vmatpush.msra.mxu0 %v413
      %440 = vmatmul.f32.gmra.mxu0 %v419
      %v441 = vpop.f32.mrf.mxu0
      %v442 = vadd.f32 0.0, %v441
      %443 = vmatmul.f32.gmra.mxu0 %v422
      %v444 = vpop.f32.mrf.mxu0
      %v445 = vadd.f32 0.0, %v444
      %446 = vdwg.mxu0
      %v447 = vadd.f32 %v384, %v442
      %v448 = vadd.f32 %v387, %v445
      %v449 = vld [vmem:[%s268 + $0x18] sm:$0xff]
      %s450 = scalar_lea.vmem %s4, 24
      %v451 = vld [vmem:[%s450] sm:$0xff]
      %v453 = vsel %vm276, %v449, 0
      %455 = vmatpush.msra.mxu0 0.0
      %456 = vmatpush.msra.mxu0 0.0
      %457 = vmatpush.msra.mxu0 0.0
      %458 = vmatpush.msra.mxu0 0.0
      %459 = vmatpush.msra.mxu0 0.0
      %460 = vmatpush.msra.mxu0 0.0
      %461 = vmatpush.msra.mxu0 0.0
      %462 = vmatpush.msra.mxu0 0.0
      %463 = vmatpush.msra.mxu0 0.0
      %464 = vmatpush.msra.mxu0 0.0
      %465 = vmatpush.msra.mxu0 0.0
      %466 = vmatpush.msra.mxu0 0.0
      %467 = vmatpush.msra.mxu0 0.0
      %468 = vmatpush.msra.mxu0 0.0
      %469 = vmatpush.msra.mxu0 0.0
      %470 = vmatpush.msra.mxu0 %v451
      %471 = vmatmul.f32.gmra.mxu0 %v453
      %v472 = vpop.f32.mrf.mxu0
      %v473 = vadd.f32 0.0, %v472
      %474 = vdwg.mxu0
      %s475 = scalar_lea.vmem %s3, 48
      %v476 = vld [vmem:[%s475] sm:$0xff]
      %v477 = vld [vmem:[%s475 + $0x8] sm:$0xff]
      %v479 = vsel %vm276, %v476, 0
      %v482 = vsel %vm276, %v477, 0
      %484 = vmatpush.msra.mxu0 0.0
      %485 = vmatpush.msra.mxu0 0.0
      %486 = vmatpush.msra.mxu0 0.0
      %487 = vmatpush.msra.mxu0 0.0
      %488 = vmatpush.msra.mxu0 0.0
      %489 = vmatpush.msra.mxu0 0.0
      %490 = vmatpush.msra.mxu0 0.0
      %491 = vmatpush.msra.mxu0 0.0
      %492 = vmatpush.msra.mxu0 0.0
      %493 = vmatpush.msra.mxu0 0.0
      %494 = vmatpush.msra.mxu0 0.0
      %495 = vmatpush.msra.mxu0 0.0
      %496 = vmatpush.msra.mxu0 0.0
      %497 = vmatpush.msra.mxu0 0.0
      %498 = vmatpush.msra.mxu0 0.0
      %499 = vmatpush.msra.mxu0 %v473
      %500 = vmatmul.f32.gmra.mxu0 %v479
      %v501 = vpop.f32.mrf.mxu0
      %v502 = vadd.f32 0.0, %v501
      %503 = vmatmul.f32.gmra.mxu0 %v482
      %v504 = vpop.f32.mrf.mxu0
      %v505 = vadd.f32 0.0, %v504
      %506 = vdwg.mxu0
      %v507 = vadd.f32 %v447, %v502
      %v508 = vadd.f32 %v448, %v505
      %v509 = vld [vmem:[%s268 + $0x20] sm:$0xff]
      %s510 = scalar_lea.vmem %s4, 32
      %v511 = vld [vmem:[%s510] sm:$0xff]
      %v513 = vsel %vm276, %v509, 0
      %515 = vmatpush.msra.mxu0 0.0
      %516 = vmatpush.msra.mxu0 0.0
      %517 = vmatpush.msra.mxu0 0.0
      %518 = vmatpush.msra.mxu0 0.0
      %519 = vmatpush.msra.mxu0 0.0
      %520 = vmatpush.msra.mxu0 0.0
      %521 = vmatpush.msra.mxu0 0.0
      %522 = vmatpush.msra.mxu0 0.0
      %523 = vmatpush.msra.mxu0 0.0
      %524 = vmatpush.msra.mxu0 0.0
      %525 = vmatpush.msra.mxu0 0.0
      %526 = vmatpush.msra.mxu0 0.0
      %527 = vmatpush.msra.mxu0 0.0
      %528 = vmatpush.msra.mxu0 0.0
      %529 = vmatpush.msra.mxu0 0.0
      %530 = vmatpush.msra.mxu0 %v511
      %531 = vmatmul.f32.gmra.mxu0 %v513
      %v532 = vpop.f32.mrf.mxu0
      %v533 = vadd.f32 0.0, %v532
      %534 = vdwg.mxu0
      %s535 = scalar_lea.vmem %s3, 64
      %v536 = vld [vmem:[%s535] sm:$0xff]
      %v537 = vld [vmem:[%s535 + $0x8] sm:$0xff]
      %v539 = vsel %vm276, %v536, 0
      %v542 = vsel %vm276, %v537, 0
      %544 = vmatpush.msra.mxu0 0.0
      %545 = vmatpush.msra.mxu0 0.0
      %546 = vmatpush.msra.mxu0 0.0
      %547 = vmatpush.msra.mxu0 0.0
      %548 = vmatpush.msra.mxu0 0.0
      %549 = vmatpush.msra.mxu0 0.0
      %550 = vmatpush.msra.mxu0 0.0
      %551 = vmatpush.msra.mxu0 0.0
      %552 = vmatpush.msra.mxu0 0.0
      %553 = vmatpush.msra.mxu0 0.0
      %554 = vmatpush.msra.mxu0 0.0
      %555 = vmatpush.msra.mxu0 0.0
      %556 = vmatpush.msra.mxu0 0.0
      %557 = vmatpush.msra.mxu0 0.0
      %558 = vmatpush.msra.mxu0 0.0
      %559 = vmatpush.msra.mxu0 %v533
      %560 = vmatmul.f32.gmra.mxu0 %v539
      %v561 = vpop.f32.mrf.mxu0
      %v562 = vadd.f32 0.0, %v561
      %563 = vmatmul.f32.gmra.mxu0 %v542
      %v564 = vpop.f32.mrf.mxu0
      %v565 = vadd.f32 0.0, %v564
      %566 = vdwg.mxu0
      %v567 = vadd.f32 %v507, %v562
      %v568 = vadd.f32 %v508, %v565
      %v569 = vld [vmem:[%s268 + $0x28] sm:$0xff]
      %s570 = scalar_lea.vmem %s4, 40
      %v571 = vld [vmem:[%s570] sm:$0xff]
      %v573 = vsel %vm276, %v569, 0
      %575 = vmatpush.msra.mxu0 0.0
      %576 = vmatpush.msra.mxu0 0.0
      %577 = vmatpush.msra.mxu0 0.0
      %578 = vmatpush.msra.mxu0 0.0
      %579 = vmatpush.msra.mxu0 0.0
      %580 = vmatpush.msra.mxu0 0.0
      %581 = vmatpush.msra.mxu0 0.0
      %582 = vmatpush.msra.mxu0 0.0
      %583 = vmatpush.msra.mxu0 0.0
      %584 = vmatpush.msra.mxu0 0.0
      %585 = vmatpush.msra.mxu0 0.0
      %586 = vmatpush.msra.mxu0 0.0
      %587 = vmatpush.msra.mxu0 0.0
      %588 = vmatpush.msra.mxu0 0.0
      %589 = vmatpush.msra.mxu0 0.0
      %590 = vmatpush.msra.mxu0 %v571
      %591 = vmatmul.f32.gmra.mxu0 %v573
      %v592 = vpop.f32.mrf.mxu0
      %v593 = vadd.f32 0.0, %v592
      %594 = vdwg.mxu0
      %s595 = scalar_lea.vmem %s3, 80
      %v596 = vld [vmem:[%s595] sm:$0xff]
      %v597 = vld [vmem:[%s595 + $0x8] sm:$0xff]
      %v599 = vsel %vm276, %v596, 0
      %v602 = vsel %vm276, %v597, 0
      %604 = vmatpush.msra.mxu0 0.0
      %605 = vmatpush.msra.mxu0 0.0
      %606 = vmatpush.msra.mxu0 0.0
      %607 = vmatpush.msra.mxu0 0.0
      %608 = vmatpush.msra.mxu0 0.0
      %609 = vmatpush.msra.mxu0 0.0
      %610 = vmatpush.msra.mxu0 0.0
      %611 = vmatpush.msra.mxu0 0.0
      %612 = vmatpush.msra.mxu0 0.0
      %613 = vmatpush.msra.mxu0 0.0
      %614 = vmatpush.msra.mxu0 0.0
      %615 = vmatpush.msra.mxu0 0.0
      %616 = vmatpush.msra.mxu0 0.0
      %617 = vmatpush.msra.mxu0 0.0
      %618 = vmatpush.msra.mxu0 0.0
      %619 = vmatpush.msra.mxu0 %v593
      %620 = vmatmul.f32.gmra.mxu0 %v599
      %v621 = vpop.f32.mrf.mxu0
      %v622 = vadd.f32 0.0, %v621
      %623 = vmatmul.f32.gmra.mxu0 %v602
      %v624 = vpop.f32.mrf.mxu0
      %v625 = vadd.f32 0.0, %v624
      %626 = vdwg.mxu0
      %v627 = vadd.f32 %v567, %v622
      %v628 = vadd.f32 %v568, %v625
      %v629 = vld [vmem:[%s268 + $0x30] sm:$0xff]
      %s630 = scalar_lea.vmem %s4, 48
      %v631 = vld [vmem:[%s630] sm:$0xff]
      %v633 = vsel %vm276, %v629, 0
      %635 = vmatpush.msra.mxu0 0.0
      %636 = vmatpush.msra.mxu0 0.0
      %637 = vmatpush.msra.mxu0 0.0
      %638 = vmatpush.msra.mxu0 0.0
      %639 = vmatpush.msra.mxu0 0.0
      %640 = vmatpush.msra.mxu0 0.0
      %641 = vmatpush.msra.mxu0 0.0
      %642 = vmatpush.msra.mxu0 0.0
      %643 = vmatpush.msra.mxu0 0.0
      %644 = vmatpush.msra.mxu0 0.0
      %645 = vmatpush.msra.mxu0 0.0
      %646 = vmatpush.msra.mxu0 0.0
      %647 = vmatpush.msra.mxu0 0.0
      %648 = vmatpush.msra.mxu0 0.0
      %649 = vmatpush.msra.mxu0 0.0
      %650 = vmatpush.msra.mxu0 %v631
      %651 = vmatmul.f32.gmra.mxu0 %v633
      %v652 = vpop.f32.mrf.mxu0
      %v653 = vadd.f32 0.0, %v652
      %654 = vdwg.mxu0
      %s655 = scalar_lea.vmem %s3, 96
      %v656 = vld [vmem:[%s655] sm:$0xff]
      %v657 = vld [vmem:[%s655 + $0x8] sm:$0xff]
      %v659 = vsel %vm276, %v656, 0
      %v662 = vsel %vm276, %v657, 0
      %664 = vmatpush.msra.mxu0 0.0
      %665 = vmatpush.msra.mxu0 0.0
      %666 = vmatpush.msra.mxu0 0.0
      %667 = vmatpush.msra.mxu0 0.0
      %668 = vmatpush.msra.mxu0 0.0
      %669 = vmatpush.msra.mxu0 0.0
      %670 = vmatpush.msra.mxu0 0.0
      %671 = vmatpush.msra.mxu0 0.0
      %672 = vmatpush.msra.mxu0 0.0
      %673 = vmatpush.msra.mxu0 0.0
      %674 = vmatpush.msra.mxu0 0.0
      %675 = vmatpush.msra.mxu0 0.0
      %676 = vmatpush.msra.mxu0 0.0
      %677 = vmatpush.msra.mxu0 0.0
      %678 = vmatpush.msra.mxu0 0.0
      %679 = vmatpush.msra.mxu0 %v653
      %680 = vmatmul.f32.gmra.mxu0 %v659
      %v681 = vpop.f32.mrf.mxu0
      %v682 = vadd.f32 0.0, %v681
      %683 = vmatmul.f32.gmra.mxu0 %v662
      %v684 = vpop.f32.mrf.mxu0
      %v685 = vadd.f32 0.0, %v684
      %686 = vdwg.mxu0
      %v687 = vadd.f32 %v627, %v682
      %v688 = vadd.f32 %v628, %v685
      %v689 = vld [vmem:[%s268 + $0x38] sm:$0xff]
      %s690 = scalar_lea.vmem %s4, 56
      %v691 = vld [vmem:[%s690] sm:$0xff]
      %v693 = vsel %vm276, %v689, 0
      %695 = vmatpush.msra.mxu0 0.0
      %696 = vmatpush.msra.mxu0 0.0
      %697 = vmatpush.msra.mxu0 0.0
      %698 = vmatpush.msra.mxu0 0.0
      %699 = vmatpush.msra.mxu0 0.0
      %700 = vmatpush.msra.mxu0 0.0
      %701 = vmatpush.msra.mxu0 0.0
      %702 = vmatpush.msra.mxu0 0.0
      %703 = vmatpush.msra.mxu0 0.0
      %704 = vmatpush.msra.mxu0 0.0
      %705 = vmatpush.msra.mxu0 0.0
      %706 = vmatpush.msra.mxu0 0.0
      %707 = vmatpush.msra.mxu0 0.0
      %708 = vmatpush.msra.mxu0 0.0
      %709 = vmatpush.msra.mxu0 0.0
      %710 = vmatpush.msra.mxu0 %v691
      %711 = vmatmul.f32.gmra.mxu0 %v693
      %v712 = vpop.f32.mrf.mxu0
      %v713 = vadd.f32 0.0, %v712
      %714 = vdwg.mxu0
      %s715 = scalar_lea.vmem %s3, 112
      %v716 = vld [vmem:[%s715] sm:$0xff]
      %v717 = vld [vmem:[%s715 + $0x8] sm:$0xff]
      %v719 = vsel %vm276, %v716, 0
      %v722 = vsel %vm276, %v717, 0
      %724 = vmatpush.msra.mxu0 0.0
      %725 = vmatpush.msra.mxu0 0.0
      %726 = vmatpush.msra.mxu0 0.0
      %727 = vmatpush.msra.mxu0 0.0
      %728 = vmatpush.msra.mxu0 0.0
      %729 = vmatpush.msra.mxu0 0.0
      %730 = vmatpush.msra.mxu0 0.0
      %731 = vmatpush.msra.mxu0 0.0
      %732 = vmatpush.msra.mxu0 0.0
      %733 = vmatpush.msra.mxu0 0.0
      %734 = vmatpush.msra.mxu0 0.0
      %735 = vmatpush.msra.mxu0 0.0
      %736 = vmatpush.msra.mxu0 0.0
      %737 = vmatpush.msra.mxu0 0.0
      %738 = vmatpush.msra.mxu0 0.0
      %739 = vmatpush.msra.mxu0 %v713
      %740 = vmatmul.f32.gmra.mxu0 %v719
      %v741 = vpop.f32.mrf.mxu0
      %v742 = vadd.f32 0.0, %v741
      %743 = vmatmul.f32.gmra.mxu0 %v722
      %v744 = vpop.f32.mrf.mxu0
      %v745 = vadd.f32 0.0, %v744
      %746 = vdwg.mxu0
      %v747 = vadd.f32 %v687, %v742
      %v748 = vadd.f32 %v688, %v745
      %v749 = vld [vmem:[%s268 + $0x40] sm:$0xff]
      %s750 = scalar_lea.vmem %s4, 64
      %v751 = vld [vmem:[%s750] sm:$0xff]
      %v753 = vsel %vm276, %v749, 0
      %755 = vmatpush.msra.mxu0 0.0
      %756 = vmatpush.msra.mxu0 0.0
      %757 = vmatpush.msra.mxu0 0.0
      %758 = vmatpush.msra.mxu0 0.0
      %759 = vmatpush.msra.mxu0 0.0
      %760 = vmatpush.msra.mxu0 0.0
      %761 = vmatpush.msra.mxu0 0.0
      %762 = vmatpush.msra.mxu0 0.0
      %763 = vmatpush.msra.mxu0 0.0
      %764 = vmatpush.msra.mxu0 0.0
      %765 = vmatpush.msra.mxu0 0.0
      %766 = vmatpush.msra.mxu0 0.0
      %767 = vmatpush.msra.mxu0 0.0
      %768 = vmatpush.msra.mxu0 0.0
      %769 = vmatpush.msra.mxu0 0.0
      %770 = vmatpush.msra.mxu0 %v751
      %771 = vmatmul.f32.gmra.mxu0 %v753
      %v772 = vpop.f32.mrf.mxu0
      %v773 = vadd.f32 0.0, %v772
      %774 = vdwg.mxu0
      %s775 = scalar_lea.vmem %s3, 128
      %v776 = vld [vmem:[%s775] sm:$0xff]
      %v777 = vld [vmem:[%s775 + $0x8] sm:$0xff]
      %v779 = vsel %vm276, %v776, 0
      %v782 = vsel %vm276, %v777, 0
      %784 = vmatpush.msra.mxu0 0.0
      %785 = vmatpush.msra.mxu0 0.0
      %786 = vmatpush.msra.mxu0 0.0
      %787 = vmatpush.msra.mxu0 0.0
      %788 = vmatpush.msra.mxu0 0.0
      %789 = vmatpush.msra.mxu0 0.0
      %790 = vmatpush.msra.mxu0 0.0
      %791 = vmatpush.msra.mxu0 0.0
      %792 = vmatpush.msra.mxu0 0.0
      %793 = vmatpush.msra.mxu0 0.0
      %794 = vmatpush.msra.mxu0 0.0
      %795 = vmatpush.msra.mxu0 0.0
      %796 = vmatpush.msra.mxu0 0.0
      %797 = vmatpush.msra.mxu0 0.0
      %798 = vmatpush.msra.mxu0 0.0
      %799 = vmatpush.msra.mxu0 %v773
      %800 = vmatmul.f32.gmra.mxu0 %v779
      %v801 = vpop.f32.mrf.mxu0
      %v802 = vadd.f32 0.0, %v801
      %803 = vmatmul.f32.gmra.mxu0 %v782
      %v804 = vpop.f32.mrf.mxu0
      %v805 = vadd.f32 0.0, %v804
      %806 = vdwg.mxu0
      %v807 = vadd.f32 %v747, %v802
      %v808 = vadd.f32 %v748, %v805
      %v809 = vld [vmem:[#allocation2] sm:$0x1]
      %v811 = vperm.slane %v809, 0
      %812 = vset.pattern.permute.xlu0 0
      %813 = vperm.xlu0 %812, %v811
      %v814 = vpop.permute.xlu0 %813
      %v816 = vadd.f32 %v807, %v814
      %v817 = vadd.f32 %v808, %v814
      %v818 = vxor.u32 %v816, 2147483648
      %v819 = vxor.u32 %v817, 2147483648
      %v820 = vmul.f32 %v818, 1.442695
      %v821 = vpow.pop %v820
      %v822 = vmul.f32 %v819, 1.442695
      %v823 = vpow.pop %v822
      %v824 = vadd.f32 %v821, 1.0
      %v825 = vadd.f32 %v823, 1.0
      %v826 = vrcp.pop %v824
      %v827 = vmul.f32 %v824, %v826
      %v828 = vsub.f32 1.0, %v827
      %v829 = vmul.f32 %v826, %v828
      %v830 = vadd.f32 %v826, %v829
      %vm831 = vweird.f32 %v824
      %vm832 = vweird.f32 %v826
      %vm833 = vmor %vm831, %vm832
      %v834 = vsel %vm833, %v826, %v830
      %v835 = vand.u32 2147483647, %v824
      %vm836 = vcmp.eq.f32.partialorder %v835, 8.507059e+37
      %v837 = vand.u32 %v824, 2147483648
      %v838 = vor.u32 1.1754944e-38, %v837
      %v839 = vsel %vm836, %v838, %v834
      %v840 = vmul.f32 1.0, %v839
      %v841 = vrcp.pop %v825
      %v842 = vmul.f32 %v825, %v841
      %v843 = vsub.f32 1.0, %v842
      %v844 = vmul.f32 %v841, %v843
      %v845 = vadd.f32 %v841, %v844
      %vm846 = vweird.f32 %v825
      %vm847 = vweird.f32 %v841
      %vm848 = vmor %vm846, %vm847
      %v849 = vsel %vm848, %v841, %v845
      %v850 = vand.u32 2147483647, %v825
      %vm851 = vcmp.eq.f32.partialorder %v850, 8.507059e+37
      %v852 = vand.u32 %v825, 2147483648
      %v853 = vor.u32 1.1754944e-38, %v852
      %v854 = vsel %vm851, %v853, %v849
      %v855 = vmul.f32 1.0, %v854
      %v857 = vrot.slane %v840, 1
      %858 = vrot.lane.b32.xlu0 %v857, 18
      %v859 = vpop.permute.xlu0 %858
      %v861 = vrot.slane %v840, 2
      %862 = vrot.lane.b32.xlu0 %v861, 36
      %v863 = vpop.permute.xlu0 %862
      %v865 = vrot.slane %v840, 3
      %866 = vrot.lane.b32.xlu0 %v865, 54
      %v867 = vpop.permute.xlu0 %866
      %v869 = vrot.slane %v840, 4
      %870 = vrot.lane.b32.xlu0 %v869, 72
      %v871 = vpop.permute.xlu0 %870
      %v873 = vrot.slane %v840, 5
      %874 = vrot.lane.b32.xlu0 %v873, 90
      %v875 = vpop.permute.xlu0 %874
      %v877 = vrot.slane %v840, 6
      %878 = vrot.lane.b32.xlu0 %v877, 108
      %v879 = vpop.permute.xlu0 %878
      %v881 = vrot.slane %v840, 7
      %882 = vrot.lane.b32.xlu0 %v881, 126
      %v883 = vpop.permute.xlu0 %882
      %886 = vrot.lane.b32.xlu0 %v855, 16
      %v887 = vpop.permute.xlu0 %886
      %v889 = vrot.slane %v855, 1
      %890 = vrot.lane.b32.xlu0 %v889, 34
      %v891 = vpop.permute.xlu0 %890
      %v893 = vrot.slane %v855, 2
      %894 = vrot.lane.b32.xlu0 %v893, 52
      %v895 = vpop.permute.xlu0 %894
      %v897 = vrot.slane %v855, 3
      %898 = vrot.lane.b32.xlu0 %v897, 70
      %v899 = vpop.permute.xlu0 %898
      %v901 = vrot.slane %v855, 4
      %902 = vrot.lane.b32.xlu0 %v901, 88
      %v903 = vpop.permute.xlu0 %902
      %v905 = vrot.slane %v855, 5
      %906 = vrot.lane.b32.xlu0 %v905, 106
      %v907 = vpop.permute.xlu0 %906
      %v909 = vrot.slane %v855, 6
      %910 = vrot.lane.b32.xlu0 %v909, 124
      %v911 = vpop.permute.xlu0 %910
      %v913 = vrot.slane %v855, 7
      %914 = vrot.lane.b32.xlu0 %v913, 14
      %v915 = vpop.permute.xlu0 %914
      %vm917 = vcmask 146432
      %v918 = vsel %vm917, %v840, %v859
      %vm919 = vcmask 293888
      %v920 = vsel %vm919, %v918, %v863
      %vm921 = vcmask 441344
      %v922 = vsel %vm921, %v920, %v867
      %vm923 = vcmask 588800
      %v924 = vsel %vm923, %v922, %v871
      %vm925 = vcmask 736256
      %v926 = vsel %vm925, %v924, %v875
      %vm927 = vcmask 883712
      %v928 = vsel %vm927, %v926, %v879
      %vm929 = vcmask 1031168
      %v930 = vsel %vm929, %v928, %v883
      %vm931 = vcmask 130048
      %v932 = vsel %vm931, %v883, %v887
      %vm933 = vcmask 277504
      %v934 = vsel %vm933, %v932, %v891
      %vm935 = vcmask 424960
      %v936 = vsel %vm935, %v934, %v895
      %vm937 = vcmask 572416
      %v938 = vsel %vm937, %v936, %v899
      %vm939 = vcmask 719872
      %v940 = vsel %vm939, %v938, %v903
      %vm941 = vcmask 867328
      %v942 = vsel %vm941, %v940, %v907
      %vm943 = vcmask 1014784
      %v944 = vsel %vm943, %v942, %v911
      %vm945 = vcmask 113664
      %v946 = vsel %vm945, %v911, %v915
      %v947 = vld [vmem:[%s263] sm:$0xff]
      %v948 = vld [vmem:[%s263 + $0x8] sm:$0xf]
      %951 = vst [vmem:[#allocation1] ss:$2 sm:$0xff] %v947
      %s952 = scalar_lea.vmem [#allocation1], 16
      %953 = vst [vmem:[%s952] ss:$2 sm:$0xff] %v948
      %v954 = vld.sshfl [vmem:[#allocation1] sm:$0xff pattern:$0x75316420]
      %v955 = vld.sshfl [vmem:[#allocation1 + $0x8] sm:$0xff pattern:$0x75316420]
      %v956 = vld.sshfl [vmem:[#allocation1 + $0x10] sm:$0xff pattern:$0x75316420]
      %s960 = scalar_lea.vmem [#allocation1], 1
      %961 = vst [vmem:[%s960] ss:$2 sm:$0xff] %v947
      %s962 = scalar_lea.vmem [#allocation1], 17
      %963 = vst [vmem:[%s962] ss:$2 sm:$0xff] %v948
      %v964 = vld.sshfl [vmem:[#allocation1] sm:$0xff pattern:$0x75316420]
      %v965 = vld.sshfl [vmem:[#allocation1 + $0x8] sm:$0xff pattern:$0x75316420]
      %v966 = vld.sshfl [vmem:[#allocation1 + $0x10] sm:$0xff pattern:$0x75316420]
      %967 = vrot.lane.b32.xlu0 %v964, 127
      %v968 = vpop.permute.xlu0 %967
      %969 = vrot.lane.b32.xlu0 %v965, 127
      %v970 = vpop.permute.xlu0 %969
      %971 = vrot.lane.b32.xlu0 %v966, 127
      %v972 = vpop.permute.xlu0 %971
      %vm973 = vcmask 1039360
      %v974 = vsel %vm973, %v968, %v970
      %v975 = vsel %vm973, %v970, %v972
      %979 = vst [vmem:[#allocation1] ss:$2 sm:$0xff] %v947
      %s980 = scalar_lea.vmem [#allocation1], 16
      %981 = vst [vmem:[%s980] ss:$2 sm:$0xff] %v948
      %v982 = vld.sshfl [vmem:[#allocation1] sm:$0xff pattern:$0x75316420]
      %v983 = vld.sshfl [vmem:[#allocation1 + $0x8] sm:$0xff pattern:$0x75316420]
      %v984 = vld.sshfl [vmem:[#allocation1 + $0x10] sm:$0xff pattern:$0x75316420]
      %985 = vrot.lane.b32.xlu0 %v982, 126
      %v986 = vpop.permute.xlu0 %985
      %987 = vrot.lane.b32.xlu0 %v983, 126
      %v988 = vpop.permute.xlu0 %987
      %989 = vrot.lane.b32.xlu0 %v984, 126
      %v990 = vpop.permute.xlu0 %989
      %v991 = vsel %vm929, %v986, %v988
      %v992 = vsel %vm929, %v988, %v990
      %s996 = scalar_lea.vmem [#allocation1], 1
      %997 = vst [vmem:[%s996] ss:$2 sm:$0xff] %v947
      %s998 = scalar_lea.vmem [#allocation1], 17
      %999 = vst [vmem:[%s998] ss:$2 sm:$0xff] %v948
      %v1000 = vld.sshfl [vmem:[#allocation1] sm:$0xff pattern:$0x75316420]
      %v1001 = vld.sshfl [vmem:[#allocation1 + $0x8] sm:$0xff pattern:$0x75316420]
      %v1002 = vld.sshfl [vmem:[#allocation1 + $0x10] sm:$0xff pattern:$0x75316420]
      %1003 = vrot.lane.b32.xlu0 %v1000, 110
      %v1004 = vpop.permute.xlu0 %1003
      %1005 = vrot.lane.b32.xlu0 %v1001, 110
      %v1006 = vpop.permute.xlu0 %1005
      %1007 = vrot.lane.b32.xlu0 %v1002, 110
      %v1008 = vpop.permute.xlu0 %1007
      %vm1009 = vcmask 900096
      %v1010 = vsel %vm1009, %v1004, %v1006
      %v1011 = vsel %vm1009, %v1006, %v1008
      %1015 = vst [vmem:[#allocation1] ss:$2 sm:$0xff] %v947
      %s1016 = scalar_lea.vmem [#allocation1], 16
      %1017 = vst [vmem:[%s1016] ss:$2 sm:$0xff] %v948
      %v1018 = vld.sshfl [vmem:[#allocation1] sm:$0xff pattern:$0x75316420]
      %v1019 = vld.sshfl [vmem:[#allocation1 + $0x8] sm:$0xff pattern:$0x75316420]
      %v1020 = vld.sshfl [vmem:[#allocation1 + $0x10] sm:$0xff pattern:$0x75316420]
      %1021 = vrot.lane.b32.xlu0 %v1018, 109
      %v1022 = vpop.permute.xlu0 %1021
      %1023 = vrot.lane.b32.xlu0 %v1019, 109
      %v1024 = vpop.permute.xlu0 %1023
      %1025 = vrot.lane.b32.xlu0 %v1020, 109
      %v1026 = vpop.permute.xlu0 %1025
      %vm1027 = vcmask 891904
      %v1028 = vsel %vm1027, %v1022, %v1024
      %v1029 = vsel %vm1027, %v1024, %v1026
      %s1033 = scalar_lea.vmem [#allocation1], 1
      %1034 = vst [vmem:[%s1033] ss:$2 sm:$0xff] %v947
      %s1035 = scalar_lea.vmem [#allocation1], 17
      %1036 = vst [vmem:[%s1035] ss:$2 sm:$0xff] %v948
      %v1037 = vld.sshfl [vmem:[#allocation1] sm:$0xff pattern:$0x75316420]
      %v1038 = vld.sshfl [vmem:[#allocation1 + $0x8] sm:$0xff pattern:$0x75316420]
      %v1039 = vld.sshfl [vmem:[#allocation1 + $0x10] sm:$0xff pattern:$0x75316420]
      %1040 = vrot.lane.b32.xlu0 %v1037, 108
      %v1041 = vpop.permute.xlu0 %1040
      %1042 = vrot.lane.b32.xlu0 %v1038, 108
      %v1043 = vpop.permute.xlu0 %1042
      %1044 = vrot.lane.b32.xlu0 %v1039, 108
      %v1045 = vpop.permute.xlu0 %1044
      %v1046 = vsel %vm927, %v1041, %v1043
      %v1047 = vsel %vm927, %v1043, %v1045
      %1051 = vst [vmem:[#allocation1] ss:$2 sm:$0xff] %v947
      %s1052 = scalar_lea.vmem [#allocation1], 16
      %1053 = vst [vmem:[%s1052] ss:$2 sm:$0xff] %v948
      %v1054 = vld.sshfl [vmem:[#allocation1] sm:$0xff pattern:$0x75316420]
      %v1055 = vld.sshfl [vmem:[#allocation1 + $0x8] sm:$0xff pattern:$0x75316420]
      %v1056 = vld.sshfl [vmem:[#allocation1 + $0x10] sm:$0xff pattern:$0x75316420]
      %1057 = vrot.lane.b32.xlu0 %v1054, 92
      %v1058 = vpop.permute.xlu0 %1057
      %1059 = vrot.lane.b32.xlu0 %v1055, 92
      %v1060 = vpop.permute.xlu0 %1059
      %1061 = vrot.lane.b32.xlu0 %v1056, 92
      %v1062 = vpop.permute.xlu0 %1061
      %vm1063 = vcmask 752640
      %v1064 = vsel %vm1063, %v1058, %v1060
      %v1065 = vsel %vm1063, %v1060, %v1062
      %s1069 = scalar_lea.vmem [#allocation1], 1
      %1070 = vst [vmem:[%s1069] ss:$2 sm:$0xff] %v947
      %s1071 = scalar_lea.vmem [#allocation1], 17
      %1072 = vst [vmem:[%s1071] ss:$2 sm:$0xff] %v948
      %v1073 = vld.sshfl [vmem:[#allocation1] sm:$0xff pattern:$0x75316420]
      %v1074 = vld.sshfl [vmem:[#allocation1 + $0x8] sm:$0xff pattern:$0x75316420]
      %v1075 = vld.sshfl [vmem:[#allocation1 + $0x10] sm:$0xff pattern:$0x75316420]
      %1076 = vrot.lane.b32.xlu0 %v1073, 91
      %v1077 = vpop.permute.xlu0 %1076
      %1078 = vrot.lane.b32.xlu0 %v1074, 91
      %v1079 = vpop.permute.xlu0 %1078
      %1080 = vrot.lane.b32.xlu0 %v1075, 91
      %v1081 = vpop.permute.xlu0 %1080
      %vm1082 = vcmask 744448
      %v1083 = vsel %vm1082, %v1077, %v1079
      %v1084 = vsel %vm1082, %v1079, %v1081
      %1088 = vst [vmem:[#allocation1] ss:$2 sm:$0xff] %v947
      %s1089 = scalar_lea.vmem [#allocation1], 16
      %1090 = vst [vmem:[%s1089] ss:$2 sm:$0xff] %v948
      %v1091 = vld.sshfl [vmem:[#allocation1] sm:$0xff pattern:$0x75316420]
      %v1092 = vld.sshfl [vmem:[#allocation1 + $0x8] sm:$0xff pattern:$0x75316420]
      %v1093 = vld.sshfl [vmem:[#allocation1 + $0x10] sm:$0xff pattern:$0x75316420]
      %1094 = vrot.lane.b32.xlu0 %v1091, 90
      %v1095 = vpop.permute.xlu0 %1094
      %1096 = vrot.lane.b32.xlu0 %v1092, 90
      %v1097 = vpop.permute.xlu0 %1096
      %1098 = vrot.lane.b32.xlu0 %v1093, 90
      %v1099 = vpop.permute.xlu0 %1098
      %v1100 = vsel %vm925, %v1095, %v1097
      %v1101 = vsel %vm925, %v1097, %v1099
      %vm1102 = vcmask 1043456
      %v1103 = vsel %vm1102, %v954, %v974
      %v1104 = vsel %vm1102, %v955, %v975
      %v1105 = vsel %vm1102, %v956, %v972
      %v1106 = vsel %vm1102, %v991, %v1010
      %v1107 = vsel %vm1102, %v992, %v1011
      %v1108 = vsel %vm1102, %v990, %v1008
      %v1109 = vsel %vm1102, %v1028, %v1046
      %v1110 = vsel %vm1102, %v1029, %v1047
      %v1111 = vsel %vm1102, %v1026, %v1045
      %v1112 = vsel %vm1102, %v1064, %v1083
      %v1113 = vsel %vm1102, %v1065, %v1084
      %v1114 = vsel %vm1102, %v1062, %v1081
      %v1115 = vld [vmem:[%s1] sm:$0xf]
      %1128 = vrot.lane.b32.xlu0 %v1103, 111
      %v1129 = vpop.permute.xlu0 %1128
      %1130 = vrot.lane.b32.xlu0 %v1104, 111
      %v1131 = vpop.permute.xlu0 %1130
      %1132 = vrot.lane.b32.xlu0 %v1105, 111
      %v1133 = vpop.permute.xlu0 %1132
      %1134 = vrot.lane.b32.xlu0 %v1106, 111
      %v1135 = vpop.permute.xlu0 %1134
      %1136 = vrot.lane.b32.xlu0 %v1107, 111
      %v1137 = vpop.permute.xlu0 %1136
      %1138 = vrot.lane.b32.xlu0 %v1108, 111
      %v1139 = vpop.permute.xlu0 %1138
      %1140 = vrot.lane.b32.xlu0 %v1109, 111
      %v1141 = vpop.permute.xlu0 %1140
      %1142 = vrot.lane.b32.xlu0 %v1110, 111
      %v1143 = vpop.permute.xlu0 %1142
      %1144 = vrot.lane.b32.xlu0 %v1111, 111
      %v1145 = vpop.permute.xlu0 %1144
      %1146 = vrot.lane.b32.xlu0 %v1112, 111
      %v1147 = vpop.permute.xlu0 %1146
      %1148 = vrot.lane.b32.xlu0 %v1113, 111
      %v1149 = vpop.permute.xlu0 %1148
      %1150 = vrot.lane.b32.xlu0 %v1114, 111
      %v1151 = vpop.permute.xlu0 %1150
      %1152 = vrot.lane.b32.xlu0 %v1100, 111
      %v1153 = vpop.permute.xlu0 %1152
      %1154 = vrot.lane.b32.xlu0 %v1101, 111
      %v1155 = vpop.permute.xlu0 %1154
      %1156 = vrot.lane.b32.xlu0 %v1099, 111
      %v1157 = vpop.permute.xlu0 %1156
      %vm1158 = vcmask 908288
      %v1159 = vsel %vm1158, %v1129, %v1131
      %v1160 = vsel %vm1158, %v1131, %v1133
      %v1161 = vsel %vm1158, %v1135, %v1137
      %v1162 = vsel %vm1158, %v1137, %v1139
      %v1163 = vsel %vm1158, %v1141, %v1143
      %v1164 = vsel %vm1158, %v1143, %v1145
      %v1165 = vsel %vm1158, %v1147, %v1149
      %v1166 = vsel %vm1158, %v1149, %v1151
      %v1167 = vsel %vm1158, %v1153, %v1155
      %v1168 = vsel %vm1158, %v1155, %v1157
      %v1182 = vsel %vm919, %v1115, 0
      %v1184 = vsel %vm1102, %v1167, 0
      %v1186 = vsel %vm1102, %v1168, 0
      %v1188 = vsel %vm1102, %v1157, 0
      %1190 = vmatpush.msra.mxu0 0.0
      %1191 = vmatpush.msra.mxu0 0.0
      %1192 = vmatpush.msra.mxu0 0.0
      %1193 = vmatpush.msra.mxu0 0.0
      %1194 = vmatpush.msra.mxu0 0.0
      %1195 = vmatpush.msra.mxu0 0.0
      %1196 = vmatpush.msra.mxu0 0.0
      %1197 = vmatpush.msra.mxu0 0.0
      %1198 = vmatpush.msra.mxu0 0.0
      %1199 = vmatpush.msra.mxu0 0.0
      %1200 = vmatpush.msra.mxu0 0.0
      %1201 = vmatpush.msra.mxu0 %v1184
      %1202 = vmatpush.msra.mxu0 %v1165
      %1203 = vmatpush.msra.mxu0 %v1163
      %1204 = vmatpush.msra.mxu0 %v1161
      %1205 = vmatpush.msra.mxu0 %v1159
      %1206 = vmatmul.f32.gmra.mxu0 %v1182
      %v1207 = vpop.f32.mrf.mxu0
      %v1208 = vadd.f32 0.0, %v1207
      %1209 = vdwg.mxu0
      %1210 = vmatpush.msra.mxu0 0.0
      %1211 = vmatpush.msra.mxu0 0.0
      %1212 = vmatpush.msra.mxu0 0.0
      %1213 = vmatpush.msra.mxu0 0.0
      %1214 = vmatpush.msra.mxu0 0.0
      %1215 = vmatpush.msra.mxu0 0.0
      %1216 = vmatpush.msra.mxu0 0.0
      %1217 = vmatpush.msra.mxu0 0.0
      %1218 = vmatpush.msra.mxu0 0.0
      %1219 = vmatpush.msra.mxu0 0.0
      %1220 = vmatpush.msra.mxu0 0.0
      %1221 = vmatpush.msra.mxu0 %v1186
      %1222 = vmatpush.msra.mxu0 %v1166
      %1223 = vmatpush.msra.mxu0 %v1164
      %1224 = vmatpush.msra.mxu0 %v1162
      %1225 = vmatpush.msra.mxu0 %v1160
      %1226 = vmatmul.f32.gmra.mxu0 %v1182
      %v1227 = vpop.f32.mrf.mxu0
      %v1228 = vadd.f32 0.0, %v1227
      %1229 = vdwg.mxu0
      %1230 = vmatpush.msra.mxu0 0.0
      %1231 = vmatpush.msra.mxu0 0.0
      %1232 = vmatpush.msra.mxu0 0.0
      %1233 = vmatpush.msra.mxu0 0.0
      %1234 = vmatpush.msra.mxu0 0.0
      %1235 = vmatpush.msra.mxu0 0.0
      %1236 = vmatpush.msra.mxu0 0.0
      %1237 = vmatpush.msra.mxu0 0.0
      %1238 = vmatpush.msra.mxu0 0.0
      %1239 = vmatpush.msra.mxu0 0.0
      %1240 = vmatpush.msra.mxu0 0.0
      %1241 = vmatpush.msra.mxu0 %v1188
      %1242 = vmatpush.msra.mxu0 %v1151
      %1243 = vmatpush.msra.mxu0 %v1145
      %1244 = vmatpush.msra.mxu0 %v1139
      %1245 = vmatpush.msra.mxu0 %v1133
      %1246 = vmatmul.f32.gmra.mxu0 %v1182
      %v1247 = vpop.f32.mrf.mxu0
      %v1248 = vadd.f32 0.0, %v1247
      %1249 = vdwg.mxu0
      %v1250 = vperm.slane %v930, 0
      %v1251 = vperm.slane %v944, 0
      %v1252 = vperm.slane %v946, 0
      %v1253 = vmul.f32 %v1208, %v1250
      %v1254 = vmul.f32 %v1228, %v1251
      %v1255 = vmul.f32 %v1248, %v1252
      %v1259 = vrot.slane %v1254, 4
      %v1260 = vsel %vm1102, %v1253, %v1259
      %1261 = vrot.lane.b32.xlu0 %v1260, 36
      %v1262 = vpop.permute.xlu0 %1261
      %1263 = vrot.lane.b32.xlu0 %v1255, 36
      %v1264 = vpop.permute.xlu0 %1263
      %v1265 = vrot.slane %v1262, 4
      %v1266 = vsel %vm919, %v1265, %v1262
      %v1267 = vsel %vm919, %v1265, %v1264
      %v1270 = vadd.f32 %v947, %v1266
      %v1271 = vadd.f32 %v948, %v1267
      %1274 = vst [vmem:[#allocation1] ss:$2 sm:$0xff] %v1270
      %s1275 = scalar_lea.vmem [#allocation1], 16
      %1276 = vst [vmem:[%s1275] ss:$2 sm:$0xff] %v1271
      %v1277 = vld.sshfl [vmem:[#allocation1] sm:$0xff pattern:$0x75316420]
      %v1278 = vld.sshfl [vmem:[#allocation1 + $0x8] sm:$0xff pattern:$0x75316420]
      %v1279 = vld.sshfl [vmem:[#allocation1 + $0x10] sm:$0xff pattern:$0x75316420]
      %1280 = vrot.lane.b32.xlu0 %v1277, 92
      %v1281 = vpop.permute.xlu0 %1280
      %1282 = vrot.lane.b32.xlu0 %v1278, 92
      %v1283 = vpop.permute.xlu0 %1282
      %1284 = vrot.lane.b32.xlu0 %v1279, 92
      %v1285 = vpop.permute.xlu0 %1284
      %v1286 = vsel %vm1063, %v1281, %v1283
      %v1287 = vsel %vm1063, %v1283, %v1285
      %vm1289 = vcmask 261120
      %v1290 = vsel %vm1289, %v1285, 0.0
      %v1291 = vrot.slane %v1287, 4
      %v1292 = vsel %vm1102, %v1286, %v1291
      %1294 = vst [vmem:[%s273] sm:$0xff] %v1292
      %1295 = vst [vmem:[%s273 + $0x8] sm:$0xf] %v1290
      %p1296 = scmp.lt.s32.totalorder %s19, 1
      %s1297 = scalar_select %p1296, %s19, 1
      %s1298 = smul.addr %s1297, 3
      %s1299 = smul.addr %s1298, 4
      %s1300 = scalar_lea.vmem %s6, %s1299
      // Predicated region
      $region45: #{scale_aware_adapt_forward.5} parent=43 // pred_check
        %p1301 = pneg %p173
      $region46: #{scale_aware_adapt_forward.5} parent=43 // pred_check_branch
        %1303 = sbr.rel (%p1301) target = $region48
      $region47: #{scale_aware_adapt_forward.5} parent=43 // pred_region
        _
      $region48: #{scale_aware_adapt_forward.5} parent=43 // pred_fallthru
        _
    $region44: #{scale_aware_adapt_forward.5} parent=5 // pred_fallthru
      _
    %p1304 = scmp.le.s32.totalorder 2, %s14
    // Predicated region
    $region49: #{scale_aware_adapt_forward.5} parent=5 // pred_check
      %p1305 = pneg %p1304
    $region50: #{scale_aware_adapt_forward.5} parent=5 // pred_check_branch
      %1307 = sbr.rel (%p1305) target = $region52
    $region51: #{scale_aware_adapt_forward.5} parent=5 // pred_region
      %s1308 = ssub.s32 %s14, 2
      // Predicated region
      $region53: #{scale_aware_adapt_forward.5} parent=51 // pred_check
        %p1309 = pneg %p179
      $region54: #{scale_aware_adapt_forward.5} parent=51 // pred_check_branch
        %1311 = sbr.rel (%p1309) target = $region56
      $region55: #{scale_aware_adapt_forward.5} parent=51 // pred_region
        %p1312 = scmp.lt.s32.totalorder %s20, 1
        %s1313 = scalar_select %p1312, %s20, 1
        %s1314 = smul.addr %s1313, 3
        %s1315 = smul.addr %s1314, 4
        %s1316 = scalar_lea.vmem %s6, %s1315
      $region56: #{scale_aware_adapt_forward.5} parent=51 // pred_fallthru
        _
    $region52: #{scale_aware_adapt_forward.5} parent=5 // pred_fallthru
      _
  $region6: #{scale_aware_adapt_forward.5} parent=0 // loop_footer
    %s18 = sadd.s32 1, %s14
  $region7: #{scale_aware_adapt_forward.5} parent=0 // loop_footer_branch
    %13 = sbr.rel target = $region3
  $region8: #{scale_aware_adapt_forward.5} parent=0 // loop_exit
    _

</llo_original>
